<compile_context>
chip_gen: v7x
topology: tpu7x:2x2x1
jax: 0.10.0
libtpu: 0.0.40
codegen_flags: <defaults>
</compile_context>

<pallas_src>
import jax
import jax.numpy as jnp
from jax.experimental import pallas as pl
from jax.experimental.pallas import tpu as pltpu  # noqa: F401  (TPU backend parity)

# ---------------- small synthetic BERT config ----------------
BATCH = 2
SEQ = 8
HIDDEN = 32
NUM_HEADS = 4
HEAD_DIM = HIDDEN // NUM_HEADS
INTERMEDIATE = 64
NUM_LAYERS = 2
VOCAB = 100
MAX_POS = 16
TYPE_VOCAB = 2
SCALAR_DIM = 5
NUM_CLASSES = 3
FC1_DIM = 128
LN_EPS = 1e-12

# ---- packed small-vector table layout (one vector per 128-wide row) ----
VEC_WIDTH = 128
ROW_EMB_LN_G = 0
ROW_EMB_LN_B = 1
ROW_LAYER0 = 2
ROWS_PER_LAYER = 8          # bqkv, bo, ln1_g, ln1_b, b1, b2, ln2_g, ln2_b
ROW_FC1_B = ROW_LAYER0 + NUM_LAYERS * ROWS_PER_LAYER
ROW_FC2_B = ROW_FC1_B + 1
N_VEC_ROWS = ROW_FC2_B + 1


# ---------------- fused Pallas kernel ----------------
def _layernorm(x, g, b):
    mu = jnp.mean(x, axis=-1, keepdims=True)
    var = jnp.mean((x - mu) ** 2, axis=-1, keepdims=True)
    return (x - mu) * jax.lax.rsqrt(var + LN_EPS) * g + b


def _fused_bert_kernel(
    emb_ref, mask_ref, scal_ref, vecs_ref,
    wqkv_ref, wo_ref, w1_ref, w2_ref, fc1w_ref, fc2w_ref,
    out_ref,
):
    scale = 1.0 / (HEAD_DIM ** 0.5)
    mask = mask_ref[...]            # [BS, BS] additive (padding + cross-batch blocking)
    vecs = vecs_ref[...]            # [N_VEC_ROWS, 128] packed biases / LN params (f32)

    def vec(row, width):
        return vecs[row:row + 1, :width]            # [1, width]

    def wdot(a, w):                                  # bf16 MXU issue, f32 accumulate
        return jnp.dot(a.astype(jnp.bfloat16), w, preferred_element_type=jnp.float32)

    # Embedding LayerNorm (embedding sum done in the wrapper gather glue).
    x = _layernorm(emb_ref[...], vec(ROW_EMB_LN_G, HIDDEN), vec(ROW_EMB_LN_B, HIDDEN))

    for l in range(NUM_LAYERS):       # static unroll: weights indexed by python int
        base = ROW_LAYER0 + l * ROWS_PER_LAYER

        # ---- self-attention: fused QKV projection ----
        qkv = wdot(x, wqkv_ref[l]) + vec(base + 0, 3 * HIDDEN)      # [BS, 3H] f32

        # Phase 1: all heads' QK^T (independent MXU pushes).
        scores = []
        for hd in range(NUM_HEADS):
            q_h = qkv[:, hd * HEAD_DIM:(hd + 1) * HEAD_DIM]
            k_h = qkv[:, HIDDEN + hd * HEAD_DIM:HIDDEN + (hd + 1) * HEAD_DIM]
            s = jax.lax.dot_general(
                q_h, k_h, (((1,), (1,)), ((), ())),
                preferred_element_type=jnp.float32) * scale + mask
            scores.append(s)

        # Phase 2: all softmaxes (EUP/XLU work overlaps other heads' MXU).
        probs = []
        for s in scores:
            s = s - jnp.max(s, axis=-1, keepdims=True)
            p = jnp.exp(s)
            probs.append(p / jnp.sum(p, axis=-1, keepdims=True))    # exact divide

        # Phase 3: all P·V.
        ctxs = []
        for hd in range(NUM_HEADS):
            v_h = qkv[:, 2 * HIDDEN + hd * HEAD_DIM:2 * HIDDEN + (hd + 1) * HEAD_DIM]
            ctxs.append(jnp.dot(probs[hd], v_h, preferred_element_type=jnp.float32))

        # Head merge on the lane axis, then ONE output-projection matmul.
        ctx = jnp.concatenate(ctxs, axis=-1)                        # [BS, H]
        attn_out = wdot(ctx, wo_ref[l]) + vec(base + 1, HIDDEN)
        x = _layernorm(attn_out + x, vec(base + 2, HIDDEN), vec(base + 3, HIDDEN))

        # ---- feed-forward ----
        h1 = wdot(x, w1_ref[l]) + vec(base + 4, INTERMEDIATE)
        # TODO(synk): HF BERT uses exact erf-GELU; tanh-approx GELU used for portable Mosaic lowering.
        h1 = jax.nn.gelu(h1, approximate=True)
        ffn_out = wdot(h1, w2_ref[l]) + vec(base + 5, HIDDEN)
        x = _layernorm(ffn_out + x, vec(base + 6, HIDDEN), vec(base + 7, HIDDEN))

    # ---- classification head ----
    # CLS rows via static sublane slices (rows b*SEQ) — no selection matmul.
    cls = jnp.concatenate([x[b * SEQ:b * SEQ + 1, :] for b in range(BATCH)], axis=0)  # [B, H]
    # [CLS | scalar] concat folded into fc1 by splitting its (bf16) weight rows in-kernel.
    hfc = (wdot(cls, fc1w_ref[0:HIDDEN, :])
           + wdot(scal_ref[...], fc1w_ref[HIDDEN:HIDDEN + SCALAR_DIM, :])
           + vec(ROW_FC1_B, FC1_DIM))
    hfc = jnp.maximum(hfc, 0.0)          # dropout is a no-op in eval/forward
    out_ref[...] = wdot(hfc, fc2w_ref[...]) + vec(ROW_FC2_B, NUM_CLASSES)


# ---------------- deterministic parameter init (stacked layout) ----------------
def init_params(seed=0):
    key = jax.random.PRNGKey(seed)
    keys = iter(jax.random.split(key, 256))

    def nrm(shape):
        return jax.random.normal(next(keys), shape, jnp.float32) * 0.02

    layer_lists = {k: [] for k in
                   ["wqkv", "bqkv", "wo", "bo", "ln1_g", "ln1_b",
                    "w1", "b1", "w2", "b2", "ln2_g", "ln2_b"]}
    for _ in range(NUM_LAYERS):
        wq, wk, wv = nrm((HIDDEN, HIDDEN)), nrm((HIDDEN, HIDDEN)), nrm((HIDDEN, HIDDEN))
        layer_lists["wqkv"].append(jnp.concatenate([wq, wk, wv], axis=1))   # [H, 3H]
        layer_lists["bqkv"].append(jnp.zeros((1, 3 * HIDDEN), jnp.float32))
        layer_lists["wo"].append(nrm((HIDDEN, HIDDEN)))
        layer_lists["bo"].append(jnp.zeros((1, HIDDEN), jnp.float32))
        layer_lists["ln1_g"].append(jnp.ones((1, HIDDEN), jnp.float32))
        layer_lists["ln1_b"].append(jnp.zeros((1, HIDDEN), jnp.float32))
        layer_lists["w1"].append(nrm((HIDDEN, INTERMEDIATE)))
        layer_lists["b1"].append(jnp.zeros((1, INTERMEDIATE), jnp.float32))
        layer_lists["w2"].append(nrm((INTERMEDIATE, HIDDEN)))
        layer_lists["b2"].append(jnp.zeros((1, HIDDEN), jnp.float32))
        layer_lists["ln2_g"].append(jnp.ones((1, HIDDEN), jnp.float32))
        layer_lists["ln2_b"].append(jnp.zeros((1, HIDDEN), jnp.float32))

    params = {
        "word_emb": nrm((VOCAB, HIDDEN)),
        "pos_emb": nrm((MAX_POS, HIDDEN)),
        "type_emb": nrm((TYPE_VOCAB, HIDDEN)),
        "emb_ln_g": jnp.ones((1, HIDDEN), jnp.float32),
        "emb_ln_b": jnp.zeros((1, HIDDEN), jnp.float32),
        "fc1_w": nrm((HIDDEN + SCALAR_DIM, FC1_DIM)),
        "fc1_b": jnp.zeros((1, FC1_DIM), jnp.float32),
        "fc2_w": nrm((FC1_DIM, NUM_CLASSES)),
        "fc2_b": jnp.zeros((1, NUM_CLASSES), jnp.float32),
    }
    for k, v in layer_lists.items():
        params[k] = jnp.stack(v, axis=0)  # leading layer axis, indexed statically in-kernel
    return params


# ---------------- one-time prep: pack vectors, cast weights, hoist constants ----------------
def _pad_row(v, width=VEC_WIDTH):
    v = jnp.asarray(v, jnp.float32).reshape(-1)
    return jnp.pad(v, (0, width - v.shape[0]))


def prepare_params(params):
    """Everything per-call-constant: computed once, outside the jitted hot path."""
    rows = [params["emb_ln_g"], params["emb_ln_b"]]
    for l in range(NUM_LAYERS):
        rows += [params["bqkv"][l], params["bo"][l],
                 params["ln1_g"][l], params["ln1_b"][l],
                 params["b1"][l], params["b2"][l],
                 params["ln2_g"][l], params["ln2_b"][l]]
    rows += [params["fc1_b"], params["fc2_b"]]
    vecs = jnp.stack([_pad_row(r) for r in rows], axis=0)          # [N_VEC_ROWS, 128]
    assert vecs.shape == (N_VEC_ROWS, VEC_WIDTH)

    # pos + token_type(0) embedding sum (constant per call).
    pos_type = (params["pos_emb"][:SEQ] + params["type_emb"][0][None, :]).astype(jnp.float32)

    # Cross-batch blocking base mask over the flattened [BS] key axis.
    batch_id = jnp.repeat(jnp.arange(BATCH), SEQ)                  # [BS]
    same_batch = batch_id[:, None] == batch_id[None, :]
    cross_mask = jnp.where(same_batch, 0.0, -1e9).astype(jnp.float32)   # [BS, BS]

    return {
        "word_emb": params["word_emb"].astype(jnp.float32),
        "pos_type": pos_type,
        "cross_mask": cross_mask,
        "vecs": vecs,
        "wqkv": params["wqkv"].astype(jnp.bfloat16),
        "wo": params["wo"].astype(jnp.bfloat16),
        "w1": params["w1"].astype(jnp.bfloat16),
        "w2": params["w2"].astype(jnp.bfloat16),
        "fc1_w": params["fc1_w"].astype(jnp.bfloat16),
        "fc2_w": params["fc2_w"].astype(jnp.bfloat16),
    }


# ---------------- forward pass ----------------
@jax.jit
def bert_with_scalar_features(prep, input_ids, attention_mask, scalar_features):
    B, S = input_ids.shape
    BS = B * S

    # Embedding gather (data-dependent, plain-JAX glue) + precomputed pos/type sum.
    word = prep["word_emb"][input_ids]                             # [B,S,H]
    emb = (word + prep["pos_type"][None, :, :]).reshape(BS, HIDDEN).astype(jnp.float32)

    # Additive attention mask over the flattened key axis:
    # padding -> -1e4 (HF-style), cross-batch -> -1e9 (precomputed base).
    key_add = ((1.0 - attention_mask.astype(jnp.float32)) * -10000.0).reshape(1, BS)
    mask_full = prep["cross_mask"] + key_add                       # [BS, BS]

    return pl.pallas_call(
        _fused_bert_kernel,
        out_shape=jax.ShapeDtypeStruct((B, NUM_CLASSES), jnp.float32),
    )(
        emb, mask_full, scalar_features.astype(jnp.float32), prep["vecs"],
        prep["wqkv"], prep["wo"], prep["w1"], prep["w2"],
        prep["fc1_w"], prep["fc2_w"],
    )


if __name__ == "__main__":
    key = jax.random.PRNGKey(0)
    k_ids, k_mask, k_scalar = jax.random.split(key, 3)

    input_ids = jax.random.randint(k_ids, (BATCH, SEQ), 0, VOCAB, dtype=jnp.int32)
    # first 6 tokens valid, last 2 padded (deterministic mask)
    attention_mask = jnp.concatenate(
        [jnp.ones((BATCH, 6), jnp.int32), jnp.zeros((BATCH, SEQ - 6), jnp.int32)], axis=1
    )
    scalar_features = jax.random.normal(k_scalar, (BATCH, SCALAR_DIM), jnp.float32)

    params = init_params(seed=0)
    prep = prepare_params(params)          # one-time constant hoisting / packing / bf16 cast

    logits = bert_with_scalar_features(prep, input_ids, attention_mask, scalar_features)
    logits = jax.block_until_ready(logits)
    assert logits.shape == (BATCH, NUM_CLASSES)
    print("KERNEL_OK")
</pallas_src>

<mosaic_0001>
module attributes {stable_mosaic.version = 11 : i64} {
  func.func @_fused_bert_kernel(%arg0: memref<16x32xf32, #tpu.memory_space<vmem>>, %arg1: memref<16x16xf32, #tpu.memory_space<vmem>>, %arg2: memref<2x5xf32, #tpu.memory_space<vmem>>, %arg3: memref<20x128xf32, #tpu.memory_space<vmem>>, %arg4: memref<2x32x96xbf16, #tpu.memory_space<vmem>>, %arg5: memref<2x32x32xbf16, #tpu.memory_space<vmem>>, %arg6: memref<2x32x64xbf16, #tpu.memory_space<vmem>>, %arg7: memref<2x64x32xbf16, #tpu.memory_space<vmem>>, %arg8: memref<37x128xbf16, #tpu.memory_space<vmem>>, %arg9: memref<128x3xbf16, #tpu.memory_space<vmem>>, %arg10: memref<2x3xf32, #tpu.memory_space<vmem>>) attributes {dimension_semantics = [], scalar_prefetch = 0 : i64, scratch_operands = 0 : i64, tpu.core_type = #tpu.core_type<tc>} {
    %c0 = arith.constant 0 : index
    %c0_0 = arith.constant 0 : index
    %0 = vector.load %arg1[%c0, %c0_0] : memref<16x16xf32, #tpu.memory_space<vmem>>, vector<16x16xf32>
    %c0_1 = arith.constant 0 : index
    %c0_2 = arith.constant 0 : index
    %1 = vector.load %arg3[%c0_1, %c0_2] : memref<20x128xf32, #tpu.memory_space<vmem>>, vector<20x128xf32>
    %c0_3 = arith.constant 0 : index
    %c0_4 = arith.constant 0 : index
    %2 = vector.load %arg0[%c0_3, %c0_4] : memref<16x32xf32, #tpu.memory_space<vmem>>, vector<16x32xf32>
    %3 = vector.extract_strided_slice %1 {offsets = [0, 0], sizes = [1, 32], strides = [1, 1]} : vector<20x128xf32> to vector<1x32xf32>
    %4 = vector.extract_strided_slice %1 {offsets = [1, 0], sizes = [1, 32], strides = [1, 1]} : vector<20x128xf32> to vector<1x32xf32>
    %cst = arith.constant dense<0.000000e+00> : vector<16xf32>
    %5 = vector.multi_reduction <add>, %2, %cst [1] : vector<16x32xf32> to vector<16xf32>
    %6 = vector.shape_cast %5 : vector<16xf32> to vector<16x1xf32>
    %cst_5 = arith.constant 3.200000e+01 : f32
    %7 = vector.broadcast %cst_5 : f32 to vector<16x1xf32>
    %8 = arith.divf %6, %7 : vector<16x1xf32>
    %9 = vector.broadcast %8 : vector<16x1xf32> to vector<16x32xf32>
    %10 = arith.subf %2, %9 : vector<16x32xf32>
    %11 = arith.mulf %10, %10 : vector<16x32xf32>
    %cst_6 = arith.constant dense<0.000000e+00> : vector<16xf32>
    %12 = vector.multi_reduction <add>, %11, %cst_6 [1] : vector<16x32xf32> to vector<16xf32>
    %13 = vector.shape_cast %12 : vector<16xf32> to vector<16x1xf32>
    %cst_7 = arith.constant 3.200000e+01 : f32
    %14 = vector.broadcast %cst_7 : f32 to vector<16x1xf32>
    %15 = arith.divf %13, %14 : vector<16x1xf32>
    %16 = vector.broadcast %8 : vector<16x1xf32> to vector<16x32xf32>
    %17 = arith.subf %2, %16 : vector<16x32xf32>
    %cst_8 = arith.constant 9.99999996E-13 : f32
    %18 = vector.broadcast %cst_8 : f32 to vector<16x1xf32>
    %19 = arith.addf %15, %18 : vector<16x1xf32>
    %20 = math.rsqrt %19 : vector<16x1xf32>
    %21 = vector.broadcast %20 : vector<16x1xf32> to vector<16x32xf32>
    %22 = arith.mulf %17, %21 : vector<16x32xf32>
    %23 = vector.broadcast %3 : vector<1x32xf32> to vector<16x32xf32>
    %24 = arith.mulf %22, %23 : vector<16x32xf32>
    %25 = vector.broadcast %4 : vector<1x32xf32> to vector<16x32xf32>
    %26 = arith.addf %24, %25 : vector<16x32xf32>
    %c0_9 = arith.constant 0 : index
    %c0_10 = arith.constant 0 : index
    %c0_11 = arith.constant 0 : index
    %27 = vector.load %arg4[%c0_9, %c0_10, %c0_11] : memref<2x32x96xbf16, #tpu.memory_space<vmem>>, vector<1x32x96xbf16>
    %28 = vector.shape_cast %27 : vector<1x32x96xbf16> to vector<32x96xbf16>
    %29 = arith.truncf %26 : vector<16x32xf32> to vector<16x32xbf16>
    %cst_12 = arith.constant dense<0.000000e+00> : vector<16x96xf32>
    %30 = tpu.matmul %29, %28, %cst_12 {dimension_numbers = #tpu.dot_dimension_numbers<[1], [0], [0], [1], [0, 0, 1, 1], [], []>} : vector<16x32xbf16>, vector<32x96xbf16>, vector<16x96xf32> -> vector<16x96xf32>
    %31 = vector.extract_strided_slice %1 {offsets = [2, 0], sizes = [1, 96], strides = [1, 1]} : vector<20x128xf32> to vector<1x96xf32>
    %32 = vector.broadcast %31 : vector<1x96xf32> to vector<16x96xf32>
    %33 = arith.addf %30, %32 : vector<16x96xf32>
    %34 = vector.extract_strided_slice %33 {offsets = [0, 0], sizes = [16, 8], strides = [1, 1]} : vector<16x96xf32> to vector<16x8xf32>
    %35 = vector.extract_strided_slice %33 {offsets = [0, 32], sizes = [16, 8], strides = [1, 1]} : vector<16x96xf32> to vector<16x8xf32>
    %cst_13 = arith.constant dense<0.000000e+00> : vector<16x16xf32>
    %36 = tpu.matmul %34, %35, %cst_13 {dimension_numbers = #tpu.dot_dimension_numbers<[1], [1], [0], [0], [0, 0, 1, 0], [], []>} : vector<16x8xf32>, vector<16x8xf32>, vector<16x16xf32> -> vector<16x16xf32>
    %cst_14 = arith.constant 0.353553385 : f32
    %37 = vector.broadcast %cst_14 : f32 to vector<16x16xf32>
    %38 = arith.mulf %36, %37 : vector<16x16xf32>
    %39 = arith.addf %38, %0 : vector<16x16xf32>
    %40 = vector.extract_strided_slice %33 {offsets = [0, 8], sizes = [16, 8], strides = [1, 1]} : vector<16x96xf32> to vector<16x8xf32>
    %41 = vector.extract_strided_slice %33 {offsets = [0, 40], sizes = [16, 8], strides = [1, 1]} : vector<16x96xf32> to vector<16x8xf32>
    %cst_15 = arith.constant dense<0.000000e+00> : vector<16x16xf32>
    %42 = tpu.matmul %40, %41, %cst_15 {dimension_numbers = #tpu.dot_dimension_numbers<[1], [1], [0], [0], [0, 0, 1, 0], [], []>} : vector<16x8xf32>, vector<16x8xf32>, vector<16x16xf32> -> vector<16x16xf32>
    %cst_16 = arith.constant 0.353553385 : f32
    %43 = vector.broadcast %cst_16 : f32 to vector<16x16xf32>
    %44 = arith.mulf %42, %43 : vector<16x16xf32>
    %45 = arith.addf %44, %0 : vector<16x16xf32>
    %46 = vector.extract_strided_slice %33 {offsets = [0, 16], sizes = [16, 8], strides = [1, 1]} : vector<16x96xf32> to vector<16x8xf32>
    %47 = vector.extract_strided_slice %33 {offsets = [0, 48], sizes = [16, 8], strides = [1, 1]} : vector<16x96xf32> to vector<16x8xf32>
    %cst_17 = arith.constant dense<0.000000e+00> : vector<16x16xf32>
    %48 = tpu.matmul %46, %47, %cst_17 {dimension_numbers = #tpu.dot_dimension_numbers<[1], [1], [0], [0], [0, 0, 1, 0], [], []>} : vector<16x8xf32>, vector<16x8xf32>, vector<16x16xf32> -> vector<16x16xf32>
    %cst_18 = arith.constant 0.353553385 : f32
    %49 = vector.broadcast %cst_18 : f32 to vector<16x16xf32>
    %50 = arith.mulf %48, %49 : vector<16x16xf32>
    %51 = arith.addf %50, %0 : vector<16x16xf32>
    %52 = vector.extract_strided_slice %33 {offsets = [0, 24], sizes = [16, 8], strides = [1, 1]} : vector<16x96xf32> to vector<16x8xf32>
    %53 = vector.extract_strided_slice %33 {offsets = [0, 56], sizes = [16, 8], strides = [1, 1]} : vector<16x96xf32> to vector<16x8xf32>
    %cst_19 = arith.constant dense<0.000000e+00> : vector<16x16xf32>
    %54 = tpu.matmul %52, %53, %cst_19 {dimension_numbers = #tpu.dot_dimension_numbers<[1], [1], [0], [0], [0, 0, 1, 0], [], []>} : vector<16x8xf32>, vector<16x8xf32>, vector<16x16xf32> -> vector<16x16xf32>
    %cst_20 = arith.constant 0.353553385 : f32
    %55 = vector.broadcast %cst_20 : f32 to vector<16x16xf32>
    %56 = arith.mulf %54, %55 : vector<16x16xf32>
    %57 = arith.addf %56, %0 : vector<16x16xf32>
    %cst_21 = arith.constant dense<0xFF800000> : vector<16xf32>
    %58 = vector.multi_reduction <maximumf>, %39, %cst_21 [1] : vector<16x16xf32> to vector<16xf32>
    %59 = vector.shape_cast %58 : vector<16xf32> to vector<16x1xf32>
    %60 = vector.broadcast %59 : vector<16x1xf32> to vector<16x16xf32>
    %61 = arith.subf %39, %60 : vector<16x16xf32>
    %62 = math.exp %61 : vector<16x16xf32>
    %cst_22 = arith.constant dense<0.000000e+00> : vector<16xf32>
    %63 = vector.multi_reduction <add>, %62, %cst_22 [1] : vector<16x16xf32> to vector<16xf32>
    %64 = vector.shape_cast %63 : vector<16xf32> to vector<16x1xf32>
    %65 = vector.broadcast %64 : vector<16x1xf32> to vector<16x16xf32>
    %66 = arith.divf %62, %65 : vector<16x16xf32>
    %cst_23 = arith.constant dense<0xFF800000> : vector<16xf32>
    %67 = vector.multi_reduction <maximumf>, %45, %cst_23 [1] : vector<16x16xf32> to vector<16xf32>
    %68 = vector.shape_cast %67 : vector<16xf32> to vector<16x1xf32>
    %69 = vector.broadcast %68 : vector<16x1xf32> to vector<16x16xf32>
    %70 = arith.subf %45, %69 : vector<16x16xf32>
    %71 = math.exp %70 : vector<16x16xf32>
    %cst_24 = arith.constant dense<0.000000e+00> : vector<16xf32>
    %72 = vector.multi_reduction <add>, %71, %cst_24 [1] : vector<16x16xf32> to vector<16xf32>
    %73 = vector.shape_cast %72 : vector<16xf32> to vector<16x1xf32>
    %74 = vector.broadcast %73 : vector<16x1xf32> to vector<16x16xf32>
    %75 = arith.divf %71, %74 : vector<16x16xf32>
    %cst_25 = arith.constant dense<0xFF800000> : vector<16xf32>
    %76 = vector.multi_reduction <maximumf>, %51, %cst_25 [1] : vector<16x16xf32> to vector<16xf32>
    %77 = vector.shape_cast %76 : vector<16xf32> to vector<16x1xf32>
    %78 = vector.broadcast %77 : vector<16x1xf32> to vector<16x16xf32>
    %79 = arith.subf %51, %78 : vector<16x16xf32>
    %80 = math.exp %79 : vector<16x16xf32>
    %cst_26 = arith.constant dense<0.000000e+00> : vector<16xf32>
    %81 = vector.multi_reduction <add>, %80, %cst_26 [1] : vector<16x16xf32> to vector<16xf32>
    %82 = vector.shape_cast %81 : vector<16xf32> to vector<16x1xf32>
    %83 = vector.broadcast %82 : vector<16x1xf32> to vector<16x16xf32>
    %84 = arith.divf %80, %83 : vector<16x16xf32>
    %cst_27 = arith.constant dense<0xFF800000> : vector<16xf32>
    %85 = vector.multi_reduction <maximumf>, %57, %cst_27 [1] : vector<16x16xf32> to vector<16xf32>
    %86 = vector.shape_cast %85 : vector<16xf32> to vector<16x1xf32>
    %87 = vector.broadcast %86 : vector<16x1xf32> to vector<16x16xf32>
    %88 = arith.subf %57, %87 : vector<16x16xf32>
    %89 = math.exp %88 : vector<16x16xf32>
    %cst_28 = arith.constant dense<0.000000e+00> : vector<16xf32>
    %90 = vector.multi_reduction <add>, %89, %cst_28 [1] : vector<16x16xf32> to vector<16xf32>
    %91 = vector.shape_cast %90 : vector<16xf32> to vector<16x1xf32>
    %92 = vector.broadcast %91 : vector<16x1xf32> to vector<16x16xf32>
    %93 = arith.divf %89, %92 : vector<16x16xf32>
    %94 = vector.extract_strided_slice %33 {offsets = [0, 64], sizes = [16, 8], strides = [1, 1]} : vector<16x96xf32> to vector<16x8xf32>
    %cst_29 = arith.constant dense<0.000000e+00> : vector<16x8xf32>
    %95 = tpu.matmul %66, %94, %cst_29 {dimension_numbers = #tpu.dot_dimension_numbers<[1], [0], [0], [1], [0, 0, 1, 1], [], []>} : vector<16x16xf32>, vector<16x8xf32>, vector<16x8xf32> -> vector<16x8xf32>
    %96 = vector.extract_strided_slice %33 {offsets = [0, 72], sizes = [16, 8], strides = [1, 1]} : vector<16x96xf32> to vector<16x8xf32>
    %cst_30 = arith.constant dense<0.000000e+00> : vector<16x8xf32>
    %97 = tpu.matmul %75, %96, %cst_30 {dimension_numbers = #tpu.dot_dimension_numbers<[1], [0], [0], [1], [0, 0, 1, 1], [], []>} : vector<16x16xf32>, vector<16x8xf32>, vector<16x8xf32> -> vector<16x8xf32>
    %98 = vector.extract_strided_slice %33 {offsets = [0, 80], sizes = [16, 8], strides = [1, 1]} : vector<16x96xf32> to vector<16x8xf32>
    %cst_31 = arith.constant dense<0.000000e+00> : vector<16x8xf32>
    %99 = tpu.matmul %84, %98, %cst_31 {dimension_numbers = #tpu.dot_dimension_numbers<[1], [0], [0], [1], [0, 0, 1, 1], [], []>} : vector<16x16xf32>, vector<16x8xf32>, vector<16x8xf32> -> vector<16x8xf32>
    %100 = vector.extract_strided_slice %33 {offsets = [0, 88], sizes = [16, 8], strides = [1, 1]} : vector<16x96xf32> to vector<16x8xf32>
    %cst_32 = arith.constant dense<0.000000e+00> : vector<16x8xf32>
    %101 = tpu.matmul %93, %100, %cst_32 {dimension_numbers = #tpu.dot_dimension_numbers<[1], [0], [0], [1], [0, 0, 1, 1], [], []>} : vector<16x16xf32>, vector<16x8xf32>, vector<16x8xf32> -> vector<16x8xf32>
    %102 = tpu.concatenate %95, %97, %99, %101 in 1 : vector<16x8xf32>, vector<16x8xf32>, vector<16x8xf32>, vector<16x8xf32> -> vector<16x32xf32>
    %c0_33 = arith.constant 0 : index
    %c0_34 = arith.constant 0 : index
    %c0_35 = arith.constant 0 : index
    %103 = vector.load %arg5[%c0_33, %c0_34, %c0_35] : memref<2x32x32xbf16, #tpu.memory_space<vmem>>, vector<1x32x32xbf16>
    %104 = vector.shape_cast %103 : vector<1x32x32xbf16> to vector<32x32xbf16>
    %105 = arith.truncf %102 : vector<16x32xf32> to vector<16x32xbf16>
    %cst_36 = arith.constant dense<0.000000e+00> : vector<16x32xf32>
    %106 = tpu.matmul %105, %104, %cst_36 {dimension_numbers = #tpu.dot_dimension_numbers<[1], [0], [0], [1], [0, 0, 1, 1], [], []>} : vector<16x32xbf16>, vector<32x32xbf16>, vector<16x32xf32> -> vector<16x32xf32>
    %107 = vector.extract_strided_slice %1 {offsets = [3, 0], sizes = [1, 32], strides = [1, 1]} : vector<20x128xf32> to vector<1x32xf32>
    %108 = vector.broadcast %107 : vector<1x32xf32> to vector<16x32xf32>
    %109 = arith.addf %106, %108 : vector<16x32xf32>
    %110 = arith.addf %109, %26 : vector<16x32xf32>
    %111 = vector.extract_strided_slice %1 {offsets = [4, 0], sizes = [1, 32], strides = [1, 1]} : vector<20x128xf32> to vector<1x32xf32>
    %112 = vector.extract_strided_slice %1 {offsets = [5, 0], sizes = [1, 32], strides = [1, 1]} : vector<20x128xf32> to vector<1x32xf32>
    %cst_37 = arith.constant dense<0.000000e+00> : vector<16xf32>
    %113 = vector.multi_reduction <add>, %110, %cst_37 [1] : vector<16x32xf32> to vector<16xf32>
    %114 = vector.shape_cast %113 : vector<16xf32> to vector<16x1xf32>
    %cst_38 = arith.constant 3.200000e+01 : f32
    %115 = vector.broadcast %cst_38 : f32 to vector<16x1xf32>
    %116 = arith.divf %114, %115 : vector<16x1xf32>
    %117 = vector.broadcast %116 : vector<16x1xf32> to vector<16x32xf32>
    %118 = arith.subf %110, %117 : vector<16x32xf32>
    %119 = arith.mulf %118, %118 : vector<16x32xf32>
    %cst_39 = arith.constant dense<0.000000e+00> : vector<16xf32>
    %120 = vector.multi_reduction <add>, %119, %cst_39 [1] : vector<16x32xf32> to vector<16xf32>
    %121 = vector.shape_cast %120 : vector<16xf32> to vector<16x1xf32>
    %cst_40 = arith.constant 3.200000e+01 : f32
    %122 = vector.broadcast %cst_40 : f32 to vector<16x1xf32>
    %123 = arith.divf %121, %122 : vector<16x1xf32>
    %124 = vector.broadcast %116 : vector<16x1xf32> to vector<16x32xf32>
    %125 = arith.subf %110, %124 : vector<16x32xf32>
    %cst_41 = arith.constant 9.99999996E-13 : f32
    %126 = vector.broadcast %cst_41 : f32 to vector<16x1xf32>
    %127 = arith.addf %123, %126 : vector<16x1xf32>
    %128 = math.rsqrt %127 : vector<16x1xf32>
    %129 = vector.broadcast %128 : vector<16x1xf32> to vector<16x32xf32>
    %130 = arith.mulf %125, %129 : vector<16x32xf32>
    %131 = vector.broadcast %111 : vector<1x32xf32> to vector<16x32xf32>
    %132 = arith.mulf %130, %131 : vector<16x32xf32>
    %133 = vector.broadcast %112 : vector<1x32xf32> to vector<16x32xf32>
    %134 = arith.addf %132, %133 : vector<16x32xf32>
    %c0_42 = arith.constant 0 : index
    %c0_43 = arith.constant 0 : index
    %c0_44 = arith.constant 0 : index
    %135 = vector.load %arg6[%c0_42, %c0_43, %c0_44] : memref<2x32x64xbf16, #tpu.memory_space<vmem>>, vector<1x32x64xbf16>
    %136 = vector.shape_cast %135 : vector<1x32x64xbf16> to vector<32x64xbf16>
    %137 = arith.truncf %134 : vector<16x32xf32> to vector<16x32xbf16>
    %cst_45 = arith.constant dense<0.000000e+00> : vector<16x64xf32>
    %138 = tpu.matmul %137, %136, %cst_45 {dimension_numbers = #tpu.dot_dimension_numbers<[1], [0], [0], [1], [0, 0, 1, 1], [], []>} : vector<16x32xbf16>, vector<32x64xbf16>, vector<16x64xf32> -> vector<16x64xf32>
    %139 = vector.extract_strided_slice %1 {offsets = [6, 0], sizes = [1, 64], strides = [1, 1]} : vector<20x128xf32> to vector<1x64xf32>
    %140 = vector.broadcast %139 : vector<1x64xf32> to vector<16x64xf32>
    %141 = arith.addf %138, %140 : vector<16x64xf32>
    %142 = arith.mulf %141, %141 : vector<16x64xf32>
    %143 = arith.mulf %141, %142 : vector<16x64xf32>
    %cst_46 = arith.constant 4.471500e-02 : f32
    %144 = vector.broadcast %cst_46 : f32 to vector<16x64xf32>
    %145 = arith.mulf %144, %143 : vector<16x64xf32>
    %146 = arith.addf %141, %145 : vector<16x64xf32>
    %cst_47 = arith.constant 0.797884583 : f32
    %147 = vector.broadcast %cst_47 : f32 to vector<16x64xf32>
    %148 = arith.mulf %147, %146 : vector<16x64xf32>
    %149 = math.tanh %148 : vector<16x64xf32>
    %cst_48 = arith.constant 1.000000e+00 : f32
    %150 = vector.broadcast %cst_48 : f32 to vector<16x64xf32>
    %151 = arith.addf %150, %149 : vector<16x64xf32>
    %cst_49 = arith.constant 5.000000e-01 : f32
    %152 = vector.broadcast %cst_49 : f32 to vector<16x64xf32>
    %153 = arith.mulf %152, %151 : vector<16x64xf32>
    %154 = arith.mulf %141, %153 : vector<16x64xf32>
    %c0_50 = arith.constant 0 : index
    %c0_51 = arith.constant 0 : index
    %c0_52 = arith.constant 0 : index
    %155 = vector.load %arg7[%c0_50, %c0_51, %c0_52] : memref<2x64x32xbf16, #tpu.memory_space<vmem>>, vector<1x64x32xbf16>
    %156 = vector.shape_cast %155 : vector<1x64x32xbf16> to vector<64x32xbf16>
    %157 = arith.truncf %154 : vector<16x64xf32> to vector<16x64xbf16>
    %cst_53 = arith.constant dense<0.000000e+00> : vector<16x32xf32>
    %158 = tpu.matmul %157, %156, %cst_53 {dimension_numbers = #tpu.dot_dimension_numbers<[1], [0], [0], [1], [0, 0, 1, 1], [], []>} : vector<16x64xbf16>, vector<64x32xbf16>, vector<16x32xf32> -> vector<16x32xf32>
    %159 = vector.extract_strided_slice %1 {offsets = [7, 0], sizes = [1, 32], strides = [1, 1]} : vector<20x128xf32> to vector<1x32xf32>
    %160 = vector.broadcast %159 : vector<1x32xf32> to vector<16x32xf32>
    %161 = arith.addf %158, %160 : vector<16x32xf32>
    %162 = arith.addf %161, %134 : vector<16x32xf32>
    %163 = vector.extract_strided_slice %1 {offsets = [8, 0], sizes = [1, 32], strides = [1, 1]} : vector<20x128xf32> to vector<1x32xf32>
    %164 = vector.extract_strided_slice %1 {offsets = [9, 0], sizes = [1, 32], strides = [1, 1]} : vector<20x128xf32> to vector<1x32xf32>
    %cst_54 = arith.constant dense<0.000000e+00> : vector<16xf32>
    %165 = vector.multi_reduction <add>, %162, %cst_54 [1] : vector<16x32xf32> to vector<16xf32>
    %166 = vector.shape_cast %165 : vector<16xf32> to vector<16x1xf32>
    %cst_55 = arith.constant 3.200000e+01 : f32
    %167 = vector.broadcast %cst_55 : f32 to vector<16x1xf32>
    %168 = arith.divf %166, %167 : vector<16x1xf32>
    %169 = vector.broadcast %168 : vector<16x1xf32> to vector<16x32xf32>
    %170 = arith.subf %162, %169 : vector<16x32xf32>
    %171 = arith.mulf %170, %170 : vector<16x32xf32>
    %cst_56 = arith.constant dense<0.000000e+00> : vector<16xf32>
    %172 = vector.multi_reduction <add>, %171, %cst_56 [1] : vector<16x32xf32> to vector<16xf32>
    %173 = vector.shape_cast %172 : vector<16xf32> to vector<16x1xf32>
    %cst_57 = arith.constant 3.200000e+01 : f32
    %174 = vector.broadcast %cst_57 : f32 to vector<16x1xf32>
    %175 = arith.divf %173, %174 : vector<16x1xf32>
    %176 = vector.broadcast %168 : vector<16x1xf32> to vector<16x32xf32>
    %177 = arith.subf %162, %176 : vector<16x32xf32>
    %cst_58 = arith.constant 9.99999996E-13 : f32
    %178 = vector.broadcast %cst_58 : f32 to vector<16x1xf32>
    %179 = arith.addf %175, %178 : vector<16x1xf32>
    %180 = math.rsqrt %179 : vector<16x1xf32>
    %181 = vector.broadcast %180 : vector<16x1xf32> to vector<16x32xf32>
    %182 = arith.mulf %177, %181 : vector<16x32xf32>
    %183 = vector.broadcast %163 : vector<1x32xf32> to vector<16x32xf32>
    %184 = arith.mulf %182, %183 : vector<16x32xf32>
    %185 = vector.broadcast %164 : vector<1x32xf32> to vector<16x32xf32>
    %186 = arith.addf %184, %185 : vector<16x32xf32>
    %c1 = arith.constant 1 : index
    %c0_59 = arith.constant 0 : index
    %c0_60 = arith.constant 0 : index
    %187 = vector.load %arg4[%c1, %c0_59, %c0_60] : memref<2x32x96xbf16, #tpu.memory_space<vmem>>, vector<1x32x96xbf16>
    %188 = vector.shape_cast %187 : vector<1x32x96xbf16> to vector<32x96xbf16>
    %189 = arith.truncf %186 : vector<16x32xf32> to vector<16x32xbf16>
    %cst_61 = arith.constant dense<0.000000e+00> : vector<16x96xf32>
    %190 = tpu.matmul %189, %188, %cst_61 {dimension_numbers = #tpu.dot_dimension_numbers<[1], [0], [0], [1], [0, 0, 1, 1], [], []>} : vector<16x32xbf16>, vector<32x96xbf16>, vector<16x96xf32> -> vector<16x96xf32>
    %191 = vector.extract_strided_slice %1 {offsets = [10, 0], sizes = [1, 96], strides = [1, 1]} : vector<20x128xf32> to vector<1x96xf32>
    %192 = vector.broadcast %191 : vector<1x96xf32> to vector<16x96xf32>
    %193 = arith.addf %190, %192 : vector<16x96xf32>
    %194 = vector.extract_strided_slice %193 {offsets = [0, 0], sizes = [16, 8], strides = [1, 1]} : vector<16x96xf32> to vector<16x8xf32>
    %195 = vector.extract_strided_slice %193 {offsets = [0, 32], sizes = [16, 8], strides = [1, 1]} : vector<16x96xf32> to vector<16x8xf32>
    %cst_62 = arith.constant dense<0.000000e+00> : vector<16x16xf32>
    %196 = tpu.matmul %194, %195, %cst_62 {dimension_numbers = #tpu.dot_dimension_numbers<[1], [1], [0], [0], [0, 0, 1, 0], [], []>} : vector<16x8xf32>, vector<16x8xf32>, vector<16x16xf32> -> vector<16x16xf32>
    %cst_63 = arith.constant 0.353553385 : f32
    %197 = vector.broadcast %cst_63 : f32 to vector<16x16xf32>
    %198 = arith.mulf %196, %197 : vector<16x16xf32>
    %199 = arith.addf %198, %0 : vector<16x16xf32>
    %200 = vector.extract_strided_slice %193 {offsets = [0, 8], sizes = [16, 8], strides = [1, 1]} : vector<16x96xf32> to vector<16x8xf32>
    %201 = vector.extract_strided_slice %193 {offsets = [0, 40], sizes = [16, 8], strides = [1, 1]} : vector<16x96xf32> to vector<16x8xf32>
    %cst_64 = arith.constant dense<0.000000e+00> : vector<16x16xf32>
    %202 = tpu.matmul %200, %201, %cst_64 {dimension_numbers = #tpu.dot_dimension_numbers<[1], [1], [0], [0], [0, 0, 1, 0], [], []>} : vector<16x8xf32>, vector<16x8xf32>, vector<16x16xf32> -> vector<16x16xf32>
    %cst_65 = arith.constant 0.353553385 : f32
    %203 = vector.broadcast %cst_65 : f32 to vector<16x16xf32>
    %204 = arith.mulf %202, %203 : vector<16x16xf32>
    %205 = arith.addf %204, %0 : vector<16x16xf32>
    %206 = vector.extract_strided_slice %193 {offsets = [0, 16], sizes = [16, 8], strides = [1, 1]} : vector<16x96xf32> to vector<16x8xf32>
    %207 = vector.extract_strided_slice %193 {offsets = [0, 48], sizes = [16, 8], strides = [1, 1]} : vector<16x96xf32> to vector<16x8xf32>
    %cst_66 = arith.constant dense<0.000000e+00> : vector<16x16xf32>
    %208 = tpu.matmul %206, %207, %cst_66 {dimension_numbers = #tpu.dot_dimension_numbers<[1], [1], [0], [0], [0, 0, 1, 0], [], []>} : vector<16x8xf32>, vector<16x8xf32>, vector<16x16xf32> -> vector<16x16xf32>
    %cst_67 = arith.constant 0.353553385 : f32
    %209 = vector.broadcast %cst_67 : f32 to vector<16x16xf32>
    %210 = arith.mulf %208, %209 : vector<16x16xf32>
    %211 = arith.addf %210, %0 : vector<16x16xf32>
    %212 = vector.extract_strided_slice %193 {offsets = [0, 24], sizes = [16, 8], strides = [1, 1]} : vector<16x96xf32> to vector<16x8xf32>
    %213 = vector.extract_strided_slice %193 {offsets = [0, 56], sizes = [16, 8], strides = [1, 1]} : vector<16x96xf32> to vector<16x8xf32>
    %cst_68 = arith.constant dense<0.000000e+00> : vector<16x16xf32>
    %214 = tpu.matmul %212, %213, %cst_68 {dimension_numbers = #tpu.dot_dimension_numbers<[1], [1], [0], [0], [0, 0, 1, 0], [], []>} : vector<16x8xf32>, vector<16x8xf32>, vector<16x16xf32> -> vector<16x16xf32>
    %cst_69 = arith.constant 0.353553385 : f32
    %215 = vector.broadcast %cst_69 : f32 to vector<16x16xf32>
    %216 = arith.mulf %214, %215 : vector<16x16xf32>
    %217 = arith.addf %216, %0 : vector<16x16xf32>
    %cst_70 = arith.constant dense<0xFF800000> : vector<16xf32>
    %218 = vector.multi_reduction <maximumf>, %199, %cst_70 [1] : vector<16x16xf32> to vector<16xf32>
    %219 = vector.shape_cast %218 : vector<16xf32> to vector<16x1xf32>
    %220 = vector.broadcast %219 : vector<16x1xf32> to vector<16x16xf32>
    %221 = arith.subf %199, %220 : vector<16x16xf32>
    %222 = math.exp %221 : vector<16x16xf32>
    %cst_71 = arith.constant dense<0.000000e+00> : vector<16xf32>
    %223 = vector.multi_reduction <add>, %222, %cst_71 [1] : vector<16x16xf32> to vector<16xf32>
    %224 = vector.shape_cast %223 : vector<16xf32> to vector<16x1xf32>
    %225 = vector.broadcast %224 : vector<16x1xf32> to vector<16x16xf32>
    %226 = arith.divf %222, %225 : vector<16x16xf32>
    %cst_72 = arith.constant dense<0xFF800000> : vector<16xf32>
    %227 = vector.multi_reduction <maximumf>, %205, %cst_72 [1] : vector<16x16xf32> to vector<16xf32>
    %228 = vector.shape_cast %227 : vector<16xf32> to vector<16x1xf32>
    %229 = vector.broadcast %228 : vector<16x1xf32> to vector<16x16xf32>
    %230 = arith.subf %205, %229 : vector<16x16xf32>
    %231 = math.exp %230 : vector<16x16xf32>
    %cst_73 = arith.constant dense<0.000000e+00> : vector<16xf32>
    %232 = vector.multi_reduction <add>, %231, %cst_73 [1] : vector<16x16xf32> to vector<16xf32>
    %233 = vector.shape_cast %232 : vector<16xf32> to vector<16x1xf32>
    %234 = vector.broadcast %233 : vector<16x1xf32> to vector<16x16xf32>
    %235 = arith.divf %231, %234 : vector<16x16xf32>
    %cst_74 = arith.constant dense<0xFF800000> : vector<16xf32>
    %236 = vector.multi_reduction <maximumf>, %211, %cst_74 [1] : vector<16x16xf32> to vector<16xf32>
    %237 = vector.shape_cast %236 : vector<16xf32> to vector<16x1xf32>
    %238 = vector.broadcast %237 : vector<16x1xf32> to vector<16x16xf32>
    %239 = arith.subf %211, %238 : vector<16x16xf32>
    %240 = math.exp %239 : vector<16x16xf32>
    %cst_75 = arith.constant dense<0.000000e+00> : vector<16xf32>
    %241 = vector.multi_reduction <add>, %240, %cst_75 [1] : vector<16x16xf32> to vector<16xf32>
    %242 = vector.shape_cast %241 : vector<16xf32> to vector<16x1xf32>
    %243 = vector.broadcast %242 : vector<16x1xf32> to vector<16x16xf32>
    %244 = arith.divf %240, %243 : vector<16x16xf32>
    %cst_76 = arith.constant dense<0xFF800000> : vector<16xf32>
    %245 = vector.multi_reduction <maximumf>, %217, %cst_76 [1] : vector<16x16xf32> to vector<16xf32>
    %246 = vector.shape_cast %245 : vector<16xf32> to vector<16x1xf32>
    %247 = vector.broadcast %246 : vector<16x1xf32> to vector<16x16xf32>
    %248 = arith.subf %217, %247 : vector<16x16xf32>
    %249 = math.exp %248 : vector<16x16xf32>
    %cst_77 = arith.constant dense<0.000000e+00> : vector<16xf32>
    %250 = vector.multi_reduction <add>, %249, %cst_77 [1] : vector<16x16xf32> to vector<16xf32>
    %251 = vector.shape_cast %250 : vector<16xf32> to vector<16x1xf32>
    %252 = vector.broadcast %251 : vector<16x1xf32> to vector<16x16xf32>
    %253 = arith.divf %249, %252 : vector<16x16xf32>
    %254 = vector.extract_strided_slice %193 {offsets = [0, 64], sizes = [16, 8], strides = [1, 1]} : vector<16x96xf32> to vector<16x8xf32>
    %cst_78 = arith.constant dense<0.000000e+00> : vector<16x8xf32>
    %255 = tpu.matmul %226, %254, %cst_78 {dimension_numbers = #tpu.dot_dimension_numbers<[1], [0], [0], [1], [0, 0, 1, 1], [], []>} : vector<16x16xf32>, vector<16x8xf32>, vector<16x8xf32> -> vector<16x8xf32>
    %256 = vector.extract_strided_slice %193 {offsets = [0, 72], sizes = [16, 8], strides = [1, 1]} : vector<16x96xf32> to vector<16x8xf32>
    %cst_79 = arith.constant dense<0.000000e+00> : vector<16x8xf32>
    %257 = tpu.matmul %235, %256, %cst_79 {dimension_numbers = #tpu.dot_dimension_numbers<[1], [0], [0], [1], [0, 0, 1, 1], [], []>} : vector<16x16xf32>, vector<16x8xf32>, vector<16x8xf32> -> vector<16x8xf32>
    %258 = vector.extract_strided_slice %193 {offsets = [0, 80], sizes = [16, 8], strides = [1, 1]} : vector<16x96xf32> to vector<16x8xf32>
    %cst_80 = arith.constant dense<0.000000e+00> : vector<16x8xf32>
    %259 = tpu.matmul %244, %258, %cst_80 {dimension_numbers = #tpu.dot_dimension_numbers<[1], [0], [0], [1], [0, 0, 1, 1], [], []>} : vector<16x16xf32>, vector<16x8xf32>, vector<16x8xf32> -> vector<16x8xf32>
    %260 = vector.extract_strided_slice %193 {offsets = [0, 88], sizes = [16, 8], strides = [1, 1]} : vector<16x96xf32> to vector<16x8xf32>
    %cst_81 = arith.constant dense<0.000000e+00> : vector<16x8xf32>
    %261 = tpu.matmul %253, %260, %cst_81 {dimension_numbers = #tpu.dot_dimension_numbers<[1], [0], [0], [1], [0, 0, 1, 1], [], []>} : vector<16x16xf32>, vector<16x8xf32>, vector<16x8xf32> -> vector<16x8xf32>
    %262 = tpu.concatenate %255, %257, %259, %261 in 1 : vector<16x8xf32>, vector<16x8xf32>, vector<16x8xf32>, vector<16x8xf32> -> vector<16x32xf32>
    %c1_82 = arith.constant 1 : index
    %c0_83 = arith.constant 0 : index
    %c0_84 = arith.constant 0 : index
    %263 = vector.load %arg5[%c1_82, %c0_83, %c0_84] : memref<2x32x32xbf16, #tpu.memory_space<vmem>>, vector<1x32x32xbf16>
    %264 = vector.shape_cast %263 : vector<1x32x32xbf16> to vector<32x32xbf16>
    %265 = arith.truncf %262 : vector<16x32xf32> to vector<16x32xbf16>
    %cst_85 = arith.constant dense<0.000000e+00> : vector<16x32xf32>
    %266 = tpu.matmul %265, %264, %cst_85 {dimension_numbers = #tpu.dot_dimension_numbers<[1], [0], [0], [1], [0, 0, 1, 1], [], []>} : vector<16x32xbf16>, vector<32x32xbf16>, vector<16x32xf32> -> vector<16x32xf32>
    %267 = vector.extract_strided_slice %1 {offsets = [11, 0], sizes = [1, 32], strides = [1, 1]} : vector<20x128xf32> to vector<1x32xf32>
    %268 = vector.broadcast %267 : vector<1x32xf32> to vector<16x32xf32>
    %269 = arith.addf %266, %268 : vector<16x32xf32>
    %270 = arith.addf %269, %186 : vector<16x32xf32>
    %271 = vector.extract_strided_slice %1 {offsets = [12, 0], sizes = [1, 32], strides = [1, 1]} : vector<20x128xf32> to vector<1x32xf32>
    %272 = vector.extract_strided_slice %1 {offsets = [13, 0], sizes = [1, 32], strides = [1, 1]} : vector<20x128xf32> to vector<1x32xf32>
    %cst_86 = arith.constant dense<0.000000e+00> : vector<16xf32>
    %273 = vector.multi_reduction <add>, %270, %cst_86 [1] : vector<16x32xf32> to vector<16xf32>
    %274 = vector.shape_cast %273 : vector<16xf32> to vector<16x1xf32>
    %cst_87 = arith.constant 3.200000e+01 : f32
    %275 = vector.broadcast %cst_87 : f32 to vector<16x1xf32>
    %276 = arith.divf %274, %275 : vector<16x1xf32>
    %277 = vector.broadcast %276 : vector<16x1xf32> to vector<16x32xf32>
    %278 = arith.subf %270, %277 : vector<16x32xf32>
    %279 = arith.mulf %278, %278 : vector<16x32xf32>
    %cst_88 = arith.constant dense<0.000000e+00> : vector<16xf32>
    %280 = vector.multi_reduction <add>, %279, %cst_88 [1] : vector<16x32xf32> to vector<16xf32>
    %281 = vector.shape_cast %280 : vector<16xf32> to vector<16x1xf32>
    %cst_89 = arith.constant 3.200000e+01 : f32
    %282 = vector.broadcast %cst_89 : f32 to vector<16x1xf32>
    %283 = arith.divf %281, %282 : vector<16x1xf32>
    %284 = vector.broadcast %276 : vector<16x1xf32> to vector<16x32xf32>
    %285 = arith.subf %270, %284 : vector<16x32xf32>
    %cst_90 = arith.constant 9.99999996E-13 : f32
    %286 = vector.broadcast %cst_90 : f32 to vector<16x1xf32>
    %287 = arith.addf %283, %286 : vector<16x1xf32>
    %288 = math.rsqrt %287 : vector<16x1xf32>
    %289 = vector.broadcast %288 : vector<16x1xf32> to vector<16x32xf32>
    %290 = arith.mulf %285, %289 : vector<16x32xf32>
    %291 = vector.broadcast %271 : vector<1x32xf32> to vector<16x32xf32>
    %292 = arith.mulf %290, %291 : vector<16x32xf32>
    %293 = vector.broadcast %272 : vector<1x32xf32> to vector<16x32xf32>
    %294 = arith.addf %292, %293 : vector<16x32xf32>
    %c1_91 = arith.constant 1 : index
    %c0_92 = arith.constant 0 : index
    %c0_93 = arith.constant 0 : index
    %295 = vector.load %arg6[%c1_91, %c0_92, %c0_93] : memref<2x32x64xbf16, #tpu.memory_space<vmem>>, vector<1x32x64xbf16>
    %296 = vector.shape_cast %295 : vector<1x32x64xbf16> to vector<32x64xbf16>
    %297 = arith.truncf %294 : vector<16x32xf32> to vector<16x32xbf16>
    %cst_94 = arith.constant dense<0.000000e+00> : vector<16x64xf32>
    %298 = tpu.matmul %297, %296, %cst_94 {dimension_numbers = #tpu.dot_dimension_numbers<[1], [0], [0], [1], [0, 0, 1, 1], [], []>} : vector<16x32xbf16>, vector<32x64xbf16>, vector<16x64xf32> -> vector<16x64xf32>
    %299 = vector.extract_strided_slice %1 {offsets = [14, 0], sizes = [1, 64], strides = [1, 1]} : vector<20x128xf32> to vector<1x64xf32>
    %300 = vector.broadcast %299 : vector<1x64xf32> to vector<16x64xf32>
    %301 = arith.addf %298, %300 : vector<16x64xf32>
    %302 = arith.mulf %301, %301 : vector<16x64xf32>
    %303 = arith.mulf %301, %302 : vector<16x64xf32>
    %cst_95 = arith.constant 4.471500e-02 : f32
    %304 = vector.broadcast %cst_95 : f32 to vector<16x64xf32>
    %305 = arith.mulf %304, %303 : vector<16x64xf32>
    %306 = arith.addf %301, %305 : vector<16x64xf32>
    %cst_96 = arith.constant 0.797884583 : f32
    %307 = vector.broadcast %cst_96 : f32 to vector<16x64xf32>
    %308 = arith.mulf %307, %306 : vector<16x64xf32>
    %309 = math.tanh %308 : vector<16x64xf32>
    %cst_97 = arith.constant 1.000000e+00 : f32
    %310 = vector.broadcast %cst_97 : f32 to vector<16x64xf32>
    %311 = arith.addf %310, %309 : vector<16x64xf32>
    %cst_98 = arith.constant 5.000000e-01 : f32
    %312 = vector.broadcast %cst_98 : f32 to vector<16x64xf32>
    %313 = arith.mulf %312, %311 : vector<16x64xf32>
    %314 = arith.mulf %301, %313 : vector<16x64xf32>
    %c1_99 = arith.constant 1 : index
    %c0_100 = arith.constant 0 : index
    %c0_101 = arith.constant 0 : index
    %315 = vector.load %arg7[%c1_99, %c0_100, %c0_101] : memref<2x64x32xbf16, #tpu.memory_space<vmem>>, vector<1x64x32xbf16>
    %316 = vector.shape_cast %315 : vector<1x64x32xbf16> to vector<64x32xbf16>
    %317 = arith.truncf %314 : vector<16x64xf32> to vector<16x64xbf16>
    %cst_102 = arith.constant dense<0.000000e+00> : vector<16x32xf32>
    %318 = tpu.matmul %317, %316, %cst_102 {dimension_numbers = #tpu.dot_dimension_numbers<[1], [0], [0], [1], [0, 0, 1, 1], [], []>} : vector<16x64xbf16>, vector<64x32xbf16>, vector<16x32xf32> -> vector<16x32xf32>
    %319 = vector.extract_strided_slice %1 {offsets = [15, 0], sizes = [1, 32], strides = [1, 1]} : vector<20x128xf32> to vector<1x32xf32>
    %320 = vector.broadcast %319 : vector<1x32xf32> to vector<16x32xf32>
    %321 = arith.addf %318, %320 : vector<16x32xf32>
    %322 = arith.addf %321, %294 : vector<16x32xf32>
    %323 = vector.extract_strided_slice %1 {offsets = [16, 0], sizes = [1, 32], strides = [1, 1]} : vector<20x128xf32> to vector<1x32xf32>
    %324 = vector.extract_strided_slice %1 {offsets = [17, 0], sizes = [1, 32], strides = [1, 1]} : vector<20x128xf32> to vector<1x32xf32>
    %cst_103 = arith.constant dense<0.000000e+00> : vector<16xf32>
    %325 = vector.multi_reduction <add>, %322, %cst_103 [1] : vector<16x32xf32> to vector<16xf32>
    %326 = vector.shape_cast %325 : vector<16xf32> to vector<16x1xf32>
    %cst_104 = arith.constant 3.200000e+01 : f32
    %327 = vector.broadcast %cst_104 : f32 to vector<16x1xf32>
    %328 = arith.divf %326, %327 : vector<16x1xf32>
    %329 = vector.broadcast %328 : vector<16x1xf32> to vector<16x32xf32>
    %330 = arith.subf %322, %329 : vector<16x32xf32>
    %331 = arith.mulf %330, %330 : vector<16x32xf32>
    %cst_105 = arith.constant dense<0.000000e+00> : vector<16xf32>
    %332 = vector.multi_reduction <add>, %331, %cst_105 [1] : vector<16x32xf32> to vector<16xf32>
    %333 = vector.shape_cast %332 : vector<16xf32> to vector<16x1xf32>
    %cst_106 = arith.constant 3.200000e+01 : f32
    %334 = vector.broadcast %cst_106 : f32 to vector<16x1xf32>
    %335 = arith.divf %333, %334 : vector<16x1xf32>
    %336 = vector.broadcast %328 : vector<16x1xf32> to vector<16x32xf32>
    %337 = arith.subf %322, %336 : vector<16x32xf32>
    %cst_107 = arith.constant 9.99999996E-13 : f32
    %338 = vector.broadcast %cst_107 : f32 to vector<16x1xf32>
    %339 = arith.addf %335, %338 : vector<16x1xf32>
    %340 = math.rsqrt %339 : vector<16x1xf32>
    %341 = vector.broadcast %340 : vector<16x1xf32> to vector<16x32xf32>
    %342 = arith.mulf %337, %341 : vector<16x32xf32>
    %343 = vector.broadcast %323 : vector<1x32xf32> to vector<16x32xf32>
    %344 = arith.mulf %342, %343 : vector<16x32xf32>
    %345 = vector.broadcast %324 : vector<1x32xf32> to vector<16x32xf32>
    %346 = arith.addf %344, %345 : vector<16x32xf32>
    %347 = vector.extract_strided_slice %346 {offsets = [0, 0], sizes = [1, 32], strides = [1, 1]} : vector<16x32xf32> to vector<1x32xf32>
    %348 = vector.extract_strided_slice %346 {offsets = [8, 0], sizes = [1, 32], strides = [1, 1]} : vector<16x32xf32> to vector<1x32xf32>
    %349 = tpu.concatenate %347, %348 in 0 : vector<1x32xf32>, vector<1x32xf32> -> vector<2x32xf32>
    %c0_108 = arith.constant 0 : index
    %c0_109 = arith.constant 0 : index
    %350 = vector.load %arg8[%c0_108, %c0_109] : memref<37x128xbf16, #tpu.memory_space<vmem>>, vector<32x128xbf16>
    %351 = arith.truncf %349 : vector<2x32xf32> to vector<2x32xbf16>
    %cst_110 = arith.constant dense<0.000000e+00> : vector<2x128xf32>
    %352 = tpu.matmul %351, %350, %cst_110 {dimension_numbers = #tpu.dot_dimension_numbers<[1], [0], [0], [1], [0, 0, 1, 1], [], []>} : vector<2x32xbf16>, vector<32x128xbf16>, vector<2x128xf32> -> vector<2x128xf32>
    %c0_111 = arith.constant 0 : index
    %c0_112 = arith.constant 0 : index
    %353 = vector.load %arg2[%c0_111, %c0_112] : memref<2x5xf32, #tpu.memory_space<vmem>>, vector<2x5xf32>
    %c32 = arith.constant 32 : index
    %c0_113 = arith.constant 0 : index
    %354 = vector.load %arg8[%c32, %c0_113] : memref<37x128xbf16, #tpu.memory_space<vmem>>, vector<5x128xbf16>
    %355 = arith.truncf %353 : vector<2x5xf32> to vector<2x5xbf16>
    %cst_114 = arith.constant dense<0.000000e+00> : vector<2x128xf32>
    %356 = tpu.matmul %355, %354, %cst_114 {dimension_numbers = #tpu.dot_dimension_numbers<[1], [0], [0], [1], [0, 0, 1, 1], [], []>} : vector<2x5xbf16>, vector<5x128xbf16>, vector<2x128xf32> -> vector<2x128xf32>
    %357 = arith.addf %352, %356 : vector<2x128xf32>
    %358 = vector.extract_strided_slice %1 {offsets = [18, 0], sizes = [1, 128], strides = [1, 1]} : vector<20x128xf32> to vector<1x128xf32>
    %359 = vector.broadcast %358 : vector<1x128xf32> to vector<2x128xf32>
    %360 = arith.addf %357, %359 : vector<2x128xf32>
    %cst_115 = arith.constant 0.000000e+00 : f32
    %361 = vector.broadcast %cst_115 : f32 to vector<2x128xf32>
    %362 = arith.maximumf %360, %361 : vector<2x128xf32>
    %c0_116 = arith.constant 0 : index
    %c0_117 = arith.constant 0 : index
    %363 = vector.load %arg9[%c0_116, %c0_117] : memref<128x3xbf16, #tpu.memory_space<vmem>>, vector<128x3xbf16>
    %364 = arith.truncf %362 : vector<2x128xf32> to vector<2x128xbf16>
    %cst_118 = arith.constant dense<0.000000e+00> : vector<2x3xf32>
    %365 = tpu.matmul %364, %363, %cst_118 {dimension_numbers = #tpu.dot_dimension_numbers<[1], [0], [0], [1], [0, 0, 1, 1], [], []>} : vector<2x128xbf16>, vector<128x3xbf16>, vector<2x3xf32> -> vector<2x3xf32>
    %366 = vector.extract_strided_slice %1 {offsets = [19, 0], sizes = [1, 3], strides = [1, 1]} : vector<20x128xf32> to vector<1x3xf32>
    %367 = vector.broadcast %366 : vector<1x3xf32> to vector<2x3xf32>
    %368 = arith.addf %365, %367 : vector<2x3xf32>
    %c0_119 = arith.constant 0 : index
    %c0_120 = arith.constant 0 : index
    %369 = vector.load %arg10[%c0_119, %c0_120] : memref<2x3xf32, #tpu.memory_space<vmem>>, vector<2x3xf32>
    tpu.vector_store %arg10[%c0_119, %c0_120], %368 {strides = array<i32>} : memref<2x3xf32, #tpu.memory_space<vmem>>, vector<2x3xf32>,
    return
  }
}

</mosaic_0001>

<llo_original>
// kernel: bert_with_scalar_features.1
$region0: #{bert_with_scalar_features.1}
  #allocation0 [shape = 'u32[]', space=smem, size = 0x4, offset = 0x4, fixed_abs, tag = 'smem constant byte address 0x4 - core index']
  #allocation1 [shape = 'u32[144,128]{1,0:T(1,128)}', space=vmem, size = 0x12000, scoped, tag = 'internal scratch']
  %s0 = inlined_call_operand.vmem [shape: f32[16,32], index: 0, kind: input, shape index: {}]
  %s1 = inlined_call_operand.vmem [shape: f32[16,16], index: 1, kind: input, shape index: {}]
  %s2 = inlined_call_operand.vmem [shape: f32[2,5], index: 2, kind: input, shape index: {}]
  %s3 = inlined_call_operand.vmem [shape: f32[20,128], index: 3, kind: input, shape index: {}]
  %s4 = inlined_call_operand.vmem [shape: bf16[2,32,96], index: 4, kind: input, shape index: {}]
  %s5 = inlined_call_operand.vmem [shape: bf16[2,32,32], index: 5, kind: input, shape index: {}]
  %s6 = inlined_call_operand.vmem [shape: bf16[2,32,64], index: 6, kind: input, shape index: {}]
  %s7 = inlined_call_operand.vmem [shape: bf16[2,64,32], index: 7, kind: input, shape index: {}]
  %s8 = inlined_call_operand.vmem [shape: bf16[37,128], index: 8, kind: input, shape index: {}]
  %s9 = inlined_call_operand.vmem [shape: bf16[128,3], index: 9, kind: input, shape index: {}]
  %s10 = inlined_call_operand.hbm [shape: f32[2,3], index: 10, kind: output, shape index: {}]
  %s11 = sld [smem:[#allocation0]]
  $region50: #{bert_with_scalar_features.1} parent=0
    _
  %s13 = ssub.s32 1, %s11
  %s14 = scalar_select 0, %s13, %s11
  $region1: #{bert_with_scalar_features.1} parent=0
    #allocation2 [shape = 'u8[1024]{0}', space=vmem, size = 0x400, scoped, tag = 'output window, operand 0, single buffered']
    #allocation3 [shape = 's32[1]{0}', space=sflag, size = 0x4, scoped, tag = 'scoped memory for bert_with_scalar_features.1']
    %15 = vsyncpa [#allocation3], 0
    // Predicated region
    $region2: #{bert_with_scalar_features.1} parent=1 // pred_check
      _
    $region3: #{bert_with_scalar_features.1} parent=1 // pred_check_branch
      %17 = sbr.rel (0) target = $region5
    $region4: #{bert_with_scalar_features.1} parent=1 // pred_region
      _
    $region5: #{bert_with_scalar_features.1} parent=1 // pred_fallthru
      _
    // Predicated region
    $region6: #{bert_with_scalar_features.1} parent=1 // pred_check
      _
    $region7: #{bert_with_scalar_features.1} parent=1 // pred_check_branch
      %19 = sbr.rel (0) target = $region9
    $region8: #{bert_with_scalar_features.1} parent=1 // pred_region
      _
    $region9: #{bert_with_scalar_features.1} parent=1 // pred_fallthru
      _
    // Predicated region
    $region10: #{bert_with_scalar_features.1} parent=1 // pred_check
      _
    $region11: #{bert_with_scalar_features.1} parent=1 // pred_check_branch
      %21 = sbr.rel (0) target = $region13
    $region12: #{bert_with_scalar_features.1} parent=1 // pred_region
      _
    $region13: #{bert_with_scalar_features.1} parent=1 // pred_fallthru
      _
    // Predicated region
    $region14: #{bert_with_scalar_features.1} parent=1 // pred_check
      _
    $region15: #{bert_with_scalar_features.1} parent=1 // pred_check_branch
      %23 = sbr.rel (0) target = $region17
    $region16: #{bert_with_scalar_features.1} parent=1 // pred_region
      _
    $region17: #{bert_with_scalar_features.1} parent=1 // pred_fallthru
      _
    // Predicated region
    $region18: #{bert_with_scalar_features.1} parent=1 // pred_check
      _
    $region19: #{bert_with_scalar_features.1} parent=1 // pred_check_branch
      %25 = sbr.rel (0) target = $region21
    $region20: #{bert_with_scalar_features.1} parent=1 // pred_region
      _
    $region21: #{bert_with_scalar_features.1} parent=1 // pred_fallthru
      _
    // Predicated region
    $region22: #{bert_with_scalar_features.1} parent=1 // pred_check
      _
    $region23: #{bert_with_scalar_features.1} parent=1 // pred_check_branch
      %27 = sbr.rel (0) target = $region25
    $region24: #{bert_with_scalar_features.1} parent=1 // pred_region
      _
    $region25: #{bert_with_scalar_features.1} parent=1 // pred_fallthru
      _
    // Predicated region
    $region26: #{bert_with_scalar_features.1} parent=1 // pred_check
      _
    $region27: #{bert_with_scalar_features.1} parent=1 // pred_check_branch
      %29 = sbr.rel (0) target = $region29
    $region28: #{bert_with_scalar_features.1} parent=1 // pred_region
      _
    $region29: #{bert_with_scalar_features.1} parent=1 // pred_fallthru
      _
    // Predicated region
    $region30: #{bert_with_scalar_features.1} parent=1 // pred_check
      _
    $region31: #{bert_with_scalar_features.1} parent=1 // pred_check_branch
      %31 = sbr.rel (0) target = $region33
    $region32: #{bert_with_scalar_features.1} parent=1 // pred_region
      _
    $region33: #{bert_with_scalar_features.1} parent=1 // pred_fallthru
      _
    // Predicated region
    $region34: #{bert_with_scalar_features.1} parent=1 // pred_check
      _
    $region35: #{bert_with_scalar_features.1} parent=1 // pred_check_branch
      %33 = sbr.rel (0) target = $region37
    $region36: #{bert_with_scalar_features.1} parent=1 // pred_region
      _
    $region37: #{bert_with_scalar_features.1} parent=1 // pred_fallthru
      _
    // Predicated region
    $region38: #{bert_with_scalar_features.1} parent=1 // pred_check
      _
    $region39: #{bert_with_scalar_features.1} parent=1 // pred_check_branch
      %35 = sbr.rel (0) target = $region41
    $region40: #{bert_with_scalar_features.1} parent=1 // pred_region
      _
    $region41: #{bert_with_scalar_features.1} parent=1 // pred_fallthru
      _
    %v37 = vld [vmem:[%s1] sm:$0xff]
    %v38 = vld [vmem:[%s1 + $0x8] sm:$0xff]
    %v39 = vld [vmem:[%s3] sm:$0xff]
    %v40 = vld [vmem:[%s3 + $0x8] sm:$0xff]
    %v41 = vld [vmem:[%s3 + $0x10] sm:$0xf]
    %v42 = vld [vmem:[%s0] sm:$0xff]
    %v43 = vld [vmem:[%s0 + $0x8] sm:$0xff]
    %vm44 = vcmask 261120
    %v45 = vsel %vm44, %v42, 0.0
    %46 = vadd.xlane.f32.xlu0 %v45
    %v47 = vpop.xlane.xlu0 %46
    %v48 = vsel %vm44, %v43, 0.0
    %49 = vadd.xlane.f32.xlu0 %v48
    %v50 = vpop.xlane.xlu0 %49
    %v51 = vrcp.pop 32.0
    %v52 = vmul.f32 %v47, %v51
    %v53 = vmul.f32 %v50, %v51
    %v54 = vsub.f32 %v42, %v52
    %v55 = vsub.f32 %v43, %v53
    %v56 = vmul.f32 %v54, %v54
    %v57 = vmul.f32 %v55, %v55
    %v58 = vsel %vm44, %v56, 0.0
    %59 = vadd.xlane.f32.xlu0 %v58
    %v60 = vpop.xlane.xlu0 %59
    %v61 = vsel %vm44, %v57, 0.0
    %62 = vadd.xlane.f32.xlu0 %v61
    %v63 = vpop.xlane.xlu0 %62
    %v64 = vmul.f32 %v60, %v51
    %v65 = vmul.f32 %v63, %v51
    %v66 = vadd.f32 %v64, 1e-12
    %v67 = vadd.f32 %v65, 1e-12
    %v68 = vrsqrt.pop %v66
    %v69 = vrsqrt.pop %v67
    %v70 = vmul.f32 %v54, %v68
    %v71 = vmul.f32 %v55, %v69
    %v72 = vlaneseq
    %v73 = vshrl.u32 %v72, 7
    %v74 = vsub.s32 0, %v73
    %v75 = vrot.slane %v39, %v74
    %v76 = vmul.f32 %v70, %v75
    %v77 = vmul.f32 %v71, %v75
    %v78 = vlaneseq
    %v79 = vshrl.u32 %v78, 7
    %v80 = vsub.s32 1, %v79
    %v81 = vrot.slane %v39, %v80
    %v82 = vadd.f32 %v76, %v81
    %v83 = vadd.f32 %v77, %v81
    %v84 = vld [vmem:[%s4] sm:$0xf]
    %v85 = vld [vmem:[%s4 + $0x4] sm:$0xf]
    %v86 = vld [vmem:[%s4 + $0x8] sm:$0xf]
    %v87 = vld [vmem:[%s4 + $0xc] sm:$0xf]
    %v88 = vpack.c.bf16 %v83, %v82
    %v89 = vlaneseq
    %v90 = vshrl.u32 %v89, 7
    %v91 = vsub.s32 2, %v90
    %v92 = vrot.slane %v39, %v91
    %v97 = vunpack.c.l.b16 %v84
    %v98 = vunpack.c.l.b16 %v85
    %v99 = vunpack.c.l.b16 %v86
    %v100 = vunpack.c.l.b16 %v87
    %v101 = vpack.c.b16 %v98, %v97
    %v102 = vpack.c.b16 %v100, %v99
    %v106 = vsel %vm44, %v88, 0
    %108 = vmatprep.subr.bf16.mxu0 0
    %109 = vmatpush1.bf16.msra.mxu0 %v101
    %110 = vmatprep.subr.bf16.mxu0 0
    %111 = vmatpush1.bf16.msra.mxu0 %v102
    %112 = vmatprep.subr.bf16.mxu0 0
    %113 = vmatpush1.bf16.msra.mxu0 0
    %114 = vmatprep.subr.bf16.mxu0 0
    %115 = vmatpush1.bf16.msra.mxu0 0
    %116 = vmatprep.subr.bf16.mxu0 0
    %117 = vmatpush1.bf16.msra.mxu0 0
    %118 = vmatprep.subr.bf16.mxu0 0
    %119 = vmatpush1.bf16.msra.mxu0 0
    %120 = vmatprep.subr.bf16.mxu0 0
    %121 = vmatpush1.bf16.msra.mxu0 0
    %122 = vmatprep.subr.bf16.mxu0 0
    %123 = vmatpush1.bf16.msra.mxu0 0
    %124 = vmatprep.subr.bf16.mxu0 0
    %125 = vmatpush1.bf16.msra.mxu0 0
    %126 = vmatprep.subr.bf16.mxu0 0
    %127 = vmatpush1.bf16.msra.mxu0 0
    %128 = vmatprep.subr.bf16.mxu0 0
    %129 = vmatpush1.bf16.msra.mxu0 0
    %130 = vmatprep.subr.bf16.mxu0 0
    %131 = vmatpush1.bf16.msra.mxu0 0
    %132 = vmatprep.subr.bf16.mxu0 0
    %133 = vmatpush1.bf16.msra.mxu0 0
    %134 = vmatprep.subr.bf16.mxu0 0
    %135 = vmatpush1.bf16.msra.mxu0 0
    %136 = vmatprep.subr.bf16.mxu0 0
    %137 = vmatpush1.bf16.msra.mxu0 0
    %138 = vmatprep.subr.bf16.mxu0 0
    %139 = vmatpush1.bf16.msra.mxu0 0
    %140 = vmatprep.mubr.bf16.mxu0 0
    %141 = vmatmul.mubr.bf16.gmra.mrb[0].mxu0 %v106
    %v142 = vpop.f32.mrb[0].mxu0
    %v143 = vadd.f32 %v92, %v142
    %v144 = vpop.f32.mrb[0].mxu0
    %v145 = vpop.f32.mrb[0].mxu0
    %v146 = vadd.f32 %v92, %v145
    %v147 = vpop.f32.mrb[0].mxu0
    %148 = vdwg.mxu0
    %151 = vrot.lane.b32.xlu0 %v143, 96
    %v152 = vpop.permute.xlu0 %151
    %153 = vrot.lane.b32.xlu0 %v146, 96
    %v154 = vpop.permute.xlu0 %153
    %vm155 = vcmask 64512
    %v156 = vsel %vm155, %v143, 0
    %v158 = vsel %vm155, %v146, 0
    %v160 = vsel %vm155, %v152, 0
    %v162 = vsel %vm155, %v154, 0
    %164 = vmatprep.subr.mxu0 0.0
    %165 = vmatpush1.xpose.msra.mxu0 %v160
    %166 = vmatprep.subr.mxu0 0.0
    %167 = vmatpush1.xpose.msra.mxu0 %v162
    %168 = vmatprep.subr.mxu0 0.0
    %169 = vmatpush1.xpose.msra.mxu0 0.0
    %170 = vmatprep.subr.mxu0 0.0
    %171 = vmatpush1.xpose.msra.mxu0 0.0
    %172 = vmatprep.subr.mxu0 0.0
    %173 = vmatpush1.xpose.msra.mxu0 0.0
    %174 = vmatprep.subr.mxu0 0.0
    %175 = vmatpush1.xpose.msra.mxu0 0.0
    %176 = vmatprep.subr.mxu0 0.0
    %177 = vmatpush1.xpose.msra.mxu0 0.0
    %178 = vmatprep.subr.mxu0 0.0
    %179 = vmatpush1.xpose.msra.mxu0 0.0
    %180 = vmatprep.subr.mxu0 0.0
    %181 = vmatpush1.xpose.msra.mxu0 0.0
    %182 = vmatprep.subr.mxu0 0.0
    %183 = vmatpush1.xpose.msra.mxu0 0.0
    %184 = vmatprep.subr.mxu0 0.0
    %185 = vmatpush1.xpose.msra.mxu0 0.0
    %186 = vmatprep.subr.mxu0 0.0
    %187 = vmatpush1.xpose.msra.mxu0 0.0
    %188 = vmatprep.subr.mxu0 0.0
    %189 = vmatpush1.xpose.msra.mxu0 0.0
    %190 = vmatprep.subr.mxu0 0.0
    %191 = vmatpush1.xpose.msra.mxu0 0.0
    %192 = vmatprep.subr.mxu0 0.0
    %193 = vmatpush1.xpose.msra.mxu0 0.0
    %194 = vmatprep.subr.mxu0 0.0
    %195 = vmatpush1.xpose.msra.mxu0 0.0
    %196 = vmatprep.subr.mxu0 0.0
    %197 = vmatpush1.xpose.msra.mxu0 0.0
    %198 = vmatprep.subr.mxu0 0.0
    %199 = vmatpush1.xpose.msra.mxu0 0.0
    %200 = vmatprep.subr.mxu0 0.0
    %201 = vmatpush1.xpose.msra.mxu0 0.0
    %202 = vmatprep.subr.mxu0 0.0
    %203 = vmatpush1.xpose.msra.mxu0 0.0
    %204 = vmatprep.subr.mxu0 0.0
    %205 = vmatpush1.xpose.msra.mxu0 0.0
    %206 = vmatprep.subr.mxu0 0.0
    %207 = vmatpush1.xpose.msra.mxu0 0.0
    %208 = vmatprep.subr.mxu0 0.0
    %209 = vmatpush1.xpose.msra.mxu0 0.0
    %210 = vmatprep.subr.mxu0 0.0
    %211 = vmatpush1.xpose.msra.mxu0 0.0
    %212 = vmatprep.subr.mxu0 0.0
    %213 = vmatpush1.xpose.msra.mxu0 0.0
    %214 = vmatprep.subr.mxu0 0.0
    %215 = vmatpush1.xpose.msra.mxu0 0.0
    %216 = vmatprep.subr.mxu0 0.0
    %217 = vmatpush1.xpose.msra.mxu0 0.0
    %218 = vmatprep.subr.mxu0 0.0
    %219 = vmatpush1.xpose.msra.mxu0 0.0
    %220 = vmatprep.subr.mxu0 0.0
    %221 = vmatpush1.xpose.msra.mxu0 0.0
    %222 = vmatprep.subr.mxu0 0.0
    %223 = vmatpush1.xpose.msra.mxu0 0.0
    %224 = vmatprep.subr.mxu0 0.0
    %225 = vmatpush1.xpose.msra.mxu0 0.0
    %226 = vmatprep.subr.mxu0 0.0
    %227 = vmatpush1.xpose.msra.mxu0 0.0
    %228 = vmatprep.mubr.f32.mxu0 0.0
    %229 = vmatmul.mubr.f32.gmra.mrb[0].mxu0 %v156
    %v230 = vpop.f32.mrb[0].mxu0
    %v231 = vadd.f32 0.0, %v230
    %v232 = vpop.f32.mrb[0].mxu0
    %233 = vmatprep.mubr.f32.mxu0 0.0
    %234 = vmatmul.mubr.f32.gmra.mrb[0].mxu0 %v158
    %v235 = vpop.f32.mrb[0].mxu0
    %v236 = vadd.f32 0.0, %v235
    %v237 = vpop.f32.mrb[0].mxu0
    %238 = vdwg.mxu0
    %v239 = vmul.f32 %v231, 0.35355338
    %v240 = vmul.f32 %v236, 0.35355338
    %v241 = vadd.f32 %v239, %v37
    %v242 = vadd.f32 %v240, %v38
    %243 = vrot.lane.b32.xlu0 %v143, 120
    %v244 = vpop.permute.xlu0 %243
    %245 = vrot.lane.b32.xlu0 %v146, 120
    %v246 = vpop.permute.xlu0 %245
    %247 = vrot.lane.b32.xlu0 %v143, 88
    %v248 = vpop.permute.xlu0 %247
    %249 = vrot.lane.b32.xlu0 %v146, 88
    %v250 = vpop.permute.xlu0 %249
    %v251 = vsel %vm155, %v244, 0
    %v253 = vsel %vm155, %v246, 0
    %v255 = vsel %vm155, %v248, 0
    %v257 = vsel %vm155, %v250, 0
    %259 = vmatprep.subr.mxu0 0.0
    %260 = vmatpush1.xpose.msra.mxu0 %v255
    %261 = vmatprep.subr.mxu0 0.0
    %262 = vmatpush1.xpose.msra.mxu0 %v257
    %263 = vmatprep.subr.mxu0 0.0
    %264 = vmatpush1.xpose.msra.mxu0 0.0
    %265 = vmatprep.subr.mxu0 0.0
    %266 = vmatpush1.xpose.msra.mxu0 0.0
    %267 = vmatprep.subr.mxu0 0.0
    %268 = vmatpush1.xpose.msra.mxu0 0.0
    %269 = vmatprep.subr.mxu0 0.0
    %270 = vmatpush1.xpose.msra.mxu0 0.0
    %271 = vmatprep.subr.mxu0 0.0
    %272 = vmatpush1.xpose.msra.mxu0 0.0
    %273 = vmatprep.subr.mxu0 0.0
    %274 = vmatpush1.xpose.msra.mxu0 0.0
    %275 = vmatprep.subr.mxu0 0.0
    %276 = vmatpush1.xpose.msra.mxu0 0.0
    %277 = vmatprep.subr.mxu0 0.0
    %278 = vmatpush1.xpose.msra.mxu0 0.0
    %279 = vmatprep.subr.mxu0 0.0
    %280 = vmatpush1.xpose.msra.mxu0 0.0
    %281 = vmatprep.subr.mxu0 0.0
    %282 = vmatpush1.xpose.msra.mxu0 0.0
    %283 = vmatprep.subr.mxu0 0.0
    %284 = vmatpush1.xpose.msra.mxu0 0.0
    %285 = vmatprep.subr.mxu0 0.0
    %286 = vmatpush1.xpose.msra.mxu0 0.0
    %287 = vmatprep.subr.mxu0 0.0
    %288 = vmatpush1.xpose.msra.mxu0 0.0
    %289 = vmatprep.subr.mxu0 0.0
    %290 = vmatpush1.xpose.msra.mxu0 0.0
    %291 = vmatprep.subr.mxu0 0.0
    %292 = vmatpush1.xpose.msra.mxu0 0.0
    %293 = vmatprep.subr.mxu0 0.0
    %294 = vmatpush1.xpose.msra.mxu0 0.0
    %295 = vmatprep.subr.mxu0 0.0
    %296 = vmatpush1.xpose.msra.mxu0 0.0
    %297 = vmatprep.subr.mxu0 0.0
    %298 = vmatpush1.xpose.msra.mxu0 0.0
    %299 = vmatprep.subr.mxu0 0.0
    %300 = vmatpush1.xpose.msra.mxu0 0.0
    %301 = vmatprep.subr.mxu0 0.0
    %302 = vmatpush1.xpose.msra.mxu0 0.0
    %303 = vmatprep.subr.mxu0 0.0
    %304 = vmatpush1.xpose.msra.mxu0 0.0
    %305 = vmatprep.subr.mxu0 0.0
    %306 = vmatpush1.xpose.msra.mxu0 0.0
    %307 = vmatprep.subr.mxu0 0.0
    %308 = vmatpush1.xpose.msra.mxu0 0.0
    %309 = vmatprep.subr.mxu0 0.0
    %310 = vmatpush1.xpose.msra.mxu0 0.0
    %311 = vmatprep.subr.mxu0 0.0
    %312 = vmatpush1.xpose.msra.mxu0 0.0
    %313 = vmatprep.subr.mxu0 0.0
    %314 = vmatpush1.xpose.msra.mxu0 0.0
    %315 = vmatprep.subr.mxu0 0.0
    %316 = vmatpush1.xpose.msra.mxu0 0.0
    %317 = vmatprep.subr.mxu0 0.0
    %318 = vmatpush1.xpose.msra.mxu0 0.0
    %319 = vmatprep.subr.mxu0 0.0
    %320 = vmatpush1.xpose.msra.mxu0 0.0
    %321 = vmatprep.subr.mxu0 0.0
    %322 = vmatpush1.xpose.msra.mxu0 0.0
    %323 = vmatprep.mubr.f32.mxu0 0.0
    %324 = vmatmul.mubr.f32.gmra.mrb[0].mxu0 %v251
    %v325 = vpop.f32.mrb[0].mxu0
    %v326 = vadd.f32 0.0, %v325
    %v327 = vpop.f32.mrb[0].mxu0
    %328 = vmatprep.mubr.f32.mxu0 0.0
    %329 = vmatmul.mubr.f32.gmra.mrb[0].mxu0 %v253
    %v330 = vpop.f32.mrb[0].mxu0
    %v331 = vadd.f32 0.0, %v330
    %v332 = vpop.f32.mrb[0].mxu0
    %333 = vdwg.mxu0
    %v334 = vmul.f32 %v326, 0.35355338
    %v335 = vmul.f32 %v331, 0.35355338
    %v336 = vadd.f32 %v334, %v37
    %v337 = vadd.f32 %v335, %v38
    %338 = vrot.lane.b32.xlu0 %v143, 112
    %v339 = vpop.permute.xlu0 %338
    %340 = vrot.lane.b32.xlu0 %v146, 112
    %v341 = vpop.permute.xlu0 %340
    %342 = vrot.lane.b32.xlu0 %v143, 80
    %v343 = vpop.permute.xlu0 %342
    %344 = vrot.lane.b32.xlu0 %v146, 80
    %v345 = vpop.permute.xlu0 %344
    %v346 = vsel %vm155, %v339, 0
    %v348 = vsel %vm155, %v341, 0
    %v350 = vsel %vm155, %v343, 0
    %v352 = vsel %vm155, %v345, 0
    %354 = vmatprep.subr.mxu0 0.0
    %355 = vmatpush1.xpose.msra.mxu0 %v350
    %356 = vmatprep.subr.mxu0 0.0
    %357 = vmatpush1.xpose.msra.mxu0 %v352
    %358 = vmatprep.subr.mxu0 0.0
    %359 = vmatpush1.xpose.msra.mxu0 0.0
    %360 = vmatprep.subr.mxu0 0.0
    %361 = vmatpush1.xpose.msra.mxu0 0.0
    %362 = vmatprep.subr.mxu0 0.0
    %363 = vmatpush1.xpose.msra.mxu0 0.0
    %364 = vmatprep.subr.mxu0 0.0
    %365 = vmatpush1.xpose.msra.mxu0 0.0
    %366 = vmatprep.subr.mxu0 0.0
    %367 = vmatpush1.xpose.msra.mxu0 0.0
    %368 = vmatprep.subr.mxu0 0.0
    %369 = vmatpush1.xpose.msra.mxu0 0.0
    %370 = vmatprep.subr.mxu0 0.0
    %371 = vmatpush1.xpose.msra.mxu0 0.0
    %372 = vmatprep.subr.mxu0 0.0
    %373 = vmatpush1.xpose.msra.mxu0 0.0
    %374 = vmatprep.subr.mxu0 0.0
    %375 = vmatpush1.xpose.msra.mxu0 0.0
    %376 = vmatprep.subr.mxu0 0.0
    %377 = vmatpush1.xpose.msra.mxu0 0.0
    %378 = vmatprep.subr.mxu0 0.0
    %379 = vmatpush1.xpose.msra.mxu0 0.0
    %380 = vmatprep.subr.mxu0 0.0
    %381 = vmatpush1.xpose.msra.mxu0 0.0
    %382 = vmatprep.subr.mxu0 0.0
    %383 = vmatpush1.xpose.msra.mxu0 0.0
    %384 = vmatprep.subr.mxu0 0.0
    %385 = vmatpush1.xpose.msra.mxu0 0.0
    %386 = vmatprep.subr.mxu0 0.0
    %387 = vmatpush1.xpose.msra.mxu0 0.0
    %388 = vmatprep.subr.mxu0 0.0
    %389 = vmatpush1.xpose.msra.mxu0 0.0
    %390 = vmatprep.subr.mxu0 0.0
    %391 = vmatpush1.xpose.msra.mxu0 0.0
    %392 = vmatprep.subr.mxu0 0.0
    %393 = vmatpush1.xpose.msra.mxu0 0.0
    %394 = vmatprep.subr.mxu0 0.0
    %395 = vmatpush1.xpose.msra.mxu0 0.0
    %396 = vmatprep.subr.mxu0 0.0
    %397 = vmatpush1.xpose.msra.mxu0 0.0
    %398 = vmatprep.subr.mxu0 0.0
    %399 = vmatpush1.xpose.msra.mxu0 0.0
    %400 = vmatprep.subr.mxu0 0.0
    %401 = vmatpush1.xpose.msra.mxu0 0.0
    %402 = vmatprep.subr.mxu0 0.0
    %403 = vmatpush1.xpose.msra.mxu0 0.0
    %404 = vmatprep.subr.mxu0 0.0
    %405 = vmatpush1.xpose.msra.mxu0 0.0
    %406 = vmatprep.subr.mxu0 0.0
    %407 = vmatpush1.xpose.msra.mxu0 0.0
    %408 = vmatprep.subr.mxu0 0.0
    %409 = vmatpush1.xpose.msra.mxu0 0.0
    %410 = vmatprep.subr.mxu0 0.0
    %411 = vmatpush1.xpose.msra.mxu0 0.0
    %412 = vmatprep.subr.mxu0 0.0
    %413 = vmatpush1.xpose.msra.mxu0 0.0
    %414 = vmatprep.subr.mxu0 0.0
    %415 = vmatpush1.xpose.msra.mxu0 0.0
    %416 = vmatprep.subr.mxu0 0.0
    %417 = vmatpush1.xpose.msra.mxu0 0.0
    %418 = vmatprep.mubr.f32.mxu0 0.0
    %419 = vmatmul.mubr.f32.gmra.mrb[0].mxu0 %v346
    %v420 = vpop.f32.mrb[0].mxu0
    %v421 = vadd.f32 0.0, %v420
    %v422 = vpop.f32.mrb[0].mxu0
    %423 = vmatprep.mubr.f32.mxu0 0.0
    %424 = vmatmul.mubr.f32.gmra.mrb[0].mxu0 %v348
    %v425 = vpop.f32.mrb[0].mxu0
    %v426 = vadd.f32 0.0, %v425
    %v427 = vpop.f32.mrb[0].mxu0
    %428 = vdwg.mxu0
    %v429 = vmul.f32 %v421, 0.35355338
    %v430 = vmul.f32 %v426, 0.35355338
    %v431 = vadd.f32 %v429, %v37
    %v432 = vadd.f32 %v430, %v38
    %433 = vrot.lane.b32.xlu0 %v143, 104
    %v434 = vpop.permute.xlu0 %433
    %435 = vrot.lane.b32.xlu0 %v146, 104
    %v436 = vpop.permute.xlu0 %435
    %437 = vrot.lane.b32.xlu0 %v143, 72
    %v438 = vpop.permute.xlu0 %437
    %439 = vrot.lane.b32.xlu0 %v146, 72
    %v440 = vpop.permute.xlu0 %439
    %v441 = vsel %vm155, %v434, 0
    %v443 = vsel %vm155, %v436, 0
    %v445 = vsel %vm155, %v438, 0
    %v447 = vsel %vm155, %v440, 0
    %449 = vmatprep.subr.mxu0 0.0
    %450 = vmatpush1.xpose.msra.mxu0 %v445
    %451 = vmatprep.subr.mxu0 0.0
    %452 = vmatpush1.xpose.msra.mxu0 %v447
    %453 = vmatprep.subr.mxu0 0.0
    %454 = vmatpush1.xpose.msra.mxu0 0.0
    %455 = vmatprep.subr.mxu0 0.0
    %456 = vmatpush1.xpose.msra.mxu0 0.0
    %457 = vmatprep.subr.mxu0 0.0
    %458 = vmatpush1.xpose.msra.mxu0 0.0
    %459 = vmatprep.subr.mxu0 0.0
    %460 = vmatpush1.xpose.msra.mxu0 0.0
    %461 = vmatprep.subr.mxu0 0.0
    %462 = vmatpush1.xpose.msra.mxu0 0.0
    %463 = vmatprep.subr.mxu0 0.0
    %464 = vmatpush1.xpose.msra.mxu0 0.0
    %465 = vmatprep.subr.mxu0 0.0
    %466 = vmatpush1.xpose.msra.mxu0 0.0
    %467 = vmatprep.subr.mxu0 0.0
    %468 = vmatpush1.xpose.msra.mxu0 0.0
    %469 = vmatprep.subr.mxu0 0.0
    %470 = vmatpush1.xpose.msra.mxu0 0.0
    %471 = vmatprep.subr.mxu0 0.0
    %472 = vmatpush1.xpose.msra.mxu0 0.0
    %473 = vmatprep.subr.mxu0 0.0
    %474 = vmatpush1.xpose.msra.mxu0 0.0
    %475 = vmatprep.subr.mxu0 0.0
    %476 = vmatpush1.xpose.msra.mxu0 0.0
    %477 = vmatprep.subr.mxu0 0.0
    %478 = vmatpush1.xpose.msra.mxu0 0.0
    %479 = vmatprep.subr.mxu0 0.0
    %480 = vmatpush1.xpose.msra.mxu0 0.0
    %481 = vmatprep.subr.mxu0 0.0
    %482 = vmatpush1.xpose.msra.mxu0 0.0
    %483 = vmatprep.subr.mxu0 0.0
    %484 = vmatpush1.xpose.msra.mxu0 0.0
    %485 = vmatprep.subr.mxu0 0.0
    %486 = vmatpush1.xpose.msra.mxu0 0.0
    %487 = vmatprep.subr.mxu0 0.0
    %488 = vmatpush1.xpose.msra.mxu0 0.0
    %489 = vmatprep.subr.mxu0 0.0
    %490 = vmatpush1.xpose.msra.mxu0 0.0
    %491 = vmatprep.subr.mxu0 0.0
    %492 = vmatpush1.xpose.msra.mxu0 0.0
    %493 = vmatprep.subr.mxu0 0.0
    %494 = vmatpush1.xpose.msra.mxu0 0.0
    %495 = vmatprep.subr.mxu0 0.0
    %496 = vmatpush1.xpose.msra.mxu0 0.0
    %497 = vmatprep.subr.mxu0 0.0
    %498 = vmatpush1.xpose.msra.mxu0 0.0
    %499 = vmatprep.subr.mxu0 0.0
    %500 = vmatpush1.xpose.msra.mxu0 0.0
    %501 = vmatprep.subr.mxu0 0.0
    %502 = vmatpush1.xpose.msra.mxu0 0.0
    %503 = vmatprep.subr.mxu0 0.0
    %504 = vmatpush1.xpose.msra.mxu0 0.0
    %505 = vmatprep.subr.mxu0 0.0
    %506 = vmatpush1.xpose.msra.mxu0 0.0
    %507 = vmatprep.subr.mxu0 0.0
    %508 = vmatpush1.xpose.msra.mxu0 0.0
    %509 = vmatprep.subr.mxu0 0.0
    %510 = vmatpush1.xpose.msra.mxu0 0.0
    %511 = vmatprep.subr.mxu0 0.0
    %512 = vmatpush1.xpose.msra.mxu0 0.0
    %513 = vmatprep.mubr.f32.mxu0 0.0
    %514 = vmatmul.mubr.f32.gmra.mrb[0].mxu0 %v441
    %v515 = vpop.f32.mrb[0].mxu0
    %v516 = vadd.f32 0.0, %v515
    %v517 = vpop.f32.mrb[0].mxu0
    %518 = vmatprep.mubr.f32.mxu0 0.0
    %519 = vmatmul.mubr.f32.gmra.mrb[0].mxu0 %v443
    %v520 = vpop.f32.mrb[0].mxu0
    %v521 = vadd.f32 0.0, %v520
    %v522 = vpop.f32.mrb[0].mxu0
    %523 = vdwg.mxu0
    %v524 = vmul.f32 %v516, 0.35355338
    %v525 = vmul.f32 %v521, 0.35355338
    %v526 = vadd.f32 %v524, %v37
    %v527 = vadd.f32 %v525, %v38
    %vm528 = vcmask 130048
    %v529 = vsel %vm528, %v241, -inf
    %530 = vmax.xlane.f32.xlu0 %v529
    %v531 = vpop.xlane.xlu0 %530
    %v532 = vsel %vm528, %v242, -inf
    %533 = vmax.xlane.f32.xlu0 %v532
    %v534 = vpop.xlane.xlu0 %533
    %v535 = vsub.f32 %v241, %v531
    %v536 = vsub.f32 %v242, %v534
    %v537 = vmul.f32 %v535, 1.442695
    %v538 = vpow.pop %v537
    %v539 = vmul.f32 %v536, 1.442695
    %v540 = vpow.pop %v539
    %v541 = vsel %vm528, %v538, 0.0
    %542 = vadd.xlane.f32.xlu0 %v541
    %v543 = vpop.xlane.xlu0 %542
    %v544 = vsel %vm528, %v540, 0.0
    %545 = vadd.xlane.f32.xlu0 %v544
    %v546 = vpop.xlane.xlu0 %545
    %v547 = vrcp.pop %v543
    %v548 = vmul.f32 %v538, %v547
    %v549 = vrcp.pop %v546
    %v550 = vmul.f32 %v540, %v549
    %v551 = vsel %vm528, %v336, -inf
    %552 = vmax.xlane.f32.xlu0 %v551
    %v553 = vpop.xlane.xlu0 %552
    %v554 = vsel %vm528, %v337, -inf
    %555 = vmax.xlane.f32.xlu0 %v554
    %v556 = vpop.xlane.xlu0 %555
    %v557 = vsub.f32 %v336, %v553
    %v558 = vsub.f32 %v337, %v556
    %v559 = vmul.f32 %v557, 1.442695
    %v560 = vpow.pop %v559
    %v561 = vmul.f32 %v558, 1.442695
    %v562 = vpow.pop %v561
    %v563 = vsel %vm528, %v560, 0.0
    %564 = vadd.xlane.f32.xlu0 %v563
    %v565 = vpop.xlane.xlu0 %564
    %v566 = vsel %vm528, %v562, 0.0
    %567 = vadd.xlane.f32.xlu0 %v566
    %v568 = vpop.xlane.xlu0 %567
    %v569 = vrcp.pop %v565
    %v570 = vmul.f32 %v560, %v569
    %v571 = vrcp.pop %v568
    %v572 = vmul.f32 %v562, %v571
    %v573 = vsel %vm528, %v431, -inf
    %574 = vmax.xlane.f32.xlu0 %v573
    %v575 = vpop.xlane.xlu0 %574
    %v576 = vsel %vm528, %v432, -inf
    %577 = vmax.xlane.f32.xlu0 %v576
    %v578 = vpop.xlane.xlu0 %577
    %v579 = vsub.f32 %v431, %v575
    %v580 = vsub.f32 %v432, %v578
    %v581 = vmul.f32 %v579, 1.442695
    %v582 = vpow.pop %v581
    %v583 = vmul.f32 %v580, 1.442695
    %v584 = vpow.pop %v583
    %v585 = vsel %vm528, %v582, 0.0
    %586 = vadd.xlane.f32.xlu0 %v585
    %v587 = vpop.xlane.xlu0 %586
    %v588 = vsel %vm528, %v584, 0.0
    %589 = vadd.xlane.f32.xlu0 %v588
    %v590 = vpop.xlane.xlu0 %589
    %v591 = vrcp.pop %v587
    %v592 = vmul.f32 %v582, %v591
    %v593 = vrcp.pop %v590
    %v594 = vmul.f32 %v584, %v593
    %v595 = vsel %vm528, %v526, -inf
    %596 = vmax.xlane.f32.xlu0 %v595
    %v597 = vpop.xlane.xlu0 %596
    %v598 = vsel %vm528, %v527, -inf
    %599 = vmax.xlane.f32.xlu0 %v598
    %v600 = vpop.xlane.xlu0 %599
    %v601 = vsub.f32 %v526, %v597
    %v602 = vsub.f32 %v527, %v600
    %v603 = vmul.f32 %v601, 1.442695
    %v604 = vpow.pop %v603
    %v605 = vmul.f32 %v602, 1.442695
    %v606 = vpow.pop %v605
    %v607 = vsel %vm528, %v604, 0.0
    %608 = vadd.xlane.f32.xlu0 %v607
    %v609 = vpop.xlane.xlu0 %608
    %v610 = vsel %vm528, %v606, 0.0
    %611 = vadd.xlane.f32.xlu0 %v610
    %v612 = vpop.xlane.xlu0 %611
    %v613 = vrcp.pop %v609
    %v614 = vmul.f32 %v604, %v613
    %v615 = vrcp.pop %v612
    %v616 = vmul.f32 %v606, %v615
    %617 = vrot.lane.b32.xlu0 %v143, 64
    %v618 = vpop.permute.xlu0 %617
    %619 = vrot.lane.b32.xlu0 %v146, 64
    %v620 = vpop.permute.xlu0 %619
    %v624 = vsel %vm528, %v548, 0
    %v627 = vsel %vm528, %v550, 0
    %629 = vmatprep.subr.mxu0 0.0
    %630 = vmatpush1.msra.mxu0 %v618
    %631 = vmatprep.subr.mxu0 0.0
    %632 = vmatpush1.msra.mxu0 %v620
    %633 = vmatprep.subr.mxu0 0.0
    %634 = vmatpush1.msra.mxu0 0.0
    %635 = vmatprep.subr.mxu0 0.0
    %636 = vmatpush1.msra.mxu0 0.0
    %637 = vmatprep.subr.mxu0 0.0
    %638 = vmatpush1.msra.mxu0 0.0
    %639 = vmatprep.subr.mxu0 0.0
    %640 = vmatpush1.msra.mxu0 0.0
    %641 = vmatprep.subr.mxu0 0.0
    %642 = vmatpush1.msra.mxu0 0.0
    %643 = vmatprep.subr.mxu0 0.0
    %644 = vmatpush1.msra.mxu0 0.0
    %645 = vmatprep.subr.mxu0 0.0
    %646 = vmatpush1.msra.mxu0 0.0
    %647 = vmatprep.subr.mxu0 0.0
    %648 = vmatpush1.msra.mxu0 0.0
    %649 = vmatprep.subr.mxu0 0.0
    %650 = vmatpush1.msra.mxu0 0.0
    %651 = vmatprep.subr.mxu0 0.0
    %652 = vmatpush1.msra.mxu0 0.0
    %653 = vmatprep.subr.mxu0 0.0
    %654 = vmatpush1.msra.mxu0 0.0
    %655 = vmatprep.subr.mxu0 0.0
    %656 = vmatpush1.msra.mxu0 0.0
    %657 = vmatprep.subr.mxu0 0.0
    %658 = vmatpush1.msra.mxu0 0.0
    %659 = vmatprep.subr.mxu0 0.0
    %660 = vmatpush1.msra.mxu0 0.0
    %661 = vmatprep.subr.mxu0 0.0
    %662 = vmatpush1.msra.mxu0 0.0
    %663 = vmatprep.subr.mxu0 0.0
    %664 = vmatpush1.msra.mxu0 0.0
    %665 = vmatprep.subr.mxu0 0.0
    %666 = vmatpush1.msra.mxu0 0.0
    %667 = vmatprep.subr.mxu0 0.0
    %668 = vmatpush1.msra.mxu0 0.0
    %669 = vmatprep.subr.mxu0 0.0
    %670 = vmatpush1.msra.mxu0 0.0
    %671 = vmatprep.subr.mxu0 0.0
    %672 = vmatpush1.msra.mxu0 0.0
    %673 = vmatprep.subr.mxu0 0.0
    %674 = vmatpush1.msra.mxu0 0.0
    %675 = vmatprep.subr.mxu0 0.0
    %676 = vmatpush1.msra.mxu0 0.0
    %677 = vmatprep.subr.mxu0 0.0
    %678 = vmatpush1.msra.mxu0 0.0
    %679 = vmatprep.subr.mxu0 0.0
    %680 = vmatpush1.msra.mxu0 0.0
    %681 = vmatprep.subr.mxu0 0.0
    %682 = vmatpush1.msra.mxu0 0.0
    %683 = vmatprep.subr.mxu0 0.0
    %684 = vmatpush1.msra.mxu0 0.0
    %685 = vmatprep.subr.mxu0 0.0
    %686 = vmatpush1.msra.mxu0 0.0
    %687 = vmatprep.subr.mxu0 0.0
    %688 = vmatpush1.msra.mxu0 0.0
    %689 = vmatprep.subr.mxu0 0.0
    %690 = vmatpush1.msra.mxu0 0.0
    %691 = vmatprep.subr.mxu0 0.0
    %692 = vmatpush1.msra.mxu0 0.0
    %693 = vmatprep.mubr.f32.mxu0 0.0
    %694 = vmatmul.mubr.f32.gmra.mrb[0].mxu0 %v624
    %v695 = vpop.f32.mrb[0].mxu0
    %v696 = vadd.f32 0.0, %v695
    %v697 = vpop.f32.mrb[0].mxu0
    %698 = vmatprep.mubr.f32.mxu0 0.0
    %699 = vmatmul.mubr.f32.gmra.mrb[0].mxu0 %v627
    %v700 = vpop.f32.mrb[0].mxu0
    %v701 = vadd.f32 0.0, %v700
    %v702 = vpop.f32.mrb[0].mxu0
    %703 = vdwg.mxu0
    %704 = vrot.lane.b32.xlu0 %v143, 56
    %v705 = vpop.permute.xlu0 %704
    %706 = vrot.lane.b32.xlu0 %v146, 56
    %v707 = vpop.permute.xlu0 %706
    %v711 = vsel %vm528, %v570, 0
    %v714 = vsel %vm528, %v572, 0
    %716 = vmatprep.subr.mxu0 0.0
    %717 = vmatpush1.msra.mxu0 %v705
    %718 = vmatprep.subr.mxu0 0.0
    %719 = vmatpush1.msra.mxu0 %v707
    %720 = vmatprep.subr.mxu0 0.0
    %721 = vmatpush1.msra.mxu0 0.0
    %722 = vmatprep.subr.mxu0 0.0
    %723 = vmatpush1.msra.mxu0 0.0
    %724 = vmatprep.subr.mxu0 0.0
    %725 = vmatpush1.msra.mxu0 0.0
    %726 = vmatprep.subr.mxu0 0.0
    %727 = vmatpush1.msra.mxu0 0.0
    %728 = vmatprep.subr.mxu0 0.0
    %729 = vmatpush1.msra.mxu0 0.0
    %730 = vmatprep.subr.mxu0 0.0
    %731 = vmatpush1.msra.mxu0 0.0
    %732 = vmatprep.subr.mxu0 0.0
    %733 = vmatpush1.msra.mxu0 0.0
    %734 = vmatprep.subr.mxu0 0.0
    %735 = vmatpush1.msra.mxu0 0.0
    %736 = vmatprep.subr.mxu0 0.0
    %737 = vmatpush1.msra.mxu0 0.0
    %738 = vmatprep.subr.mxu0 0.0
    %739 = vmatpush1.msra.mxu0 0.0
    %740 = vmatprep.subr.mxu0 0.0
    %741 = vmatpush1.msra.mxu0 0.0
    %742 = vmatprep.subr.mxu0 0.0
    %743 = vmatpush1.msra.mxu0 0.0
    %744 = vmatprep.subr.mxu0 0.0
    %745 = vmatpush1.msra.mxu0 0.0
    %746 = vmatprep.subr.mxu0 0.0
    %747 = vmatpush1.msra.mxu0 0.0
    %748 = vmatprep.subr.mxu0 0.0
    %749 = vmatpush1.msra.mxu0 0.0
    %750 = vmatprep.subr.mxu0 0.0
    %751 = vmatpush1.msra.mxu0 0.0
    %752 = vmatprep.subr.mxu0 0.0
    %753 = vmatpush1.msra.mxu0 0.0
    %754 = vmatprep.subr.mxu0 0.0
    %755 = vmatpush1.msra.mxu0 0.0
    %756 = vmatprep.subr.mxu0 0.0
    %757 = vmatpush1.msra.mxu0 0.0
    %758 = vmatprep.subr.mxu0 0.0
    %759 = vmatpush1.msra.mxu0 0.0
    %760 = vmatprep.subr.mxu0 0.0
    %761 = vmatpush1.msra.mxu0 0.0
    %762 = vmatprep.subr.mxu0 0.0
    %763 = vmatpush1.msra.mxu0 0.0
    %764 = vmatprep.subr.mxu0 0.0
    %765 = vmatpush1.msra.mxu0 0.0
    %766 = vmatprep.subr.mxu0 0.0
    %767 = vmatpush1.msra.mxu0 0.0
    %768 = vmatprep.subr.mxu0 0.0
    %769 = vmatpush1.msra.mxu0 0.0
    %770 = vmatprep.subr.mxu0 0.0
    %771 = vmatpush1.msra.mxu0 0.0
    %772 = vmatprep.subr.mxu0 0.0
    %773 = vmatpush1.msra.mxu0 0.0
    %774 = vmatprep.subr.mxu0 0.0
    %775 = vmatpush1.msra.mxu0 0.0
    %776 = vmatprep.subr.mxu0 0.0
    %777 = vmatpush1.msra.mxu0 0.0
    %778 = vmatprep.subr.mxu0 0.0
    %779 = vmatpush1.msra.mxu0 0.0
    %780 = vmatprep.mubr.f32.mxu0 0.0
    %781 = vmatmul.mubr.f32.gmra.mrb[0].mxu0 %v711
    %v782 = vpop.f32.mrb[0].mxu0
    %v783 = vadd.f32 0.0, %v782
    %v784 = vpop.f32.mrb[0].mxu0
    %785 = vmatprep.mubr.f32.mxu0 0.0
    %786 = vmatmul.mubr.f32.gmra.mrb[0].mxu0 %v714
    %v787 = vpop.f32.mrb[0].mxu0
    %v788 = vadd.f32 0.0, %v787
    %v789 = vpop.f32.mrb[0].mxu0
    %790 = vdwg.mxu0
    %791 = vrot.lane.b32.xlu0 %v143, 48
    %v792 = vpop.permute.xlu0 %791
    %793 = vrot.lane.b32.xlu0 %v146, 48
    %v794 = vpop.permute.xlu0 %793
    %v798 = vsel %vm528, %v592, 0
    %v801 = vsel %vm528, %v594, 0
    %803 = vmatprep.subr.mxu0 0.0
    %804 = vmatpush1.msra.mxu0 %v792
    %805 = vmatprep.subr.mxu0 0.0
    %806 = vmatpush1.msra.mxu0 %v794
    %807 = vmatprep.subr.mxu0 0.0
    %808 = vmatpush1.msra.mxu0 0.0
    %809 = vmatprep.subr.mxu0 0.0
    %810 = vmatpush1.msra.mxu0 0.0
    %811 = vmatprep.subr.mxu0 0.0
    %812 = vmatpush1.msra.mxu0 0.0
    %813 = vmatprep.subr.mxu0 0.0
    %814 = vmatpush1.msra.mxu0 0.0
    %815 = vmatprep.subr.mxu0 0.0
    %816 = vmatpush1.msra.mxu0 0.0
    %817 = vmatprep.subr.mxu0 0.0
    %818 = vmatpush1.msra.mxu0 0.0
    %819 = vmatprep.subr.mxu0 0.0
    %820 = vmatpush1.msra.mxu0 0.0
    %821 = vmatprep.subr.mxu0 0.0
    %822 = vmatpush1.msra.mxu0 0.0
    %823 = vmatprep.subr.mxu0 0.0
    %824 = vmatpush1.msra.mxu0 0.0
    %825 = vmatprep.subr.mxu0 0.0
    %826 = vmatpush1.msra.mxu0 0.0
    %827 = vmatprep.subr.mxu0 0.0
    %828 = vmatpush1.msra.mxu0 0.0
    %829 = vmatprep.subr.mxu0 0.0
    %830 = vmatpush1.msra.mxu0 0.0
    %831 = vmatprep.subr.mxu0 0.0
    %832 = vmatpush1.msra.mxu0 0.0
    %833 = vmatprep.subr.mxu0 0.0
    %834 = vmatpush1.msra.mxu0 0.0
    %835 = vmatprep.subr.mxu0 0.0
    %836 = vmatpush1.msra.mxu0 0.0
    %837 = vmatprep.subr.mxu0 0.0
    %838 = vmatpush1.msra.mxu0 0.0
    %839 = vmatprep.subr.mxu0 0.0
    %840 = vmatpush1.msra.mxu0 0.0
    %841 = vmatprep.subr.mxu0 0.0
    %842 = vmatpush1.msra.mxu0 0.0
    %843 = vmatprep.subr.mxu0 0.0
    %844 = vmatpush1.msra.mxu0 0.0
    %845 = vmatprep.subr.mxu0 0.0
    %846 = vmatpush1.msra.mxu0 0.0
    %847 = vmatprep.subr.mxu0 0.0
    %848 = vmatpush1.msra.mxu0 0.0
    %849 = vmatprep.subr.mxu0 0.0
    %850 = vmatpush1.msra.mxu0 0.0
    %851 = vmatprep.subr.mxu0 0.0
    %852 = vmatpush1.msra.mxu0 0.0
    %853 = vmatprep.subr.mxu0 0.0
    %854 = vmatpush1.msra.mxu0 0.0
    %855 = vmatprep.subr.mxu0 0.0
    %856 = vmatpush1.msra.mxu0 0.0
    %857 = vmatprep.subr.mxu0 0.0
    %858 = vmatpush1.msra.mxu0 0.0
    %859 = vmatprep.subr.mxu0 0.0
    %860 = vmatpush1.msra.mxu0 0.0
    %861 = vmatprep.subr.mxu0 0.0
    %862 = vmatpush1.msra.mxu0 0.0
    %863 = vmatprep.subr.mxu0 0.0
    %864 = vmatpush1.msra.mxu0 0.0
    %865 = vmatprep.subr.mxu0 0.0
    %866 = vmatpush1.msra.mxu0 0.0
    %867 = vmatprep.mubr.f32.mxu0 0.0
    %868 = vmatmul.mubr.f32.gmra.mrb[0].mxu0 %v798
    %v869 = vpop.f32.mrb[0].mxu0
    %v870 = vadd.f32 0.0, %v869
    %v871 = vpop.f32.mrb[0].mxu0
    %872 = vmatprep.mubr.f32.mxu0 0.0
    %873 = vmatmul.mubr.f32.gmra.mrb[0].mxu0 %v801
    %v874 = vpop.f32.mrb[0].mxu0
    %v875 = vadd.f32 0.0, %v874
    %v876 = vpop.f32.mrb[0].mxu0
    %877 = vdwg.mxu0
    %878 = vrot.lane.b32.xlu0 %v143, 40
    %v879 = vpop.permute.xlu0 %878
    %880 = vrot.lane.b32.xlu0 %v146, 40
    %v881 = vpop.permute.xlu0 %880
    %v885 = vsel %vm528, %v614, 0
    %v888 = vsel %vm528, %v616, 0
    %890 = vmatprep.subr.mxu0 0.0
    %891 = vmatpush1.msra.mxu0 %v879
    %892 = vmatprep.subr.mxu0 0.0
    %893 = vmatpush1.msra.mxu0 %v881
    %894 = vmatprep.subr.mxu0 0.0
    %895 = vmatpush1.msra.mxu0 0.0
    %896 = vmatprep.subr.mxu0 0.0
    %897 = vmatpush1.msra.mxu0 0.0
    %898 = vmatprep.subr.mxu0 0.0
    %899 = vmatpush1.msra.mxu0 0.0
    %900 = vmatprep.subr.mxu0 0.0
    %901 = vmatpush1.msra.mxu0 0.0
    %902 = vmatprep.subr.mxu0 0.0
    %903 = vmatpush1.msra.mxu0 0.0
    %904 = vmatprep.subr.mxu0 0.0
    %905 = vmatpush1.msra.mxu0 0.0
    %906 = vmatprep.subr.mxu0 0.0
    %907 = vmatpush1.msra.mxu0 0.0
    %908 = vmatprep.subr.mxu0 0.0
    %909 = vmatpush1.msra.mxu0 0.0
    %910 = vmatprep.subr.mxu0 0.0
    %911 = vmatpush1.msra.mxu0 0.0
    %912 = vmatprep.subr.mxu0 0.0
    %913 = vmatpush1.msra.mxu0 0.0
    %914 = vmatprep.subr.mxu0 0.0
    %915 = vmatpush1.msra.mxu0 0.0
    %916 = vmatprep.subr.mxu0 0.0
    %917 = vmatpush1.msra.mxu0 0.0
    %918 = vmatprep.subr.mxu0 0.0
    %919 = vmatpush1.msra.mxu0 0.0
    %920 = vmatprep.subr.mxu0 0.0
    %921 = vmatpush1.msra.mxu0 0.0
    %922 = vmatprep.subr.mxu0 0.0
    %923 = vmatpush1.msra.mxu0 0.0
    %924 = vmatprep.subr.mxu0 0.0
    %925 = vmatpush1.msra.mxu0 0.0
    %926 = vmatprep.subr.mxu0 0.0
    %927 = vmatpush1.msra.mxu0 0.0
    %928 = vmatprep.subr.mxu0 0.0
    %929 = vmatpush1.msra.mxu0 0.0
    %930 = vmatprep.subr.mxu0 0.0
    %931 = vmatpush1.msra.mxu0 0.0
    %932 = vmatprep.subr.mxu0 0.0
    %933 = vmatpush1.msra.mxu0 0.0
    %934 = vmatprep.subr.mxu0 0.0
    %935 = vmatpush1.msra.mxu0 0.0
    %936 = vmatprep.subr.mxu0 0.0
    %937 = vmatpush1.msra.mxu0 0.0
    %938 = vmatprep.subr.mxu0 0.0
    %939 = vmatpush1.msra.mxu0 0.0
    %940 = vmatprep.subr.mxu0 0.0
    %941 = vmatpush1.msra.mxu0 0.0
    %942 = vmatprep.subr.mxu0 0.0
    %943 = vmatpush1.msra.mxu0 0.0
    %944 = vmatprep.subr.mxu0 0.0
    %945 = vmatpush1.msra.mxu0 0.0
    %946 = vmatprep.subr.mxu0 0.0
    %947 = vmatpush1.msra.mxu0 0.0
    %948 = vmatprep.subr.mxu0 0.0
    %949 = vmatpush1.msra.mxu0 0.0
    %950 = vmatprep.subr.mxu0 0.0
    %951 = vmatpush1.msra.mxu0 0.0
    %952 = vmatprep.subr.mxu0 0.0
    %953 = vmatpush1.msra.mxu0 0.0
    %954 = vmatprep.mubr.f32.mxu0 0.0
    %955 = vmatmul.mubr.f32.gmra.mrb[0].mxu0 %v885
    %v956 = vpop.f32.mrb[0].mxu0
    %v957 = vadd.f32 0.0, %v956
    %v958 = vpop.f32.mrb[0].mxu0
    %959 = vmatprep.mubr.f32.mxu0 0.0
    %960 = vmatmul.mubr.f32.gmra.mrb[0].mxu0 %v888
    %v961 = vpop.f32.mrb[0].mxu0
    %v962 = vadd.f32 0.0, %v961
    %v963 = vpop.f32.mrb[0].mxu0
    %964 = vdwg.mxu0
    %967 = vrot.lane.b32.xlu0 %v783, 8
    %v968 = vpop.permute.xlu0 %967
    %969 = vrot.lane.b32.xlu0 %v788, 8
    %v970 = vpop.permute.xlu0 %969
    %975 = vrot.lane.b32.xlu0 %v870, 16
    %v976 = vpop.permute.xlu0 %975
    %977 = vrot.lane.b32.xlu0 %v875, 16
    %v978 = vpop.permute.xlu0 %977
    %983 = vrot.lane.b32.xlu0 %v957, 24
    %v984 = vpop.permute.xlu0 %983
    %985 = vrot.lane.b32.xlu0 %v962, 24
    %v986 = vpop.permute.xlu0 %985
    %v989 = vsel %vm155, %v696, %v968
    %v990 = vsel %vm155, %v701, %v970
    %v991 = vsel %vm528, %v989, %v976
    %v992 = vsel %vm528, %v990, %v978
    %vm993 = vcmask 195584
    %v994 = vsel %vm993, %v991, %v984
    %v995 = vsel %vm993, %v992, %v986
    %v996 = vld [vmem:[%s5] sm:$0xf]
    %v997 = vld [vmem:[%s5 + $0x4] sm:$0xf]
    %v998 = vld [vmem:[%s5 + $0x8] sm:$0xf]
    %v999 = vld [vmem:[%s5 + $0xc] sm:$0xf]
    %v1000 = vpack.c.bf16 %v995, %v994
    %v1001 = vlaneseq
    %v1002 = vshrl.u32 %v1001, 7
    %v1003 = vsub.s32 3, %v1002
    %v1004 = vrot.slane %v39, %v1003
    %v1009 = vunpack.c.l.b16 %v996
    %v1010 = vunpack.c.l.b16 %v997
    %v1011 = vunpack.c.l.b16 %v998
    %v1012 = vunpack.c.l.b16 %v999
    %v1013 = vpack.c.b16 %v1010, %v1009
    %v1014 = vpack.c.b16 %v1012, %v1011
    %v1018 = vsel %vm44, %v1000, 0
    %1020 = vmatprep.subr.bf16.mxu0 0
    %1021 = vmatpush1.bf16.msra.mxu0 %v1013
    %1022 = vmatprep.subr.bf16.mxu0 0
    %1023 = vmatpush1.bf16.msra.mxu0 %v1014
    %1024 = vmatprep.subr.bf16.mxu0 0
    %1025 = vmatpush1.bf16.msra.mxu0 0
    %1026 = vmatprep.subr.bf16.mxu0 0
    %1027 = vmatpush1.bf16.msra.mxu0 0
    %1028 = vmatprep.subr.bf16.mxu0 0
    %1029 = vmatpush1.bf16.msra.mxu0 0
    %1030 = vmatprep.subr.bf16.mxu0 0
    %1031 = vmatpush1.bf16.msra.mxu0 0
    %1032 = vmatprep.subr.bf16.mxu0 0
    %1033 = vmatpush1.bf16.msra.mxu0 0
    %1034 = vmatprep.subr.bf16.mxu0 0
    %1035 = vmatpush1.bf16.msra.mxu0 0
    %1036 = vmatprep.subr.bf16.mxu0 0
    %1037 = vmatpush1.bf16.msra.mxu0 0
    %1038 = vmatprep.subr.bf16.mxu0 0
    %1039 = vmatpush1.bf16.msra.mxu0 0
    %1040 = vmatprep.subr.bf16.mxu0 0
    %1041 = vmatpush1.bf16.msra.mxu0 0
    %1042 = vmatprep.subr.bf16.mxu0 0
    %1043 = vmatpush1.bf16.msra.mxu0 0
    %1044 = vmatprep.subr.bf16.mxu0 0
    %1045 = vmatpush1.bf16.msra.mxu0 0
    %1046 = vmatprep.subr.bf16.mxu0 0
    %1047 = vmatpush1.bf16.msra.mxu0 0
    %1048 = vmatprep.subr.bf16.mxu0 0
    %1049 = vmatpush1.bf16.msra.mxu0 0
    %1050 = vmatprep.subr.bf16.mxu0 0
    %1051 = vmatpush1.bf16.msra.mxu0 0
    %1052 = vmatprep.mubr.bf16.mxu0 0
    %1053 = vmatmul.mubr.bf16.gmra.mrb[0].mxu0 %v1018
    %v1054 = vpop.f32.mrb[0].mxu0
    %v1055 = vadd.f32 %v1004, %v1054
    %v1056 = vpop.f32.mrb[0].mxu0
    %v1057 = vpop.f32.mrb[0].mxu0
    %v1058 = vadd.f32 %v1004, %v1057
    %v1059 = vpop.f32.mrb[0].mxu0
    %1060 = vdwg.mxu0
    %v1061 = vadd.f32 %v1055, %v82
    %v1062 = vadd.f32 %v1058, %v83
    %v1063 = vsel %vm44, %v1061, 0.0
    %1064 = vadd.xlane.f32.xlu0 %v1063
    %v1065 = vpop.xlane.xlu0 %1064
    %v1066 = vsel %vm44, %v1062, 0.0
    %1067 = vadd.xlane.f32.xlu0 %v1066
    %v1068 = vpop.xlane.xlu0 %1067
    %v1069 = vmul.f32 %v1065, %v51
    %v1070 = vmul.f32 %v1068, %v51
    %v1071 = vsub.f32 %v1061, %v1069
    %v1072 = vsub.f32 %v1062, %v1070
    %v1073 = vmul.f32 %v1071, %v1071
    %v1074 = vmul.f32 %v1072, %v1072
    %v1075 = vsel %vm44, %v1073, 0.0
    %1076 = vadd.xlane.f32.xlu0 %v1075
    %v1077 = vpop.xlane.xlu0 %1076
    %v1078 = vsel %vm44, %v1074, 0.0
    %1079 = vadd.xlane.f32.xlu0 %v1078
    %v1080 = vpop.xlane.xlu0 %1079
    %v1081 = vmul.f32 %v1077, %v51
    %v1082 = vmul.f32 %v1080, %v51
    %v1083 = vadd.f32 %v1081, 1e-12
    %v1084 = vadd.f32 %v1082, 1e-12
    %v1085 = vrsqrt.pop %v1083
    %v1086 = vrsqrt.pop %v1084
    %v1087 = vmul.f32 %v1071, %v1085
    %v1088 = vmul.f32 %v1072, %v1086
    %v1089 = vlaneseq
    %v1090 = vshrl.u32 %v1089, 7
    %v1091 = vsub.s32 4, %v1090
    %v1092 = vrot.slane %v39, %v1091
    %v1093 = vmul.f32 %v1087, %v1092
    %v1094 = vmul.f32 %v1088, %v1092
    %v1095 = vlaneseq
    %v1096 = vshrl.u32 %v1095, 7
    %v1097 = vsub.s32 5, %v1096
    %v1098 = vrot.slane %v39, %v1097
    %v1099 = vadd.f32 %v1093, %v1098
    %v1100 = vadd.f32 %v1094, %v1098
    %v1101 = vld [vmem:[%s6] sm:$0xf]
    %v1102 = vld [vmem:[%s6 + $0x4] sm:$0xf]
    %v1103 = vld [vmem:[%s6 + $0x8] sm:$0xf]
    %v1104 = vld [vmem:[%s6 + $0xc] sm:$0xf]
    %v1105 = vpack.c.bf16 %v1100, %v1099
    %v1106 = vlaneseq
    %v1107 = vshrl.u32 %v1106, 7
    %v1108 = vsub.s32 6, %v1107
    %v1109 = vrot.slane %v39, %v1108
    %v1114 = vunpack.c.l.b16 %v1101
    %v1115 = vunpack.c.l.b16 %v1102
    %v1116 = vunpack.c.l.b16 %v1103
    %v1117 = vunpack.c.l.b16 %v1104
    %v1118 = vpack.c.b16 %v1115, %v1114
    %v1119 = vpack.c.b16 %v1117, %v1116
    %v1123 = vsel %vm44, %v1105, 0
    %1125 = vmatprep.subr.bf16.mxu0 0
    %1126 = vmatpush1.bf16.msra.mxu0 %v1118
    %1127 = vmatprep.subr.bf16.mxu0 0
    %1128 = vmatpush1.bf16.msra.mxu0 %v1119
    %1129 = vmatprep.subr.bf16.mxu0 0
    %1130 = vmatpush1.bf16.msra.mxu0 0
    %1131 = vmatprep.subr.bf16.mxu0 0
    %1132 = vmatpush1.bf16.msra.mxu0 0
    %1133 = vmatprep.subr.bf16.mxu0 0
    %1134 = vmatpush1.bf16.msra.mxu0 0
    %1135 = vmatprep.subr.bf16.mxu0 0
    %1136 = vmatpush1.bf16.msra.mxu0 0
    %1137 = vmatprep.subr.bf16.mxu0 0
    %1138 = vmatpush1.bf16.msra.mxu0 0
    %1139 = vmatprep.subr.bf16.mxu0 0
    %1140 = vmatpush1.bf16.msra.mxu0 0
    %1141 = vmatprep.subr.bf16.mxu0 0
    %1142 = vmatpush1.bf16.msra.mxu0 0
    %1143 = vmatprep.subr.bf16.mxu0 0
    %1144 = vmatpush1.bf16.msra.mxu0 0
    %1145 = vmatprep.subr.bf16.mxu0 0
    %1146 = vmatpush1.bf16.msra.mxu0 0
    %1147 = vmatprep.subr.bf16.mxu0 0
    %1148 = vmatpush1.bf16.msra.mxu0 0
    %1149 = vmatprep.subr.bf16.mxu0 0
    %1150 = vmatpush1.bf16.msra.mxu0 0
    %1151 = vmatprep.subr.bf16.mxu0 0
    %1152 = vmatpush1.bf16.msra.mxu0 0
    %1153 = vmatprep.subr.bf16.mxu0 0
    %1154 = vmatpush1.bf16.msra.mxu0 0
    %1155 = vmatprep.subr.bf16.mxu0 0
    %1156 = vmatpush1.bf16.msra.mxu0 0
    %1157 = vmatprep.mubr.bf16.mxu0 0
    %1158 = vmatmul.mubr.bf16.gmra.mrb[0].mxu0 %v1123
    %v1159 = vpop.f32.mrb[0].mxu0
    %v1160 = vadd.f32 %v1109, %v1159
    %v1161 = vpop.f32.mrb[0].mxu0
    %v1162 = vpop.f32.mrb[0].mxu0
    %v1163 = vadd.f32 %v1109, %v1162
    %v1164 = vpop.f32.mrb[0].mxu0
    %1165 = vdwg.mxu0
    %v1166 = vmul.f32 %v1160, %v1160
    %v1167 = vmul.f32 %v1163, %v1163
    %v1168 = vmul.f32 %v1160, %v1166
    %v1169 = vmul.f32 %v1163, %v1167
    %v1170 = vmul.f32 %v1168, 0.044715
    %v1171 = vmul.f32 %v1169, 0.044715
    %v1172 = vadd.f32 %v1160, %v1170
    %v1173 = vadd.f32 %v1163, %v1171
    %v1174 = vmul.f32 %v1172, 0.7978846
    %v1175 = vmul.f32 %v1173, 0.7978846
    %v1176 = vtanh.pop %v1174
    %v1177 = vtanh.pop %v1175
    %v1178 = vadd.f32 %v1176, 1.0
    %v1179 = vadd.f32 %v1177, 1.0
    %v1180 = vmul.f32 %v1178, 0.5
    %v1181 = vmul.f32 %v1179, 0.5
    %v1182 = vmul.f32 %v1160, %v1180
    %v1183 = vmul.f32 %v1163, %v1181
    %v1184 = vld [vmem:[%s7] sm:$0xf]
    %v1185 = vld [vmem:[%s7 + $0x4] sm:$0xf]
    %v1186 = vld [vmem:[%s7 + $0x8] sm:$0xf]
    %v1187 = vld [vmem:[%s7 + $0xc] sm:$0xf]
    %v1188 = vld [vmem:[%s7 + $0x10] sm:$0xf]
    %v1189 = vld [vmem:[%s7 + $0x14] sm:$0xf]
    %v1190 = vld [vmem:[%s7 + $0x18] sm:$0xf]
    %v1191 = vld [vmem:[%s7 + $0x1c] sm:$0xf]
    %v1192 = vpack.c.bf16 %v1183, %v1182
    %v1193 = vlaneseq
    %v1194 = vshrl.u32 %v1193, 7
    %v1195 = vsub.s32 7, %v1194
    %v1196 = vrot.slane %v39, %v1195
    %v1205 = vunpack.c.l.b16 %v1184
    %v1206 = vunpack.c.l.b16 %v1185
    %v1207 = vunpack.c.l.b16 %v1186
    %v1208 = vunpack.c.l.b16 %v1187
    %v1209 = vunpack.c.l.b16 %v1188
    %v1210 = vunpack.c.l.b16 %v1189
    %v1211 = vunpack.c.l.b16 %v1190
    %v1212 = vunpack.c.l.b16 %v1191
    %v1213 = vpack.c.b16 %v1206, %v1205
    %v1214 = vpack.c.b16 %v1208, %v1207
    %v1215 = vpack.c.b16 %v1210, %v1209
    %v1216 = vpack.c.b16 %v1212, %v1211
    %vm1221 = vcmask 523264
    %v1223 = vsel %vm1221, %v1192, 0
    %1225 = vmatprep.subr.bf16.mxu0 0
    %1226 = vmatpush1.bf16.msra.mxu0 %v1213
    %1227 = vmatprep.subr.bf16.mxu0 0
    %1228 = vmatpush1.bf16.msra.mxu0 %v1214
    %1229 = vmatprep.subr.bf16.mxu0 0
    %1230 = vmatpush1.bf16.msra.mxu0 %v1215
    %1231 = vmatprep.subr.bf16.mxu0 0
    %1232 = vmatpush1.bf16.msra.mxu0 %v1216
    %1233 = vmatprep.subr.bf16.mxu0 0
    %1234 = vmatpush1.bf16.msra.mxu0 0
    %1235 = vmatprep.subr.bf16.mxu0 0
    %1236 = vmatpush1.bf16.msra.mxu0 0
    %1237 = vmatprep.subr.bf16.mxu0 0
    %1238 = vmatpush1.bf16.msra.mxu0 0
    %1239 = vmatprep.subr.bf16.mxu0 0
    %1240 = vmatpush1.bf16.msra.mxu0 0
    %1241 = vmatprep.subr.bf16.mxu0 0
    %1242 = vmatpush1.bf16.msra.mxu0 0
    %1243 = vmatprep.subr.bf16.mxu0 0
    %1244 = vmatpush1.bf16.msra.mxu0 0
    %1245 = vmatprep.subr.bf16.mxu0 0
    %1246 = vmatpush1.bf16.msra.mxu0 0
    %1247 = vmatprep.subr.bf16.mxu0 0
    %1248 = vmatpush1.bf16.msra.mxu0 0
    %1249 = vmatprep.subr.bf16.mxu0 0
    %1250 = vmatpush1.bf16.msra.mxu0 0
    %1251 = vmatprep.subr.bf16.mxu0 0
    %1252 = vmatpush1.bf16.msra.mxu0 0
    %1253 = vmatprep.subr.bf16.mxu0 0
    %1254 = vmatpush1.bf16.msra.mxu0 0
    %1255 = vmatprep.subr.bf16.mxu0 0
    %1256 = vmatpush1.bf16.msra.mxu0 0
    %1257 = vmatprep.mubr.bf16.mxu0 0
    %1258 = vmatmul.mubr.bf16.gmra.mrb[0].mxu0 %v1223
    %v1259 = vpop.f32.mrb[0].mxu0
    %v1260 = vadd.f32 %v1196, %v1259
    %v1261 = vpop.f32.mrb[0].mxu0
    %v1262 = vpop.f32.mrb[0].mxu0
    %v1263 = vadd.f32 %v1196, %v1262
    %v1264 = vpop.f32.mrb[0].mxu0
    %1265 = vdwg.mxu0
    %v1266 = vadd.f32 %v1260, %v1099
    %v1267 = vadd.f32 %v1263, %v1100
    %v1268 = vsel %vm44, %v1266, 0.0
    %1269 = vadd.xlane.f32.xlu0 %v1268
    %v1270 = vpop.xlane.xlu0 %1269
    %v1271 = vsel %vm44, %v1267, 0.0
    %1272 = vadd.xlane.f32.xlu0 %v1271
    %v1273 = vpop.xlane.xlu0 %1272
    %v1274 = vmul.f32 %v1270, %v51
    %v1275 = vmul.f32 %v1273, %v51
    %v1276 = vsub.f32 %v1266, %v1274
    %v1277 = vsub.f32 %v1267, %v1275
    %v1278 = vmul.f32 %v1276, %v1276
    %v1279 = vmul.f32 %v1277, %v1277
    %v1280 = vsel %vm44, %v1278, 0.0
    %1281 = vadd.xlane.f32.xlu0 %v1280
    %v1282 = vpop.xlane.xlu0 %1281
    %v1283 = vsel %vm44, %v1279, 0.0
    %1284 = vadd.xlane.f32.xlu0 %v1283
    %v1285 = vpop.xlane.xlu0 %1284
    %v1286 = vmul.f32 %v1282, %v51
    %v1287 = vmul.f32 %v1285, %v51
    %v1288 = vadd.f32 %v1286, 1e-12
    %v1289 = vadd.f32 %v1287, 1e-12
    %v1290 = vrsqrt.pop %v1288
    %v1291 = vrsqrt.pop %v1289
    %v1292 = vmul.f32 %v1276, %v1290
    %v1293 = vmul.f32 %v1277, %v1291
    %v1294 = vlaneseq
    %v1295 = vshrl.u32 %v1294, 7
    %v1296 = vsub.s32 0, %v1295
    %v1297 = vrot.slane %v40, %v1296
    %v1298 = vmul.f32 %v1292, %v1297
    %v1299 = vmul.f32 %v1293, %v1297
    %v1300 = vlaneseq
    %v1301 = vshrl.u32 %v1300, 7
    %v1302 = vsub.s32 1, %v1301
    %v1303 = vrot.slane %v40, %v1302
    %v1304 = vadd.f32 %v1298, %v1303
    %v1305 = vadd.f32 %v1299, %v1303
    %s1306 = scalar_lea.vmem %s4, 16
    %v1307 = vld [vmem:[%s1306] sm:$0xf]
    %v1308 = vld [vmem:[%s1306 + $0x4] sm:$0xf]
    %v1309 = vld [vmem:[%s1306 + $0x8] sm:$0xf]
    %v1310 = vld [vmem:[%s1306 + $0xc] sm:$0xf]
    %v1311 = vpack.c.bf16 %v1305, %v1304
    %v1312 = vlaneseq
    %v1313 = vshrl.u32 %v1312, 7
    %v1314 = vsub.s32 2, %v1313
    %v1315 = vrot.slane %v40, %v1314
    %v1320 = vunpack.c.l.b16 %v1307
    %v1321 = vunpack.c.l.b16 %v1308
    %v1322 = vunpack.c.l.b16 %v1309
    %v1323 = vunpack.c.l.b16 %v1310
    %v1324 = vpack.c.b16 %v1321, %v1320
    %v1325 = vpack.c.b16 %v1323, %v1322
    %v1329 = vsel %vm44, %v1311, 0
    %1331 = vmatprep.subr.bf16.mxu0 0
    %1332 = vmatpush1.bf16.msra.mxu0 %v1324
    %1333 = vmatprep.subr.bf16.mxu0 0
    %1334 = vmatpush1.bf16.msra.mxu0 %v1325
    %1335 = vmatprep.subr.bf16.mxu0 0
    %1336 = vmatpush1.bf16.msra.mxu0 0
    %1337 = vmatprep.subr.bf16.mxu0 0
    %1338 = vmatpush1.bf16.msra.mxu0 0
    %1339 = vmatprep.subr.bf16.mxu0 0
    %1340 = vmatpush1.bf16.msra.mxu0 0
    %1341 = vmatprep.subr.bf16.mxu0 0
    %1342 = vmatpush1.bf16.msra.mxu0 0
    %1343 = vmatprep.subr.bf16.mxu0 0
    %1344 = vmatpush1.bf16.msra.mxu0 0
    %1345 = vmatprep.subr.bf16.mxu0 0
    %1346 = vmatpush1.bf16.msra.mxu0 0
    %1347 = vmatprep.subr.bf16.mxu0 0
    %1348 = vmatpush1.bf16.msra.mxu0 0
    %1349 = vmatprep.subr.bf16.mxu0 0
    %1350 = vmatpush1.bf16.msra.mxu0 0
    %1351 = vmatprep.subr.bf16.mxu0 0
    %1352 = vmatpush1.bf16.msra.mxu0 0
    %1353 = vmatprep.subr.bf16.mxu0 0
    %1354 = vmatpush1.bf16.msra.mxu0 0
    %1355 = vmatprep.subr.bf16.mxu0 0
    %1356 = vmatpush1.bf16.msra.mxu0 0
    %1357 = vmatprep.subr.bf16.mxu0 0
    %1358 = vmatpush1.bf16.msra.mxu0 0
    %1359 = vmatprep.subr.bf16.mxu0 0
    %1360 = vmatpush1.bf16.msra.mxu0 0
    %1361 = vmatprep.subr.bf16.mxu0 0
    %1362 = vmatpush1.bf16.msra.mxu0 0
    %1363 = vmatprep.mubr.bf16.mxu0 0
    %1364 = vmatmul.mubr.bf16.gmra.mrb[0].mxu0 %v1329
    %v1365 = vpop.f32.mrb[0].mxu0
    %v1366 = vadd.f32 %v1315, %v1365
    %v1367 = vpop.f32.mrb[0].mxu0
    %v1368 = vpop.f32.mrb[0].mxu0
    %v1369 = vadd.f32 %v1315, %v1368
    %v1370 = vpop.f32.mrb[0].mxu0
    %1371 = vdwg.mxu0
    %1374 = vrot.lane.b32.xlu0 %v1366, 96
    %v1375 = vpop.permute.xlu0 %1374
    %1376 = vrot.lane.b32.xlu0 %v1369, 96
    %v1377 = vpop.permute.xlu0 %1376
    %v1378 = vsel %vm155, %v1366, 0
    %v1380 = vsel %vm155, %v1369, 0
    %v1382 = vsel %vm155, %v1375, 0
    %v1384 = vsel %vm155, %v1377, 0
    %1386 = vmatprep.subr.mxu0 0.0
    %1387 = vmatpush1.xpose.msra.mxu0 %v1382
    %1388 = vmatprep.subr.mxu0 0.0
    %1389 = vmatpush1.xpose.msra.mxu0 %v1384
    %1390 = vmatprep.subr.mxu0 0.0
    %1391 = vmatpush1.xpose.msra.mxu0 0.0
    %1392 = vmatprep.subr.mxu0 0.0
    %1393 = vmatpush1.xpose.msra.mxu0 0.0
    %1394 = vmatprep.subr.mxu0 0.0
    %1395 = vmatpush1.xpose.msra.mxu0 0.0
    %1396 = vmatprep.subr.mxu0 0.0
    %1397 = vmatpush1.xpose.msra.mxu0 0.0
    %1398 = vmatprep.subr.mxu0 0.0
    %1399 = vmatpush1.xpose.msra.mxu0 0.0
    %1400 = vmatprep.subr.mxu0 0.0
    %1401 = vmatpush1.xpose.msra.mxu0 0.0
    %1402 = vmatprep.subr.mxu0 0.0
    %1403 = vmatpush1.xpose.msra.mxu0 0.0
    %1404 = vmatprep.subr.mxu0 0.0
    %1405 = vmatpush1.xpose.msra.mxu0 0.0
    %1406 = vmatprep.subr.mxu0 0.0
    %1407 = vmatpush1.xpose.msra.mxu0 0.0
    %1408 = vmatprep.subr.mxu0 0.0
    %1409 = vmatpush1.xpose.msra.mxu0 0.0
    %1410 = vmatprep.subr.mxu0 0.0
    %1411 = vmatpush1.xpose.msra.mxu0 0.0
    %1412 = vmatprep.subr.mxu0 0.0
    %1413 = vmatpush1.xpose.msra.mxu0 0.0
    %1414 = vmatprep.subr.mxu0 0.0
    %1415 = vmatpush1.xpose.msra.mxu0 0.0
    %1416 = vmatprep.subr.mxu0 0.0
    %1417 = vmatpush1.xpose.msra.mxu0 0.0
    %1418 = vmatprep.subr.mxu0 0.0
    %1419 = vmatpush1.xpose.msra.mxu0 0.0
    %1420 = vmatprep.subr.mxu0 0.0
    %1421 = vmatpush1.xpose.msra.mxu0 0.0
    %1422 = vmatprep.subr.mxu0 0.0
    %1423 = vmatpush1.xpose.msra.mxu0 0.0
    %1424 = vmatprep.subr.mxu0 0.0
    %1425 = vmatpush1.xpose.msra.mxu0 0.0
    %1426 = vmatprep.subr.mxu0 0.0
    %1427 = vmatpush1.xpose.msra.mxu0 0.0
    %1428 = vmatprep.subr.mxu0 0.0
    %1429 = vmatpush1.xpose.msra.mxu0 0.0
    %1430 = vmatprep.subr.mxu0 0.0
    %1431 = vmatpush1.xpose.msra.mxu0 0.0
    %1432 = vmatprep.subr.mxu0 0.0
    %1433 = vmatpush1.xpose.msra.mxu0 0.0
    %1434 = vmatprep.subr.mxu0 0.0
    %1435 = vmatpush1.xpose.msra.mxu0 0.0
    %1436 = vmatprep.subr.mxu0 0.0
    %1437 = vmatpush1.xpose.msra.mxu0 0.0
    %1438 = vmatprep.subr.mxu0 0.0
    %1439 = vmatpush1.xpose.msra.mxu0 0.0
    %1440 = vmatprep.subr.mxu0 0.0
    %1441 = vmatpush1.xpose.msra.mxu0 0.0
    %1442 = vmatprep.subr.mxu0 0.0
    %1443 = vmatpush1.xpose.msra.mxu0 0.0
    %1444 = vmatprep.subr.mxu0 0.0
    %1445 = vmatpush1.xpose.msra.mxu0 0.0
    %1446 = vmatprep.subr.mxu0 0.0
    %1447 = vmatpush1.xpose.msra.mxu0 0.0
    %1448 = vmatprep.subr.mxu0 0.0
    %1449 = vmatpush1.xpose.msra.mxu0 0.0
    %1450 = vmatprep.mubr.f32.mxu0 0.0
    %1451 = vmatmul.mubr.f32.gmra.mrb[0].mxu0 %v1378
    %v1452 = vpop.f32.mrb[0].mxu0
    %v1453 = vadd.f32 0.0, %v1452
    %v1454 = vpop.f32.mrb[0].mxu0
    %1455 = vmatprep.mubr.f32.mxu0 0.0
    %1456 = vmatmul.mubr.f32.gmra.mrb[0].mxu0 %v1380
    %v1457 = vpop.f32.mrb[0].mxu0
    %v1458 = vadd.f32 0.0, %v1457
    %v1459 = vpop.f32.mrb[0].mxu0
    %1460 = vdwg.mxu0
    %v1461 = vmul.f32 %v1453, 0.35355338
    %v1462 = vmul.f32 %v1458, 0.35355338
    %v1463 = vadd.f32 %v1461, %v37
    %v1464 = vadd.f32 %v1462, %v38
    %1465 = vrot.lane.b32.xlu0 %v1366, 120
    %v1466 = vpop.permute.xlu0 %1465
    %1467 = vrot.lane.b32.xlu0 %v1369, 120
    %v1468 = vpop.permute.xlu0 %1467
    %1469 = vrot.lane.b32.xlu0 %v1366, 88
    %v1470 = vpop.permute.xlu0 %1469
    %1471 = vrot.lane.b32.xlu0 %v1369, 88
    %v1472 = vpop.permute.xlu0 %1471
    %v1473 = vsel %vm155, %v1466, 0
    %v1475 = vsel %vm155, %v1468, 0
    %v1477 = vsel %vm155, %v1470, 0
    %v1479 = vsel %vm155, %v1472, 0
    %1481 = vmatprep.subr.mxu0 0.0
    %1482 = vmatpush1.xpose.msra.mxu0 %v1477
    %1483 = vmatprep.subr.mxu0 0.0
    %1484 = vmatpush1.xpose.msra.mxu0 %v1479
    %1485 = vmatprep.subr.mxu0 0.0
    %1486 = vmatpush1.xpose.msra.mxu0 0.0
    %1487 = vmatprep.subr.mxu0 0.0
    %1488 = vmatpush1.xpose.msra.mxu0 0.0
    %1489 = vmatprep.subr.mxu0 0.0
    %1490 = vmatpush1.xpose.msra.mxu0 0.0
    %1491 = vmatprep.subr.mxu0 0.0
    %1492 = vmatpush1.xpose.msra.mxu0 0.0
    %1493 = vmatprep.subr.mxu0 0.0
    %1494 = vmatpush1.xpose.msra.mxu0 0.0
    %1495 = vmatprep.subr.mxu0 0.0
    %1496 = vmatpush1.xpose.msra.mxu0 0.0
    %1497 = vmatprep.subr.mxu0 0.0
    %1498 = vmatpush1.xpose.msra.mxu0 0.0
    %1499 = vmatprep.subr.mxu0 0.0
    %1500 = vmatpush1.xpose.msra.mxu0 0.0
    %1501 = vmatprep.subr.mxu0 0.0
    %1502 = vmatpush1.xpose.msra.mxu0 0.0
    %1503 = vmatprep.subr.mxu0 0.0
    %1504 = vmatpush1.xpose.msra.mxu0 0.0
    %1505 = vmatprep.subr.mxu0 0.0
    %1506 = vmatpush1.xpose.msra.mxu0 0.0
    %1507 = vmatprep.subr.mxu0 0.0
    %1508 = vmatpush1.xpose.msra.mxu0 0.0
    %1509 = vmatprep.subr.mxu0 0.0
    %1510 = vmatpush1.xpose.msra.mxu0 0.0
    %1511 = vmatprep.subr.mxu0 0.0
    %1512 = vmatpush1.xpose.msra.mxu0 0.0
    %1513 = vmatprep.subr.mxu0 0.0
    %1514 = vmatpush1.xpose.msra.mxu0 0.0
    %1515 = vmatprep.subr.mxu0 0.0
    %1516 = vmatpush1.xpose.msra.mxu0 0.0
    %1517 = vmatprep.subr.mxu0 0.0
    %1518 = vmatpush1.xpose.msra.mxu0 0.0
    %1519 = vmatprep.subr.mxu0 0.0
    %1520 = vmatpush1.xpose.msra.mxu0 0.0
    %1521 = vmatprep.subr.mxu0 0.0
    %1522 = vmatpush1.xpose.msra.mxu0 0.0
    %1523 = vmatprep.subr.mxu0 0.0
    %1524 = vmatpush1.xpose.msra.mxu0 0.0
    %1525 = vmatprep.subr.mxu0 0.0
    %1526 = vmatpush1.xpose.msra.mxu0 0.0
    %1527 = vmatprep.subr.mxu0 0.0
    %1528 = vmatpush1.xpose.msra.mxu0 0.0
    %1529 = vmatprep.subr.mxu0 0.0
    %1530 = vmatpush1.xpose.msra.mxu0 0.0
    %1531 = vmatprep.subr.mxu0 0.0
    %1532 = vmatpush1.xpose.msra.mxu0 0.0
    %1533 = vmatprep.subr.mxu0 0.0
    %1534 = vmatpush1.xpose.msra.mxu0 0.0
    %1535 = vmatprep.subr.mxu0 0.0
    %1536 = vmatpush1.xpose.msra.mxu0 0.0
    %1537 = vmatprep.subr.mxu0 0.0
    %1538 = vmatpush1.xpose.msra.mxu0 0.0
    %1539 = vmatprep.subr.mxu0 0.0
    %1540 = vmatpush1.xpose.msra.mxu0 0.0
    %1541 = vmatprep.subr.mxu0 0.0
    %1542 = vmatpush1.xpose.msra.mxu0 0.0
    %1543 = vmatprep.subr.mxu0 0.0
    %1544 = vmatpush1.xpose.msra.mxu0 0.0
    %1545 = vmatprep.mubr.f32.mxu0 0.0
    %1546 = vmatmul.mubr.f32.gmra.mrb[0].mxu0 %v1473
    %v1547 = vpop.f32.mrb[0].mxu0
    %v1548 = vadd.f32 0.0, %v1547
    %v1549 = vpop.f32.mrb[0].mxu0
    %1550 = vmatprep.mubr.f32.mxu0 0.0
    %1551 = vmatmul.mubr.f32.gmra.mrb[0].mxu0 %v1475
    %v1552 = vpop.f32.mrb[0].mxu0
    %v1553 = vadd.f32 0.0, %v1552
    %v1554 = vpop.f32.mrb[0].mxu0
    %1555 = vdwg.mxu0
    %v1556 = vmul.f32 %v1548, 0.35355338
    %v1557 = vmul.f32 %v1553, 0.35355338
    %v1558 = vadd.f32 %v1556, %v37
    %v1559 = vadd.f32 %v1557, %v38
    %1560 = vrot.lane.b32.xlu0 %v1366, 112
    %v1561 = vpop.permute.xlu0 %1560
    %1562 = vrot.lane.b32.xlu0 %v1369, 112
    %v1563 = vpop.permute.xlu0 %1562
    %1564 = vrot.lane.b32.xlu0 %v1366, 80
    %v1565 = vpop.permute.xlu0 %1564
    %1566 = vrot.lane.b32.xlu0 %v1369, 80
    %v1567 = vpop.permute.xlu0 %1566
    %v1568 = vsel %vm155, %v1561, 0
    %v1570 = vsel %vm155, %v1563, 0
    %v1572 = vsel %vm155, %v1565, 0
    %v1574 = vsel %vm155, %v1567, 0
    %1576 = vmatprep.subr.mxu0 0.0
    %1577 = vmatpush1.xpose.msra.mxu0 %v1572
    %1578 = vmatprep.subr.mxu0 0.0
    %1579 = vmatpush1.xpose.msra.mxu0 %v1574
    %1580 = vmatprep.subr.mxu0 0.0
    %1581 = vmatpush1.xpose.msra.mxu0 0.0
    %1582 = vmatprep.subr.mxu0 0.0
    %1583 = vmatpush1.xpose.msra.mxu0 0.0
    %1584 = vmatprep.subr.mxu0 0.0
    %1585 = vmatpush1.xpose.msra.mxu0 0.0
    %1586 = vmatprep.subr.mxu0 0.0
    %1587 = vmatpush1.xpose.msra.mxu0 0.0
    %1588 = vmatprep.subr.mxu0 0.0
    %1589 = vmatpush1.xpose.msra.mxu0 0.0
    %1590 = vmatprep.subr.mxu0 0.0
    %1591 = vmatpush1.xpose.msra.mxu0 0.0
    %1592 = vmatprep.subr.mxu0 0.0
    %1593 = vmatpush1.xpose.msra.mxu0 0.0
    %1594 = vmatprep.subr.mxu0 0.0
    %1595 = vmatpush1.xpose.msra.mxu0 0.0
    %1596 = vmatprep.subr.mxu0 0.0
    %1597 = vmatpush1.xpose.msra.mxu0 0.0
    %1598 = vmatprep.subr.mxu0 0.0
    %1599 = vmatpush1.xpose.msra.mxu0 0.0
    %1600 = vmatprep.subr.mxu0 0.0
    %1601 = vmatpush1.xpose.msra.mxu0 0.0
    %1602 = vmatprep.subr.mxu0 0.0
    %1603 = vmatpush1.xpose.msra.mxu0 0.0
    %1604 = vmatprep.subr.mxu0 0.0
    %1605 = vmatpush1.xpose.msra.mxu0 0.0
    %1606 = vmatprep.subr.mxu0 0.0
    %1607 = vmatpush1.xpose.msra.mxu0 0.0
    %1608 = vmatprep.subr.mxu0 0.0
    %1609 = vmatpush1.xpose.msra.mxu0 0.0
    %1610 = vmatprep.subr.mxu0 0.0
    %1611 = vmatpush1.xpose.msra.mxu0 0.0
    %1612 = vmatprep.subr.mxu0 0.0
    %1613 = vmatpush1.xpose.msra.mxu0 0.0
    %1614 = vmatprep.subr.mxu0 0.0
    %1615 = vmatpush1.xpose.msra.mxu0 0.0
    %1616 = vmatprep.subr.mxu0 0.0
    %1617 = vmatpush1.xpose.msra.mxu0 0.0
    %1618 = vmatprep.subr.mxu0 0.0
    %1619 = vmatpush1.xpose.msra.mxu0 0.0
    %1620 = vmatprep.subr.mxu0 0.0
    %1621 = vmatpush1.xpose.msra.mxu0 0.0
    %1622 = vmatprep.subr.mxu0 0.0
    %1623 = vmatpush1.xpose.msra.mxu0 0.0
    %1624 = vmatprep.subr.mxu0 0.0
    %1625 = vmatpush1.xpose.msra.mxu0 0.0
    %1626 = vmatprep.subr.mxu0 0.0
    %1627 = vmatpush1.xpose.msra.mxu0 0.0
    %1628 = vmatprep.subr.mxu0 0.0
    %1629 = vmatpush1.xpose.msra.mxu0 0.0
    %1630 = vmatprep.subr.mxu0 0.0
    %1631 = vmatpush1.xpose.msra.mxu0 0.0
    %1632 = vmatprep.subr.mxu0 0.0
    %1633 = vmatpush1.xpose.msra.mxu0 0.0
    %1634 = vmatprep.subr.mxu0 0.0
    %1635 = vmatpush1.xpose.msra.mxu0 0.0
    %1636 = vmatprep.subr.mxu0 0.0
    %1637 = vmatpush1.xpose.msra.mxu0 0.0
    %1638 = vmatprep.subr.mxu0 0.0
    %1639 = vmatpush1.xpose.msra.mxu0 0.0
    %1640 = vmatprep.mubr.f32.mxu0 0.0
    %1641 = vmatmul.mubr.f32.gmra.mrb[0].mxu0 %v1568
    %v1642 = vpop.f32.mrb[0].mxu0
    %v1643 = vadd.f32 0.0, %v1642
    %v1644 = vpop.f32.mrb[0].mxu0
    %1645 = vmatprep.mubr.f32.mxu0 0.0
    %1646 = vmatmul.mubr.f32.gmra.mrb[0].mxu0 %v1570
    %v1647 = vpop.f32.mrb[0].mxu0
    %v1648 = vadd.f32 0.0, %v1647
    %v1649 = vpop.f32.mrb[0].mxu0
    %1650 = vdwg.mxu0
    %v1651 = vmul.f32 %v1643, 0.35355338
    %v1652 = vmul.f32 %v1648, 0.35355338
    %v1653 = vadd.f32 %v1651, %v37
    %v1654 = vadd.f32 %v1652, %v38
    %1655 = vrot.lane.b32.xlu0 %v1366, 104
    %v1656 = vpop.permute.xlu0 %1655
    %1657 = vrot.lane.b32.xlu0 %v1369, 104
    %v1658 = vpop.permute.xlu0 %1657
    %1659 = vrot.lane.b32.xlu0 %v1366, 72
    %v1660 = vpop.permute.xlu0 %1659
    %1661 = vrot.lane.b32.xlu0 %v1369, 72
    %v1662 = vpop.permute.xlu0 %1661
    %v1663 = vsel %vm155, %v1656, 0
    %v1665 = vsel %vm155, %v1658, 0
    %v1667 = vsel %vm155, %v1660, 0
    %v1669 = vsel %vm155, %v1662, 0
    %1671 = vmatprep.subr.mxu0 0.0
    %1672 = vmatpush1.xpose.msra.mxu0 %v1667
    %1673 = vmatprep.subr.mxu0 0.0
    %1674 = vmatpush1.xpose.msra.mxu0 %v1669
    %1675 = vmatprep.subr.mxu0 0.0
    %1676 = vmatpush1.xpose.msra.mxu0 0.0
    %1677 = vmatprep.subr.mxu0 0.0
    %1678 = vmatpush1.xpose.msra.mxu0 0.0
    %1679 = vmatprep.subr.mxu0 0.0
    %1680 = vmatpush1.xpose.msra.mxu0 0.0
    %1681 = vmatprep.subr.mxu0 0.0
    %1682 = vmatpush1.xpose.msra.mxu0 0.0
    %1683 = vmatprep.subr.mxu0 0.0
    %1684 = vmatpush1.xpose.msra.mxu0 0.0
    %1685 = vmatprep.subr.mxu0 0.0
    %1686 = vmatpush1.xpose.msra.mxu0 0.0
    %1687 = vmatprep.subr.mxu0 0.0
    %1688 = vmatpush1.xpose.msra.mxu0 0.0
    %1689 = vmatprep.subr.mxu0 0.0
    %1690 = vmatpush1.xpose.msra.mxu0 0.0
    %1691 = vmatprep.subr.mxu0 0.0
    %1692 = vmatpush1.xpose.msra.mxu0 0.0
    %1693 = vmatprep.subr.mxu0 0.0
    %1694 = vmatpush1.xpose.msra.mxu0 0.0
    %1695 = vmatprep.subr.mxu0 0.0
    %1696 = vmatpush1.xpose.msra.mxu0 0.0
    %1697 = vmatprep.subr.mxu0 0.0
    %1698 = vmatpush1.xpose.msra.mxu0 0.0
    %1699 = vmatprep.subr.mxu0 0.0
    %1700 = vmatpush1.xpose.msra.mxu0 0.0
    %1701 = vmatprep.subr.mxu0 0.0
    %1702 = vmatpush1.xpose.msra.mxu0 0.0
    %1703 = vmatprep.subr.mxu0 0.0
    %1704 = vmatpush1.xpose.msra.mxu0 0.0
    %1705 = vmatprep.subr.mxu0 0.0
    %1706 = vmatpush1.xpose.msra.mxu0 0.0
    %1707 = vmatprep.subr.mxu0 0.0
    %1708 = vmatpush1.xpose.msra.mxu0 0.0
    %1709 = vmatprep.subr.mxu0 0.0
    %1710 = vmatpush1.xpose.msra.mxu0 0.0
    %1711 = vmatprep.subr.mxu0 0.0
    %1712 = vmatpush1.xpose.msra.mxu0 0.0
    %1713 = vmatprep.subr.mxu0 0.0
    %1714 = vmatpush1.xpose.msra.mxu0 0.0
    %1715 = vmatprep.subr.mxu0 0.0
    %1716 = vmatpush1.xpose.msra.mxu0 0.0
    %1717 = vmatprep.subr.mxu0 0.0
    %1718 = vmatpush1.xpose.msra.mxu0 0.0
    %1719 = vmatprep.subr.mxu0 0.0
    %1720 = vmatpush1.xpose.msra.mxu0 0.0
    %1721 = vmatprep.subr.mxu0 0.0
    %1722 = vmatpush1.xpose.msra.mxu0 0.0
    %1723 = vmatprep.subr.mxu0 0.0
    %1724 = vmatpush1.xpose.msra.mxu0 0.0
    %1725 = vmatprep.subr.mxu0 0.0
    %1726 = vmatpush1.xpose.msra.mxu0 0.0
    %1727 = vmatprep.subr.mxu0 0.0
    %1728 = vmatpush1.xpose.msra.mxu0 0.0
    %1729 = vmatprep.subr.mxu0 0.0
    %1730 = vmatpush1.xpose.msra.mxu0 0.0
    %1731 = vmatprep.subr.mxu0 0.0
    %1732 = vmatpush1.xpose.msra.mxu0 0.0
    %1733 = vmatprep.subr.mxu0 0.0
    %1734 = vmatpush1.xpose.msra.mxu0 0.0
    %1735 = vmatprep.mubr.f32.mxu0 0.0
    %1736 = vmatmul.mubr.f32.gmra.mrb[0].mxu0 %v1663
    %v1737 = vpop.f32.mrb[0].mxu0
    %v1738 = vadd.f32 0.0, %v1737
    %v1739 = vpop.f32.mrb[0].mxu0
    %1740 = vmatprep.mubr.f32.mxu0 0.0
    %1741 = vmatmul.mubr.f32.gmra.mrb[0].mxu0 %v1665
    %v1742 = vpop.f32.mrb[0].mxu0
    %v1743 = vadd.f32 0.0, %v1742
    %v1744 = vpop.f32.mrb[0].mxu0
    %1745 = vdwg.mxu0
    %v1746 = vmul.f32 %v1738, 0.35355338
    %v1747 = vmul.f32 %v1743, 0.35355338
    %v1748 = vadd.f32 %v1746, %v37
    %v1749 = vadd.f32 %v1747, %v38
    %v1750 = vsel %vm528, %v1463, -inf
    %1751 = vmax.xlane.f32.xlu0 %v1750
    %v1752 = vpop.xlane.xlu0 %1751
    %v1753 = vsel %vm528, %v1464, -inf
    %1754 = vmax.xlane.f32.xlu0 %v1753
    %v1755 = vpop.xlane.xlu0 %1754
    %v1756 = vsub.f32 %v1463, %v1752
    %v1757 = vsub.f32 %v1464, %v1755
    %v1758 = vmul.f32 %v1756, 1.442695
    %v1759 = vpow.pop %v1758
    %v1760 = vmul.f32 %v1757, 1.442695
    %v1761 = vpow.pop %v1760
    %v1762 = vsel %vm528, %v1759, 0.0
    %1763 = vadd.xlane.f32.xlu0 %v1762
    %v1764 = vpop.xlane.xlu0 %1763
    %v1765 = vsel %vm528, %v1761, 0.0
    %1766 = vadd.xlane.f32.xlu0 %v1765
    %v1767 = vpop.xlane.xlu0 %1766
    %v1768 = vrcp.pop %v1764
    %v1769 = vmul.f32 %v1759, %v1768
    %v1770 = vrcp.pop %v1767
    %v1771 = vmul.f32 %v1761, %v1770
    %v1772 = vsel %vm528, %v1558, -inf
    %1773 = vmax.xlane.f32.xlu0 %v1772
    %v1774 = vpop.xlane.xlu0 %1773
    %v1775 = vsel %vm528, %v1559, -inf
    %1776 = vmax.xlane.f32.xlu0 %v1775
    %v1777 = vpop.xlane.xlu0 %1776
    %v1778 = vsub.f32 %v1558, %v1774
    %v1779 = vsub.f32 %v1559, %v1777
    %v1780 = vmul.f32 %v1778, 1.442695
    %v1781 = vpow.pop %v1780
    %v1782 = vmul.f32 %v1779, 1.442695
    %v1783 = vpow.pop %v1782
    %v1784 = vsel %vm528, %v1781, 0.0
    %1785 = vadd.xlane.f32.xlu0 %v1784
    %v1786 = vpop.xlane.xlu0 %1785
    %v1787 = vsel %vm528, %v1783, 0.0
    %1788 = vadd.xlane.f32.xlu0 %v1787
    %v1789 = vpop.xlane.xlu0 %1788
    %v1790 = vrcp.pop %v1786
    %v1791 = vmul.f32 %v1781, %v1790
    %v1792 = vrcp.pop %v1789
    %v1793 = vmul.f32 %v1783, %v1792
    %v1794 = vsel %vm528, %v1653, -inf
    %1795 = vmax.xlane.f32.xlu0 %v1794
    %v1796 = vpop.xlane.xlu0 %1795
    %v1797 = vsel %vm528, %v1654, -inf
    %1798 = vmax.xlane.f32.xlu0 %v1797
    %v1799 = vpop.xlane.xlu0 %1798
    %v1800 = vsub.f32 %v1653, %v1796
    %v1801 = vsub.f32 %v1654, %v1799
    %v1802 = vmul.f32 %v1800, 1.442695
    %v1803 = vpow.pop %v1802
    %v1804 = vmul.f32 %v1801, 1.442695
    %v1805 = vpow.pop %v1804
    %v1806 = vsel %vm528, %v1803, 0.0
    %1807 = vadd.xlane.f32.xlu0 %v1806
    %v1808 = vpop.xlane.xlu0 %1807
    %v1809 = vsel %vm528, %v1805, 0.0
    %1810 = vadd.xlane.f32.xlu0 %v1809
    %v1811 = vpop.xlane.xlu0 %1810
    %v1812 = vrcp.pop %v1808
    %v1813 = vmul.f32 %v1803, %v1812
    %v1814 = vrcp.pop %v1811
    %v1815 = vmul.f32 %v1805, %v1814
    %v1816 = vsel %vm528, %v1748, -inf
    %1817 = vmax.xlane.f32.xlu0 %v1816
    %v1818 = vpop.xlane.xlu0 %1817
    %v1819 = vsel %vm528, %v1749, -inf
    %1820 = vmax.xlane.f32.xlu0 %v1819
    %v1821 = vpop.xlane.xlu0 %1820
    %v1822 = vsub.f32 %v1748, %v1818
    %v1823 = vsub.f32 %v1749, %v1821
    %v1824 = vmul.f32 %v1822, 1.442695
    %v1825 = vpow.pop %v1824
    %v1826 = vmul.f32 %v1823, 1.442695
    %v1827 = vpow.pop %v1826
    %v1828 = vsel %vm528, %v1825, 0.0
    %1829 = vadd.xlane.f32.xlu0 %v1828
    %v1830 = vpop.xlane.xlu0 %1829
    %v1831 = vsel %vm528, %v1827, 0.0
    %1832 = vadd.xlane.f32.xlu0 %v1831
    %v1833 = vpop.xlane.xlu0 %1832
    %v1834 = vrcp.pop %v1830
    %v1835 = vmul.f32 %v1825, %v1834
    %v1836 = vrcp.pop %v1833
    %v1837 = vmul.f32 %v1827, %v1836
    %1838 = vrot.lane.b32.xlu0 %v1366, 64
    %v1839 = vpop.permute.xlu0 %1838
    %1840 = vrot.lane.b32.xlu0 %v1369, 64
    %v1841 = vpop.permute.xlu0 %1840
    %v1845 = vsel %vm528, %v1769, 0
    %v1848 = vsel %vm528, %v1771, 0
    %1850 = vmatprep.subr.mxu0 0.0
    %1851 = vmatpush1.msra.mxu0 %v1839
    %1852 = vmatprep.subr.mxu0 0.0
    %1853 = vmatpush1.msra.mxu0 %v1841
    %1854 = vmatprep.subr.mxu0 0.0
    %1855 = vmatpush1.msra.mxu0 0.0
    %1856 = vmatprep.subr.mxu0 0.0
    %1857 = vmatpush1.msra.mxu0 0.0
    %1858 = vmatprep.subr.mxu0 0.0
    %1859 = vmatpush1.msra.mxu0 0.0
    %1860 = vmatprep.subr.mxu0 0.0
    %1861 = vmatpush1.msra.mxu0 0.0
    %1862 = vmatprep.subr.mxu0 0.0
    %1863 = vmatpush1.msra.mxu0 0.0
    %1864 = vmatprep.subr.mxu0 0.0
    %1865 = vmatpush1.msra.mxu0 0.0
    %1866 = vmatprep.subr.mxu0 0.0
    %1867 = vmatpush1.msra.mxu0 0.0
    %1868 = vmatprep.subr.mxu0 0.0
    %1869 = vmatpush1.msra.mxu0 0.0
    %1870 = vmatprep.subr.mxu0 0.0
    %1871 = vmatpush1.msra.mxu0 0.0
    %1872 = vmatprep.subr.mxu0 0.0
    %1873 = vmatpush1.msra.mxu0 0.0
    %1874 = vmatprep.subr.mxu0 0.0
    %1875 = vmatpush1.msra.mxu0 0.0
    %1876 = vmatprep.subr.mxu0 0.0
    %1877 = vmatpush1.msra.mxu0 0.0
    %1878 = vmatprep.subr.mxu0 0.0
    %1879 = vmatpush1.msra.mxu0 0.0
    %1880 = vmatprep.subr.mxu0 0.0
    %1881 = vmatpush1.msra.mxu0 0.0
    %1882 = vmatprep.subr.mxu0 0.0
    %1883 = vmatpush1.msra.mxu0 0.0
    %1884 = vmatprep.subr.mxu0 0.0
    %1885 = vmatpush1.msra.mxu0 0.0
    %1886 = vmatprep.subr.mxu0 0.0
    %1887 = vmatpush1.msra.mxu0 0.0
    %1888 = vmatprep.subr.mxu0 0.0
    %1889 = vmatpush1.msra.mxu0 0.0
    %1890 = vmatprep.subr.mxu0 0.0
    %1891 = vmatpush1.msra.mxu0 0.0
    %1892 = vmatprep.subr.mxu0 0.0
    %1893 = vmatpush1.msra.mxu0 0.0
    %1894 = vmatprep.subr.mxu0 0.0
    %1895 = vmatpush1.msra.mxu0 0.0
    %1896 = vmatprep.subr.mxu0 0.0
    %1897 = vmatpush1.msra.mxu0 0.0
    %1898 = vmatprep.subr.mxu0 0.0
    %1899 = vmatpush1.msra.mxu0 0.0
    %1900 = vmatprep.subr.mxu0 0.0
    %1901 = vmatpush1.msra.mxu0 0.0
    %1902 = vmatprep.subr.mxu0 0.0
    %1903 = vmatpush1.msra.mxu0 0.0
    %1904 = vmatprep.subr.mxu0 0.0
    %1905 = vmatpush1.msra.mxu0 0.0
    %1906 = vmatprep.subr.mxu0 0.0
    %1907 = vmatpush1.msra.mxu0 0.0
    %1908 = vmatprep.subr.mxu0 0.0
    %1909 = vmatpush1.msra.mxu0 0.0
    %1910 = vmatprep.subr.mxu0 0.0
    %1911 = vmatpush1.msra.mxu0 0.0
    %1912 = vmatprep.subr.mxu0 0.0
    %1913 = vmatpush1.msra.mxu0 0.0
    %1914 = vmatprep.mubr.f32.mxu0 0.0
    %1915 = vmatmul.mubr.f32.gmra.mrb[0].mxu0 %v1845
    %v1916 = vpop.f32.mrb[0].mxu0
    %v1917 = vadd.f32 0.0, %v1916
    %v1918 = vpop.f32.mrb[0].mxu0
    %1919 = vmatprep.mubr.f32.mxu0 0.0
    %1920 = vmatmul.mubr.f32.gmra.mrb[0].mxu0 %v1848
    %v1921 = vpop.f32.mrb[0].mxu0
    %v1922 = vadd.f32 0.0, %v1921
    %v1923 = vpop.f32.mrb[0].mxu0
    %1924 = vdwg.mxu0
    %1925 = vrot.lane.b32.xlu0 %v1366, 56
    %v1926 = vpop.permute.xlu0 %1925
    %1927 = vrot.lane.b32.xlu0 %v1369, 56
    %v1928 = vpop.permute.xlu0 %1927
    %v1932 = vsel %vm528, %v1791, 0
    %v1935 = vsel %vm528, %v1793, 0
    %1937 = vmatprep.subr.mxu0 0.0
    %1938 = vmatpush1.msra.mxu0 %v1926
    %1939 = vmatprep.subr.mxu0 0.0
    %1940 = vmatpush1.msra.mxu0 %v1928
    %1941 = vmatprep.subr.mxu0 0.0
    %1942 = vmatpush1.msra.mxu0 0.0
    %1943 = vmatprep.subr.mxu0 0.0
    %1944 = vmatpush1.msra.mxu0 0.0
    %1945 = vmatprep.subr.mxu0 0.0
    %1946 = vmatpush1.msra.mxu0 0.0
    %1947 = vmatprep.subr.mxu0 0.0
    %1948 = vmatpush1.msra.mxu0 0.0
    %1949 = vmatprep.subr.mxu0 0.0
    %1950 = vmatpush1.msra.mxu0 0.0
    %1951 = vmatprep.subr.mxu0 0.0
    %1952 = vmatpush1.msra.mxu0 0.0
    %1953 = vmatprep.subr.mxu0 0.0
    %1954 = vmatpush1.msra.mxu0 0.0
    %1955 = vmatprep.subr.mxu0 0.0
    %1956 = vmatpush1.msra.mxu0 0.0
    %1957 = vmatprep.subr.mxu0 0.0
    %1958 = vmatpush1.msra.mxu0 0.0
    %1959 = vmatprep.subr.mxu0 0.0
    %1960 = vmatpush1.msra.mxu0 0.0
    %1961 = vmatprep.subr.mxu0 0.0
    %1962 = vmatpush1.msra.mxu0 0.0
    %1963 = vmatprep.subr.mxu0 0.0
    %1964 = vmatpush1.msra.mxu0 0.0
    %1965 = vmatprep.subr.mxu0 0.0
    %1966 = vmatpush1.msra.mxu0 0.0
    %1967 = vmatprep.subr.mxu0 0.0
    %1968 = vmatpush1.msra.mxu0 0.0
    %1969 = vmatprep.subr.mxu0 0.0
    %1970 = vmatpush1.msra.mxu0 0.0
    %1971 = vmatprep.subr.mxu0 0.0
    %1972 = vmatpush1.msra.mxu0 0.0
    %1973 = vmatprep.subr.mxu0 0.0
    %1974 = vmatpush1.msra.mxu0 0.0
    %1975 = vmatprep.subr.mxu0 0.0
    %1976 = vmatpush1.msra.mxu0 0.0
    %1977 = vmatprep.subr.mxu0 0.0
    %1978 = vmatpush1.msra.mxu0 0.0
    %1979 = vmatprep.subr.mxu0 0.0
    %1980 = vmatpush1.msra.mxu0 0.0
    %1981 = vmatprep.subr.mxu0 0.0
    %1982 = vmatpush1.msra.mxu0 0.0
    %1983 = vmatprep.subr.mxu0 0.0
    %1984 = vmatpush1.msra.mxu0 0.0
    %1985 = vmatprep.subr.mxu0 0.0
    %1986 = vmatpush1.msra.mxu0 0.0
    %1987 = vmatprep.subr.mxu0 0.0
    %1988 = vmatpush1.msra.mxu0 0.0
    %1989 = vmatprep.subr.mxu0 0.0
    %1990 = vmatpush1.msra.mxu0 0.0
    %1991 = vmatprep.subr.mxu0 0.0
    %1992 = vmatpush1.msra.mxu0 0.0
    %1993 = vmatprep.subr.mxu0 0.0
    %1994 = vmatpush1.msra.mxu0 0.0
    %1995 = vmatprep.subr.mxu0 0.0
    %1996 = vmatpush1.msra.mxu0 0.0
    %1997 = vmatprep.subr.mxu0 0.0
    %1998 = vmatpush1.msra.mxu0 0.0
    %1999 = vmatprep.subr.mxu0 0.0
    %2000 = vmatpush1.msra.mxu0 0.0
    %2001 = vmatprep.mubr.f32.mxu0 0.0
    %2002 = vmatmul.mubr.f32.gmra.mrb[0].mxu0 %v1932
    %v2003 = vpop.f32.mrb[0].mxu0
    %v2004 = vadd.f32 0.0, %v2003
    %v2005 = vpop.f32.mrb[0].mxu0
    %2006 = vmatprep.mubr.f32.mxu0 0.0
    %2007 = vmatmul.mubr.f32.gmra.mrb[0].mxu0 %v1935
    %v2008 = vpop.f32.mrb[0].mxu0
    %v2009 = vadd.f32 0.0, %v2008
    %v2010 = vpop.f32.mrb[0].mxu0
    %2011 = vdwg.mxu0
    %2012 = vrot.lane.b32.xlu0 %v1366, 48
    %v2013 = vpop.permute.xlu0 %2012
    %2014 = vrot.lane.b32.xlu0 %v1369, 48
    %v2015 = vpop.permute.xlu0 %2014
    %v2019 = vsel %vm528, %v1813, 0
    %v2022 = vsel %vm528, %v1815, 0
    %2024 = vmatprep.subr.mxu0 0.0
    %2025 = vmatpush1.msra.mxu0 %v2013
    %2026 = vmatprep.subr.mxu0 0.0
    %2027 = vmatpush1.msra.mxu0 %v2015
    %2028 = vmatprep.subr.mxu0 0.0
    %2029 = vmatpush1.msra.mxu0 0.0
    %2030 = vmatprep.subr.mxu0 0.0
    %2031 = vmatpush1.msra.mxu0 0.0
    %2032 = vmatprep.subr.mxu0 0.0
    %2033 = vmatpush1.msra.mxu0 0.0
    %2034 = vmatprep.subr.mxu0 0.0
    %2035 = vmatpush1.msra.mxu0 0.0
    %2036 = vmatprep.subr.mxu0 0.0
    %2037 = vmatpush1.msra.mxu0 0.0
    %2038 = vmatprep.subr.mxu0 0.0
    %2039 = vmatpush1.msra.mxu0 0.0
    %2040 = vmatprep.subr.mxu0 0.0
    %2041 = vmatpush1.msra.mxu0 0.0
    %2042 = vmatprep.subr.mxu0 0.0
    %2043 = vmatpush1.msra.mxu0 0.0
    %2044 = vmatprep.subr.mxu0 0.0
    %2045 = vmatpush1.msra.mxu0 0.0
    %2046 = vmatprep.subr.mxu0 0.0
    %2047 = vmatpush1.msra.mxu0 0.0
    %2048 = vmatprep.subr.mxu0 0.0
    %2049 = vmatpush1.msra.mxu0 0.0
    %2050 = vmatprep.subr.mxu0 0.0
    %2051 = vmatpush1.msra.mxu0 0.0
    %2052 = vmatprep.subr.mxu0 0.0
    %2053 = vmatpush1.msra.mxu0 0.0
    %2054 = vmatprep.subr.mxu0 0.0
    %2055 = vmatpush1.msra.mxu0 0.0
    %2056 = vmatprep.subr.mxu0 0.0
    %2057 = vmatpush1.msra.mxu0 0.0
    %2058 = vmatprep.subr.mxu0 0.0
    %2059 = vmatpush1.msra.mxu0 0.0
    %2060 = vmatprep.subr.mxu0 0.0
    %2061 = vmatpush1.msra.mxu0 0.0
    %2062 = vmatprep.subr.mxu0 0.0
    %2063 = vmatpush1.msra.mxu0 0.0
    %2064 = vmatprep.subr.mxu0 0.0
    %2065 = vmatpush1.msra.mxu0 0.0
    %2066 = vmatprep.subr.mxu0 0.0
    %2067 = vmatpush1.msra.mxu0 0.0
    %2068 = vmatprep.subr.mxu0 0.0
    %2069 = vmatpush1.msra.mxu0 0.0
    %2070 = vmatprep.subr.mxu0 0.0
    %2071 = vmatpush1.msra.mxu0 0.0
    %2072 = vmatprep.subr.mxu0 0.0
    %2073 = vmatpush1.msra.mxu0 0.0
    %2074 = vmatprep.subr.mxu0 0.0
    %2075 = vmatpush1.msra.mxu0 0.0
    %2076 = vmatprep.subr.mxu0 0.0
    %2077 = vmatpush1.msra.mxu0 0.0
    %2078 = vmatprep.subr.mxu0 0.0
    %2079 = vmatpush1.msra.mxu0 0.0
    %2080 = vmatprep.subr.mxu0 0.0
    %2081 = vmatpush1.msra.mxu0 0.0
    %2082 = vmatprep.subr.mxu0 0.0
    %2083 = vmatpush1.msra.mxu0 0.0
    %2084 = vmatprep.subr.mxu0 0.0
    %2085 = vmatpush1.msra.mxu0 0.0
    %2086 = vmatprep.subr.mxu0 0.0
    %2087 = vmatpush1.msra.mxu0 0.0
    %2088 = vmatprep.mubr.f32.mxu0 0.0
    %2089 = vmatmul.mubr.f32.gmra.mrb[0].mxu0 %v2019
    %v2090 = vpop.f32.mrb[0].mxu0
    %v2091 = vadd.f32 0.0, %v2090
    %v2092 = vpop.f32.mrb[0].mxu0
    %2093 = vmatprep.mubr.f32.mxu0 0.0
    %2094 = vmatmul.mubr.f32.gmra.mrb[0].mxu0 %v2022
    %v2095 = vpop.f32.mrb[0].mxu0
    %v2096 = vadd.f32 0.0, %v2095
    %v2097 = vpop.f32.mrb[0].mxu0
    %2098 = vdwg.mxu0
    %2099 = vrot.lane.b32.xlu0 %v1366, 40
    %v2100 = vpop.permute.xlu0 %2099
    %2101 = vrot.lane.b32.xlu0 %v1369, 40
    %v2102 = vpop.permute.xlu0 %2101
    %v2106 = vsel %vm528, %v1835, 0
    %v2109 = vsel %vm528, %v1837, 0
    %2111 = vmatprep.subr.mxu0 0.0
    %2112 = vmatpush1.msra.mxu0 %v2100
    %2113 = vmatprep.subr.mxu0 0.0
    %2114 = vmatpush1.msra.mxu0 %v2102
    %2115 = vmatprep.subr.mxu0 0.0
    %2116 = vmatpush1.msra.mxu0 0.0
    %2117 = vmatprep.subr.mxu0 0.0
    %2118 = vmatpush1.msra.mxu0 0.0
    %2119 = vmatprep.subr.mxu0 0.0
    %2120 = vmatpush1.msra.mxu0 0.0
    %2121 = vmatprep.subr.mxu0 0.0
    %2122 = vmatpush1.msra.mxu0 0.0
    %2123 = vmatprep.subr.mxu0 0.0
    %2124 = vmatpush1.msra.mxu0 0.0
    %2125 = vmatprep.subr.mxu0 0.0
    %2126 = vmatpush1.msra.mxu0 0.0
    %2127 = vmatprep.subr.mxu0 0.0
    %2128 = vmatpush1.msra.mxu0 0.0
    %2129 = vmatprep.subr.mxu0 0.0
    %2130 = vmatpush1.msra.mxu0 0.0
    %2131 = vmatprep.subr.mxu0 0.0
    %2132 = vmatpush1.msra.mxu0 0.0
    %2133 = vmatprep.subr.mxu0 0.0
    %2134 = vmatpush1.msra.mxu0 0.0
    %2135 = vmatprep.subr.mxu0 0.0
    %2136 = vmatpush1.msra.mxu0 0.0
    %2137 = vmatprep.subr.mxu0 0.0
    %2138 = vmatpush1.msra.mxu0 0.0
    %2139 = vmatprep.subr.mxu0 0.0
    %2140 = vmatpush1.msra.mxu0 0.0
    %2141 = vmatprep.subr.mxu0 0.0
    %2142 = vmatpush1.msra.mxu0 0.0
    %2143 = vmatprep.subr.mxu0 0.0
    %2144 = vmatpush1.msra.mxu0 0.0
    %2145 = vmatprep.subr.mxu0 0.0
    %2146 = vmatpush1.msra.mxu0 0.0
    %2147 = vmatprep.subr.mxu0 0.0
    %2148 = vmatpush1.msra.mxu0 0.0
    %2149 = vmatprep.subr.mxu0 0.0
    %2150 = vmatpush1.msra.mxu0 0.0
    %2151 = vmatprep.subr.mxu0 0.0
    %2152 = vmatpush1.msra.mxu0 0.0
    %2153 = vmatprep.subr.mxu0 0.0
    %2154 = vmatpush1.msra.mxu0 0.0
    %2155 = vmatprep.subr.mxu0 0.0
    %2156 = vmatpush1.msra.mxu0 0.0
    %2157 = vmatprep.subr.mxu0 0.0
    %2158 = vmatpush1.msra.mxu0 0.0
    %2159 = vmatprep.subr.mxu0 0.0
    %2160 = vmatpush1.msra.mxu0 0.0
    %2161 = vmatprep.subr.mxu0 0.0
    %2162 = vmatpush1.msra.mxu0 0.0
    %2163 = vmatprep.subr.mxu0 0.0
    %2164 = vmatpush1.msra.mxu0 0.0
    %2165 = vmatprep.subr.mxu0 0.0
    %2166 = vmatpush1.msra.mxu0 0.0
    %2167 = vmatprep.subr.mxu0 0.0
    %2168 = vmatpush1.msra.mxu0 0.0
    %2169 = vmatprep.subr.mxu0 0.0
    %2170 = vmatpush1.msra.mxu0 0.0
    %2171 = vmatprep.subr.mxu0 0.0
    %2172 = vmatpush1.msra.mxu0 0.0
    %2173 = vmatprep.subr.mxu0 0.0
    %2174 = vmatpush1.msra.mxu0 0.0
    %2175 = vmatprep.mubr.f32.mxu0 0.0
    %2176 = vmatmul.mubr.f32.gmra.mrb[0].mxu0 %v2106
    %v2177 = vpop.f32.mrb[0].mxu0
    %v2178 = vadd.f32 0.0, %v2177
    %v2179 = vpop.f32.mrb[0].mxu0
    %2180 = vmatprep.mubr.f32.mxu0 0.0
    %2181 = vmatmul.mubr.f32.gmra.mrb[0].mxu0 %v2109
    %v2182 = vpop.f32.mrb[0].mxu0
    %v2183 = vadd.f32 0.0, %v2182
    %v2184 = vpop.f32.mrb[0].mxu0
    %2185 = vdwg.mxu0
    %2188 = vrot.lane.b32.xlu0 %v2004, 8
    %v2189 = vpop.permute.xlu0 %2188
    %2190 = vrot.lane.b32.xlu0 %v2009, 8
    %v2191 = vpop.permute.xlu0 %2190
    %2196 = vrot.lane.b32.xlu0 %v2091, 16
    %v2197 = vpop.permute.xlu0 %2196
    %2198 = vrot.lane.b32.xlu0 %v2096, 16
    %v2199 = vpop.permute.xlu0 %2198
    %2204 = vrot.lane.b32.xlu0 %v2178, 24
    %v2205 = vpop.permute.xlu0 %2204
    %2206 = vrot.lane.b32.xlu0 %v2183, 24
    %v2207 = vpop.permute.xlu0 %2206
    %v2210 = vsel %vm155, %v1917, %v2189
    %v2211 = vsel %vm155, %v1922, %v2191
    %v2212 = vsel %vm528, %v2210, %v2197
    %v2213 = vsel %vm528, %v2211, %v2199
    %v2214 = vsel %vm993, %v2212, %v2205
    %v2215 = vsel %vm993, %v2213, %v2207
    %s2216 = scalar_lea.vmem %s5, 16
    %v2217 = vld [vmem:[%s2216] sm:$0xf]
    %v2218 = vld [vmem:[%s2216 + $0x4] sm:$0xf]
    %v2219 = vld [vmem:[%s2216 + $0x8] sm:$0xf]
    %v2220 = vld [vmem:[%s2216 + $0xc] sm:$0xf]
    %v2221 = vpack.c.bf16 %v2215, %v2214
    %v2222 = vlaneseq
    %v2223 = vshrl.u32 %v2222, 7
    %v2224 = vsub.s32 3, %v2223
    %v2225 = vrot.slane %v40, %v2224
    %v2230 = vunpack.c.l.b16 %v2217
    %v2231 = vunpack.c.l.b16 %v2218
    %v2232 = vunpack.c.l.b16 %v2219
    %v2233 = vunpack.c.l.b16 %v2220
    %v2234 = vpack.c.b16 %v2231, %v2230
    %v2235 = vpack.c.b16 %v2233, %v2232
    %v2239 = vsel %vm44, %v2221, 0
    %2241 = vmatprep.subr.bf16.mxu0 0
    %2242 = vmatpush1.bf16.msra.mxu0 %v2234
    %2243 = vmatprep.subr.bf16.mxu0 0
    %2244 = vmatpush1.bf16.msra.mxu0 %v2235
    %2245 = vmatprep.subr.bf16.mxu0 0
    %2246 = vmatpush1.bf16.msra.mxu0 0
    %2247 = vmatprep.subr.bf16.mxu0 0
    %2248 = vmatpush1.bf16.msra.mxu0 0
    %2249 = vmatprep.subr.bf16.mxu0 0
    %2250 = vmatpush1.bf16.msra.mxu0 0
    %2251 = vmatprep.subr.bf16.mxu0 0
    %2252 = vmatpush1.bf16.msra.mxu0 0
    %2253 = vmatprep.subr.bf16.mxu0 0
    %2254 = vmatpush1.bf16.msra.mxu0 0
    %2255 = vmatprep.subr.bf16.mxu0 0
    %2256 = vmatpush1.bf16.msra.mxu0 0
    %2257 = vmatprep.subr.bf16.mxu0 0
    %2258 = vmatpush1.bf16.msra.mxu0 0
    %2259 = vmatprep.subr.bf16.mxu0 0
    %2260 = vmatpush1.bf16.msra.mxu0 0
    %2261 = vmatprep.subr.bf16.mxu0 0
    %2262 = vmatpush1.bf16.msra.mxu0 0
    %2263 = vmatprep.subr.bf16.mxu0 0
    %2264 = vmatpush1.bf16.msra.mxu0 0
    %2265 = vmatprep.subr.bf16.mxu0 0
    %2266 = vmatpush1.bf16.msra.mxu0 0
    %2267 = vmatprep.subr.bf16.mxu0 0
    %2268 = vmatpush1.bf16.msra.mxu0 0
    %2269 = vmatprep.subr.bf16.mxu0 0
    %2270 = vmatpush1.bf16.msra.mxu0 0
    %2271 = vmatprep.subr.bf16.mxu0 0
    %2272 = vmatpush1.bf16.msra.mxu0 0
    %2273 = vmatprep.mubr.bf16.mxu0 0
    %2274 = vmatmul.mubr.bf16.gmra.mrb[0].mxu0 %v2239
    %v2275 = vpop.f32.mrb[0].mxu0
    %v2276 = vadd.f32 %v2225, %v2275
    %v2277 = vpop.f32.mrb[0].mxu0
    %v2278 = vpop.f32.mrb[0].mxu0
    %v2279 = vadd.f32 %v2225, %v2278
    %v2280 = vpop.f32.mrb[0].mxu0
    %2281 = vdwg.mxu0
    %v2282 = vadd.f32 %v2276, %v1304
    %v2283 = vadd.f32 %v2279, %v1305
    %v2284 = vsel %vm44, %v2282, 0.0
    %2285 = vadd.xlane.f32.xlu0 %v2284
    %v2286 = vpop.xlane.xlu0 %2285
    %v2287 = vsel %vm44, %v2283, 0.0
    %2288 = vadd.xlane.f32.xlu0 %v2287
    %v2289 = vpop.xlane.xlu0 %2288
    %v2290 = vmul.f32 %v2286, %v51
    %v2291 = vmul.f32 %v2289, %v51
    %v2292 = vsub.f32 %v2282, %v2290
    %v2293 = vsub.f32 %v2283, %v2291
    %v2294 = vmul.f32 %v2292, %v2292
    %v2295 = vmul.f32 %v2293, %v2293
    %v2296 = vsel %vm44, %v2294, 0.0
    %2297 = vadd.xlane.f32.xlu0 %v2296
    %v2298 = vpop.xlane.xlu0 %2297
    %v2299 = vsel %vm44, %v2295, 0.0
    %2300 = vadd.xlane.f32.xlu0 %v2299
    %v2301 = vpop.xlane.xlu0 %2300
    %v2302 = vmul.f32 %v2298, %v51
    %v2303 = vmul.f32 %v2301, %v51
    %v2304 = vadd.f32 %v2302, 1e-12
    %v2305 = vadd.f32 %v2303, 1e-12
    %v2306 = vrsqrt.pop %v2304
    %v2307 = vrsqrt.pop %v2305
    %v2308 = vmul.f32 %v2292, %v2306
    %v2309 = vmul.f32 %v2293, %v2307
    %v2310 = vlaneseq
    %v2311 = vshrl.u32 %v2310, 7
    %v2312 = vsub.s32 4, %v2311
    %v2313 = vrot.slane %v40, %v2312
    %v2314 = vmul.f32 %v2308, %v2313
    %v2315 = vmul.f32 %v2309, %v2313
    %v2316 = vlaneseq
    %v2317 = vshrl.u32 %v2316, 7
    %v2318 = vsub.s32 5, %v2317
    %v2319 = vrot.slane %v40, %v2318
    %v2320 = vadd.f32 %v2314, %v2319
    %v2321 = vadd.f32 %v2315, %v2319
    %s2322 = scalar_lea.vmem %s6, 16
    %v2323 = vld [vmem:[%s2322] sm:$0xf]
    %v2324 = vld [vmem:[%s2322 + $0x4] sm:$0xf]
    %v2325 = vld [vmem:[%s2322 + $0x8] sm:$0xf]
    %v2326 = vld [vmem:[%s2322 + $0xc] sm:$0xf]
    %v2327 = vpack.c.bf16 %v2321, %v2320
    %v2328 = vlaneseq
    %v2329 = vshrl.u32 %v2328, 7
    %v2330 = vsub.s32 6, %v2329
    %v2331 = vrot.slane %v40, %v2330
    %v2336 = vunpack.c.l.b16 %v2323
    %v2337 = vunpack.c.l.b16 %v2324
    %v2338 = vunpack.c.l.b16 %v2325
    %v2339 = vunpack.c.l.b16 %v2326
    %v2340 = vpack.c.b16 %v2337, %v2336
    %v2341 = vpack.c.b16 %v2339, %v2338
    %v2345 = vsel %vm44, %v2327, 0
    %2347 = vmatprep.subr.bf16.mxu0 0
    %2348 = vmatpush1.bf16.msra.mxu0 %v2340
    %2349 = vmatprep.subr.bf16.mxu0 0
    %2350 = vmatpush1.bf16.msra.mxu0 %v2341
    %2351 = vmatprep.subr.bf16.mxu0 0
    %2352 = vmatpush1.bf16.msra.mxu0 0
    %2353 = vmatprep.subr.bf16.mxu0 0
    %2354 = vmatpush1.bf16.msra.mxu0 0
    %2355 = vmatprep.subr.bf16.mxu0 0
    %2356 = vmatpush1.bf16.msra.mxu0 0
    %2357 = vmatprep.subr.bf16.mxu0 0
    %2358 = vmatpush1.bf16.msra.mxu0 0
    %2359 = vmatprep.subr.bf16.mxu0 0
    %2360 = vmatpush1.bf16.msra.mxu0 0
    %2361 = vmatprep.subr.bf16.mxu0 0
    %2362 = vmatpush1.bf16.msra.mxu0 0
    %2363 = vmatprep.subr.bf16.mxu0 0
    %2364 = vmatpush1.bf16.msra.mxu0 0
    %2365 = vmatprep.subr.bf16.mxu0 0
    %2366 = vmatpush1.bf16.msra.mxu0 0
    %2367 = vmatprep.subr.bf16.mxu0 0
    %2368 = vmatpush1.bf16.msra.mxu0 0
    %2369 = vmatprep.subr.bf16.mxu0 0
    %2370 = vmatpush1.bf16.msra.mxu0 0
    %2371 = vmatprep.subr.bf16.mxu0 0
    %2372 = vmatpush1.bf16.msra.mxu0 0
    %2373 = vmatprep.subr.bf16.mxu0 0
    %2374 = vmatpush1.bf16.msra.mxu0 0
    %2375 = vmatprep.subr.bf16.mxu0 0
    %2376 = vmatpush1.bf16.msra.mxu0 0
    %2377 = vmatprep.subr.bf16.mxu0 0
    %2378 = vmatpush1.bf16.msra.mxu0 0
    %2379 = vmatprep.mubr.bf16.mxu0 0
    %2380 = vmatmul.mubr.bf16.gmra.mrb[0].mxu0 %v2345
    %v2381 = vpop.f32.mrb[0].mxu0
    %v2382 = vadd.f32 %v2331, %v2381
    %v2383 = vpop.f32.mrb[0].mxu0
    %v2384 = vpop.f32.mrb[0].mxu0
    %v2385 = vadd.f32 %v2331, %v2384
    %v2386 = vpop.f32.mrb[0].mxu0
    %2387 = vdwg.mxu0
    %v2388 = vmul.f32 %v2382, %v2382
    %v2389 = vmul.f32 %v2385, %v2385
    %v2390 = vmul.f32 %v2382, %v2388
    %v2391 = vmul.f32 %v2385, %v2389
    %v2392 = vmul.f32 %v2390, 0.044715
    %v2393 = vmul.f32 %v2391, 0.044715
    %v2394 = vadd.f32 %v2382, %v2392
    %v2395 = vadd.f32 %v2385, %v2393
    %v2396 = vmul.f32 %v2394, 0.7978846
    %v2397 = vmul.f32 %v2395, 0.7978846
    %v2398 = vtanh.pop %v2396
    %v2399 = vtanh.pop %v2397
    %v2400 = vadd.f32 %v2398, 1.0
    %v2401 = vadd.f32 %v2399, 1.0
    %v2402 = vmul.f32 %v2400, 0.5
    %v2403 = vmul.f32 %v2401, 0.5
    %v2404 = vmul.f32 %v2382, %v2402
    %v2405 = vmul.f32 %v2385, %v2403
    %s2406 = scalar_lea.vmem %s7, 32
    %v2407 = vld [vmem:[%s2406] sm:$0xf]
    %v2408 = vld [vmem:[%s2406 + $0x4] sm:$0xf]
    %v2409 = vld [vmem:[%s2406 + $0x8] sm:$0xf]
    %v2410 = vld [vmem:[%s2406 + $0xc] sm:$0xf]
    %v2411 = vld [vmem:[%s2406 + $0x10] sm:$0xf]
    %v2412 = vld [vmem:[%s2406 + $0x14] sm:$0xf]
    %v2413 = vld [vmem:[%s2406 + $0x18] sm:$0xf]
    %v2414 = vld [vmem:[%s2406 + $0x1c] sm:$0xf]
    %v2415 = vpack.c.bf16 %v2405, %v2404
    %v2416 = vlaneseq
    %v2417 = vshrl.u32 %v2416, 7
    %v2418 = vsub.s32 7, %v2417
    %v2419 = vrot.slane %v40, %v2418
    %v2428 = vunpack.c.l.b16 %v2407
    %v2429 = vunpack.c.l.b16 %v2408
    %v2430 = vunpack.c.l.b16 %v2409
    %v2431 = vunpack.c.l.b16 %v2410
    %v2432 = vunpack.c.l.b16 %v2411
    %v2433 = vunpack.c.l.b16 %v2412
    %v2434 = vunpack.c.l.b16 %v2413
    %v2435 = vunpack.c.l.b16 %v2414
    %v2436 = vpack.c.b16 %v2429, %v2428
    %v2437 = vpack.c.b16 %v2431, %v2430
    %v2438 = vpack.c.b16 %v2433, %v2432
    %v2439 = vpack.c.b16 %v2435, %v2434
    %v2445 = vsel %vm1221, %v2415, 0
    %2447 = vmatprep.subr.bf16.mxu0 0
    %2448 = vmatpush1.bf16.msra.mxu0 %v2436
    %2449 = vmatprep.subr.bf16.mxu0 0
    %2450 = vmatpush1.bf16.msra.mxu0 %v2437
    %2451 = vmatprep.subr.bf16.mxu0 0
    %2452 = vmatpush1.bf16.msra.mxu0 %v2438
    %2453 = vmatprep.subr.bf16.mxu0 0
    %2454 = vmatpush1.bf16.msra.mxu0 %v2439
    %2455 = vmatprep.subr.bf16.mxu0 0
    %2456 = vmatpush1.bf16.msra.mxu0 0
    %2457 = vmatprep.subr.bf16.mxu0 0
    %2458 = vmatpush1.bf16.msra.mxu0 0
    %2459 = vmatprep.subr.bf16.mxu0 0
    %2460 = vmatpush1.bf16.msra.mxu0 0
    %2461 = vmatprep.subr.bf16.mxu0 0
    %2462 = vmatpush1.bf16.msra.mxu0 0
    %2463 = vmatprep.subr.bf16.mxu0 0
    %2464 = vmatpush1.bf16.msra.mxu0 0
    %2465 = vmatprep.subr.bf16.mxu0 0
    %2466 = vmatpush1.bf16.msra.mxu0 0
    %2467 = vmatprep.subr.bf16.mxu0 0
    %2468 = vmatpush1.bf16.msra.mxu0 0
    %2469 = vmatprep.subr.bf16.mxu0 0
    %2470 = vmatpush1.bf16.msra.mxu0 0
    %2471 = vmatprep.subr.bf16.mxu0 0
    %2472 = vmatpush1.bf16.msra.mxu0 0
    %2473 = vmatprep.subr.bf16.mxu0 0
    %2474 = vmatpush1.bf16.msra.mxu0 0
    %2475 = vmatprep.subr.bf16.mxu0 0
    %2476 = vmatpush1.bf16.msra.mxu0 0
    %2477 = vmatprep.subr.bf16.mxu0 0
    %2478 = vmatpush1.bf16.msra.mxu0 0
    %2479 = vmatprep.mubr.bf16.mxu0 0
    %2480 = vmatmul.mubr.bf16.gmra.mrb[0].mxu0 %v2445
    %v2481 = vpop.f32.mrb[0].mxu0
    %v2482 = vadd.f32 %v2419, %v2481
    %v2483 = vpop.f32.mrb[0].mxu0
    %v2484 = vpop.f32.mrb[0].mxu0
    %v2485 = vadd.f32 %v2419, %v2484
    %v2486 = vpop.f32.mrb[0].mxu0
    %2487 = vdwg.mxu0
    %v2488 = vadd.f32 %v2482, %v2320
    %v2489 = vadd.f32 %v2485, %v2321
    %v2490 = vsel %vm44, %v2488, 0.0
    %2491 = vadd.xlane.f32.xlu0 %v2490
    %v2492 = vpop.xlane.xlu0 %2491
    %v2493 = vsel %vm44, %v2489, 0.0
    %2494 = vadd.xlane.f32.xlu0 %v2493
    %v2495 = vpop.xlane.xlu0 %2494
    %v2496 = vmul.f32 %v2492, %v51
    %v2497 = vmul.f32 %v2495, %v51
    %v2498 = vsub.f32 %v2488, %v2496
    %v2499 = vsub.f32 %v2489, %v2497
    %v2500 = vmul.f32 %v2498, %v2498
    %v2501 = vmul.f32 %v2499, %v2499
    %v2502 = vsel %vm44, %v2500, 0.0
    %2503 = vadd.xlane.f32.xlu0 %v2502
    %v2504 = vpop.xlane.xlu0 %2503
    %v2505 = vsel %vm44, %v2501, 0.0
    %2506 = vadd.xlane.f32.xlu0 %v2505
    %v2507 = vpop.xlane.xlu0 %2506
    %v2508 = vmul.f32 %v2504, %v51
    %v2509 = vmul.f32 %v2507, %v51
    %v2510 = vadd.f32 %v2508, 1e-12
    %v2511 = vadd.f32 %v2509, 1e-12
    %v2512 = vrsqrt.pop %v2510
    %v2513 = vrsqrt.pop %v2511
    %v2514 = vmul.f32 %v2498, %v2512
    %v2515 = vmul.f32 %v2499, %v2513
    %v2516 = vlaneseq
    %v2517 = vshrl.u32 %v2516, 7
    %v2518 = vsub.s32 0, %v2517
    %v2519 = vrot.slane %v41, %v2518
    %v2520 = vmul.f32 %v2514, %v2519
    %v2521 = vmul.f32 %v2515, %v2519
    %v2522 = vlaneseq
    %v2523 = vshrl.u32 %v2522, 7
    %v2524 = vsub.s32 1, %v2523
    %v2525 = vrot.slane %v41, %v2524
    %v2526 = vadd.f32 %v2520, %v2525
    %v2527 = vadd.f32 %v2521, %v2525
    %v2529 = vrot.slane %v2527, 7
    %vm2531 = vcmask 1040384
    %v2532 = vsel %vm2531, %v2526, %v2529
    %v2533 = vld [vmem:[%s8] sm:$0xf]
    %v2534 = vld [vmem:[%s8 + $0x4] sm:$0xf]
    %v2535 = vld [vmem:[%s8 + $0x8] sm:$0xf]
    %v2536 = vld [vmem:[%s8 + $0xc] sm:$0xf]
    %v2537 = vpack.c.bf16 %v2532, %v2532
    %v2538 = vld [vmem:[%s2] sm:$0x3]
    %v2539 = vld [vmem:[%s8 + $0x10] sm:$0x7]
    %v2540 = vpack.c.bf16 %v2538, %v2538
    %vm2541 = vcmask 39936
    %v2543 = vsel %vm2541, %v2540, 0
    %vm2545 = vcmask 1041408
    %vm2546 = vcmask 1042432
    %v2547 = vsel %vm2545, 4294967295, 65535
    %v2548 = vsel %vm2546, %v2547, 0
    %v2550 = vand.u32 %v2539, %v2548
    %2552 = vmatprep.subr.bf16.mxu0 0
    %2553 = vmatpush1.bf16.msra.mxu0 %v2550
    %2554 = vmatprep.subr.bf16.mxu0 0
    %2555 = vmatpush1.bf16.msra.mxu0 0
    %2556 = vmatprep.subr.bf16.mxu0 0
    %2557 = vmatpush1.bf16.msra.mxu0 0
    %2558 = vmatprep.subr.bf16.mxu0 0
    %2559 = vmatpush1.bf16.msra.mxu0 0
    %2560 = vmatprep.subr.bf16.mxu0 0
    %2561 = vmatpush1.bf16.msra.mxu0 0
    %2562 = vmatprep.subr.bf16.mxu0 0
    %2563 = vmatpush1.bf16.msra.mxu0 0
    %2564 = vmatprep.subr.bf16.mxu0 0
    %2565 = vmatpush1.bf16.msra.mxu0 0
    %2566 = vmatprep.subr.bf16.mxu0 0
    %2567 = vmatpush1.bf16.msra.mxu0 0
    %2568 = vmatprep.subr.bf16.mxu0 0
    %2569 = vmatpush1.bf16.msra.mxu0 0
    %2570 = vmatprep.subr.bf16.mxu0 0
    %2571 = vmatpush1.bf16.msra.mxu0 0
    %2572 = vmatprep.subr.bf16.mxu0 0
    %2573 = vmatpush1.bf16.msra.mxu0 0
    %2574 = vmatprep.subr.bf16.mxu0 0
    %2575 = vmatpush1.bf16.msra.mxu0 0
    %2576 = vmatprep.subr.bf16.mxu0 0
    %2577 = vmatpush1.bf16.msra.mxu0 0
    %2578 = vmatprep.subr.bf16.mxu0 0
    %2579 = vmatpush1.bf16.msra.mxu0 0
    %2580 = vmatprep.subr.bf16.mxu0 0
    %2581 = vmatpush1.bf16.msra.mxu0 0
    %2582 = vmatprep.subr.bf16.mxu0 0
    %2583 = vmatpush1.bf16.msra.mxu0 0
    %2584 = vmatprep.mubr.bf16.mxu0 0
    %2585 = vmatmul.mubr.bf16.gmra.mrb[0].mxu0 %v2543
    %v2586 = vpop.f32.mrb[0].mxu0
    %v2587 = vadd.f32 0.0, %v2586
    %v2588 = vpop.f32.mrb[0].mxu0
    %v2589 = vpop.f32.mrb[0].mxu0
    %v2590 = vpop.f32.mrb[0].mxu0
    %2591 = vdwg.mxu0
    %v2596 = vunpack.c.l.b16 %v2533
    %v2597 = vunpack.c.l.b16 %v2534
    %v2598 = vunpack.c.l.b16 %v2535
    %v2599 = vunpack.c.l.b16 %v2536
    %v2600 = vpack.c.b16 %v2597, %v2596
    %v2601 = vpack.c.b16 %v2599, %v2598
    %v2605 = vsel %vm44, %v2537, 0
    %2607 = vmatprep.subr.bf16.mxu0 0
    %2608 = vmatpush1.bf16.msra.mxu0 %v2600
    %2609 = vmatprep.subr.bf16.mxu0 0
    %2610 = vmatpush1.bf16.msra.mxu0 %v2601
    %2611 = vmatprep.subr.bf16.mxu0 0
    %2612 = vmatpush1.bf16.msra.mxu0 0
    %2613 = vmatprep.subr.bf16.mxu0 0
    %2614 = vmatpush1.bf16.msra.mxu0 0
    %2615 = vmatprep.subr.bf16.mxu0 0
    %2616 = vmatpush1.bf16.msra.mxu0 0
    %2617 = vmatprep.subr.bf16.mxu0 0
    %2618 = vmatpush1.bf16.msra.mxu0 0
    %2619 = vmatprep.subr.bf16.mxu0 0
    %2620 = vmatpush1.bf16.msra.mxu0 0
    %2621 = vmatprep.subr.bf16.mxu0 0
    %2622 = vmatpush1.bf16.msra.mxu0 0
    %2623 = vmatprep.subr.bf16.mxu0 0
    %2624 = vmatpush1.bf16.msra.mxu0 0
    %2625 = vmatprep.subr.bf16.mxu0 0
    %2626 = vmatpush1.bf16.msra.mxu0 0
    %2627 = vmatprep.subr.bf16.mxu0 0
    %2628 = vmatpush1.bf16.msra.mxu0 0
    %2629 = vmatprep.subr.bf16.mxu0 0
    %2630 = vmatpush1.bf16.msra.mxu0 0
    %2631 = vmatprep.subr.bf16.mxu0 0
    %2632 = vmatpush1.bf16.msra.mxu0 0
    %2633 = vmatprep.subr.bf16.mxu0 0
    %2634 = vmatpush1.bf16.msra.mxu0 0
    %2635 = vmatprep.subr.bf16.mxu0 0
    %2636 = vmatpush1.bf16.msra.mxu0 0
    %2637 = vmatprep.subr.bf16.mxu0 0
    %2638 = vmatpush1.bf16.msra.mxu0 0
    %2639 = vmatprep.mubr.bf16.mxu0 0
    %2640 = vmatmul.mubr.bf16.gmra.mrb[0].mxu0 %v2605
    %v2641 = vpop.f32.mrb[0].mxu0
    %v2642 = vadd.f32 %v2587, %v2641
    %v2643 = vpop.f32.mrb[0].mxu0
    %v2644 = vpop.f32.mrb[0].mxu0
    %v2645 = vpop.f32.mrb[0].mxu0
    %2646 = vdwg.mxu0
    %v2647 = vlaneseq
    %v2648 = vshrl.u32 %v2647, 7
    %v2649 = vsub.s32 2, %v2648
    %v2650 = vrot.slane %v41, %v2649
    %v2651 = vadd.f32 %v2642, %v2650
    %v2652 = vmax.f32 %v2651, 0.0
    %v2653 = vld [vmem:[%s9] sm:$0xf]
    %v2654 = vld [vmem:[%s9 + $0x4] sm:$0xf]
    %v2655 = vld [vmem:[%s9 + $0x8] sm:$0xf]
    %v2656 = vld [vmem:[%s9 + $0xc] sm:$0xf]
    %v2657 = vld [vmem:[%s9 + $0x10] sm:$0xf]
    %v2658 = vld [vmem:[%s9 + $0x14] sm:$0xf]
    %v2659 = vld [vmem:[%s9 + $0x18] sm:$0xf]
    %v2660 = vld [vmem:[%s9 + $0x1c] sm:$0xf]
    %v2661 = vld [vmem:[%s9 + $0x20] sm:$0xf]
    %v2662 = vld [vmem:[%s9 + $0x24] sm:$0xf]
    %v2663 = vld [vmem:[%s9 + $0x28] sm:$0xf]
    %v2664 = vld [vmem:[%s9 + $0x2c] sm:$0xf]
    %v2665 = vld [vmem:[%s9 + $0x30] sm:$0xf]
    %v2666 = vld [vmem:[%s9 + $0x34] sm:$0xf]
    %v2667 = vld [vmem:[%s9 + $0x38] sm:$0xf]
    %v2668 = vld [vmem:[%s9 + $0x3c] sm:$0xf]
    %v2669 = vpack.c.bf16 %v2652, %v2652
    %v2670 = vlaneseq
    %v2671 = vshrl.u32 %v2670, 7
    %v2672 = vsub.s32 3, %v2671
    %v2673 = vrot.slane %v41, %v2672
    %v2690 = vunpack.c.l.b16 %v2653
    %v2691 = vunpack.c.l.b16 %v2654
    %v2692 = vunpack.c.l.b16 %v2655
    %v2693 = vunpack.c.l.b16 %v2656
    %v2694 = vunpack.c.l.b16 %v2657
    %v2695 = vunpack.c.l.b16 %v2658
    %v2696 = vunpack.c.l.b16 %v2659
    %v2697 = vunpack.c.l.b16 %v2660
    %v2698 = vunpack.c.l.b16 %v2661
    %v2699 = vunpack.c.l.b16 %v2662
    %v2700 = vunpack.c.l.b16 %v2663
    %v2701 = vunpack.c.l.b16 %v2664
    %v2702 = vunpack.c.l.b16 %v2665
    %v2703 = vunpack.c.l.b16 %v2666
    %v2704 = vunpack.c.l.b16 %v2667
    %v2705 = vunpack.c.l.b16 %v2668
    %v2706 = vpack.c.b16 %v2691, %v2690
    %v2707 = vpack.c.b16 %v2693, %v2692
    %v2708 = vpack.c.b16 %v2695, %v2694
    %v2709 = vpack.c.b16 %v2697, %v2696
    %v2710 = vpack.c.b16 %v2699, %v2698
    %v2711 = vpack.c.b16 %v2701, %v2700
    %v2712 = vpack.c.b16 %v2703, %v2702
    %v2713 = vpack.c.b16 %v2705, %v2704
    %2722 = vmatprep.subr.bf16.mxu0 0
    %2723 = vmatpush1.bf16.msra.mxu0 %v2706
    %2724 = vmatprep.subr.bf16.mxu0 0
    %2725 = vmatpush1.bf16.msra.mxu0 %v2707
    %2726 = vmatprep.subr.bf16.mxu0 0
    %2727 = vmatpush1.bf16.msra.mxu0 %v2708
    %2728 = vmatprep.subr.bf16.mxu0 0
    %2729 = vmatpush1.bf16.msra.mxu0 %v2709
    %2730 = vmatprep.subr.bf16.mxu0 0
    %2731 = vmatpush1.bf16.msra.mxu0 %v2710
    %2732 = vmatprep.subr.bf16.mxu0 0
    %2733 = vmatpush1.bf16.msra.mxu0 %v2711
    %2734 = vmatprep.subr.bf16.mxu0 0
    %2735 = vmatpush1.bf16.msra.mxu0 %v2712
    %2736 = vmatprep.subr.bf16.mxu0 0
    %2737 = vmatpush1.bf16.msra.mxu0 %v2713
    %2738 = vmatprep.subr.bf16.mxu0 0
    %2739 = vmatpush1.bf16.msra.mxu0 0
    %2740 = vmatprep.subr.bf16.mxu0 0
    %2741 = vmatpush1.bf16.msra.mxu0 0
    %2742 = vmatprep.subr.bf16.mxu0 0
    %2743 = vmatpush1.bf16.msra.mxu0 0
    %2744 = vmatprep.subr.bf16.mxu0 0
    %2745 = vmatpush1.bf16.msra.mxu0 0
    %2746 = vmatprep.subr.bf16.mxu0 0
    %2747 = vmatpush1.bf16.msra.mxu0 0
    %2748 = vmatprep.subr.bf16.mxu0 0
    %2749 = vmatpush1.bf16.msra.mxu0 0
    %2750 = vmatprep.subr.bf16.mxu0 0
    %2751 = vmatpush1.bf16.msra.mxu0 0
    %2752 = vmatprep.subr.bf16.mxu0 0
    %2753 = vmatpush1.bf16.msra.mxu0 0
    %2754 = vmatprep.mubr.bf16.mxu0 0
    %2755 = vmatmul.mubr.bf16.gmra.mrb[0].mxu0 %v2669
    %v2756 = vpop.f32.mrb[0].mxu0
    %v2757 = vadd.f32 %v2673, %v2756
    %v2758 = vpop.f32.mrb[0].mxu0
    %v2759 = vpop.f32.mrb[0].mxu0
    %v2760 = vpop.f32.mrb[0].mxu0
    %2761 = vdwg.mxu0
    %vm2762 = vcmask 17408
    %2763 = vst.msk [vmem:[#allocation2] sm:$0x3] %vm2762, %v2757
    // Predicated region
    $region42: #{bert_with_scalar_features.1} parent=1 // pred_check
      _
    $region43: #{bert_with_scalar_features.1} parent=1 // pred_check_branch
      %2765 = sbr.rel (0) target = $region45
    $region44: #{bert_with_scalar_features.1} parent=1 // pred_region
      %s2767 = ssub.s32 32, 32
      %2768 = vsyncadd [#allocation3], %s2767
      %s2770 = sshll.u32 [#allocation2], 4
      %s2771 = int_to_ptr.vmem [resolvable:$true] %s2770
      %2773 = dma.vmem_to_hbm [thread:$0]  %s2771, 32, %s10, [#allocation3]
    $region45: #{bert_with_scalar_features.1} parent=1 // pred_fallthru
      _
    // Predicated region
    $region46: #{bert_with_scalar_features.1} parent=1 // pred_check
      _
    $region47: #{bert_with_scalar_features.1} parent=1 // pred_check_branch
      %2775 = sbr.rel (0) target = $region49
    $region48: #{bert_with_scalar_features.1} parent=1 // pred_region
      %2776 = dma.done [#allocation3], 32
    $region49: #{bert_with_scalar_features.1} parent=1 // pred_fallthru
      _
    %2777 = vsyncpa [#allocation3], 1

</llo_original>
